<compile_context>
chip_gen: v7x
topology: tpu7x:2x2x1
jax: 0.10.0
libtpu: 0.0.40
codegen_flags: <defaults>
</compile_context>

<pallas_src>
import math
import functools

import jax
import jax.numpy as jnp
from jax import lax
from jax.experimental import pallas as pl
from jax.experimental.pallas import tpu as pltpu


# ---------------------------------------------------------------------------
# Fused kernel: projections + multi-head attention + out projection
# ---------------------------------------------------------------------------
def fused_cross_attention_kernel(x_ref, y_ref,
                                 wq_ref, bq_ref,
                                 wk_ref, bk_ref,
                                 wv_ref, bv_ref,
                                 wo_ref, bo_ref,
                                 out_ref,
                                 k_cache, v_cache, o_acc,
                                 *, n_heads, d_head):
    # Blocks: x (1, Tq, d_embed), y (1, Lkv, d_cross), out (1, Tq, d_embed).
    cdt = k_cache.dtype  # compute dtype (bf16 in production, f32 in the f32 test)

    # --- k/v projections: compute once per batch element (q-tile index 0) and
    #     cache in VMEM scratch; valid across the whole "arbitrary" qi axis.
    @pl.when(pl.program_id(1) == 0)
    def _():
        y = y_ref[0]                                                  # (Lkv, d_cross)
        k = jnp.dot(y, wk_ref[...], preferred_element_type=jnp.float32) + bk_ref[...]
        v = jnp.dot(y, wv_ref[...], preferred_element_type=jnp.float32) + bv_ref[...]
        k_cache[...] = k.astype(cdt)
        v_cache[...] = v.astype(cdt)

    # --- q projection for this tile (1/sqrt(d_head) already folded into wq/bq).
    x = x_ref[0]                                                      # (Tq, d_embed)
    q = (jnp.dot(x, wq_ref[...], preferred_element_type=jnp.float32)
         + bq_ref[...]).astype(cdt)
    k = k_cache[...]
    v = v_cache[...]

    # --- per-head scaled-dot-product attention, statically unrolled; each head's
    #     output lands in a lane-dense (Tq, d_embed) scratch at a static offset.
    for h in range(n_heads):
        sl = slice(h * d_head, (h + 1) * d_head)
        qh = q[:, sl]                                                 # (Tq,  dh)
        kh = k[:, sl]                                                 # (Lkv, dh)
        vh = v[:, sl]                                                 # (Lkv, dh)

        # q @ k^T contracting d_head directly (no materialized transpose of k).
        s = lax.dot_general(qh, kh, (((1,), (1,)), ((), ())),
                            preferred_element_type=jnp.float32)      # (Tq, Lkv)

        # Numerically stable softmax over keys; normalization uses the EUP slot.
        m = jnp.max(s, axis=-1, keepdims=True)
        p = jnp.exp(s - m)
        denom = jnp.sum(p, axis=-1, keepdims=True)
        p = p * pl.reciprocal(denom, approx=True)

        o_acc[:, sl] = jnp.dot(p.astype(cdt), vh,
                               preferred_element_type=jnp.float32)

    # --- output projection + single lane-dense store.
    out = (jnp.dot(o_acc[...].astype(cdt), wo_ref[...],
                   preferred_element_type=jnp.float32) + bo_ref[...])
    out_ref[0] = out.astype(out_ref.dtype)

    # TODO(synk): for very long Lkv, add a kv-tile grid axis with a flash-style
    # online softmax (m/l/acc scratch) instead of holding the full (Tq, Lkv)
    # score matrices; needed earliest on v7x's 64 MiB VMEM.


# ---------------------------------------------------------------------------
# Wrapper helpers
# ---------------------------------------------------------------------------
def _pick_q_tile(lq):
    # Prefer large, MXU-filling q tiles (>=256 rows fill the 256-wide MXU on
    # v6e/v7x); keep the whole Lq for small sequences.
    for cand in (512, 256, 128):
        if lq > cand and lq % cand == 0:
            return cand
    return lq


def _vmem_limit_bytes(tile_q, lkv, d_embed, d_cross, compute_dtype, out_dtype):
    c = jnp.dtype(compute_dtype).itemsize
    o = jnp.dtype(out_dtype).itemsize
    x_blk = tile_q * d_embed * c
    y_blk = lkv * d_cross * c
    out_blk = tile_q * d_embed * o
    weights = (2 * d_embed * d_embed + 2 * d_cross * d_embed) * c + 4 * d_embed * 4
    scratch = 2 * lkv * d_embed * c + tile_q * d_embed * 4
    interm = 2 * tile_q * lkv * 4 + 4 * tile_q * d_embed * 4
    est = 2 * (x_blk + out_blk) + 2 * y_blk + 2 * weights + scratch + interm
    # Floor 32 MiB (v5e default scoped VMEM is only 16 MiB), cap 64 MiB (v7x
    # physical per-TensorCore VMEM).
    return int(min(64 << 20, max(32 << 20, 2 * est)))


# ---------------------------------------------------------------------------
# Wrapper
# ---------------------------------------------------------------------------
def cross_attention_forward(params, x, y, n_heads, *, compute_dtype=jnp.bfloat16):
    """Matches CrossAttention.forward semantics (single fused Pallas kernel)."""
    B, Lq, d_embed = x.shape
    _, Lkv, d_cross = y.shape
    d_head = d_embed // n_heads
    scale = 1.0 / math.sqrt(d_head)

    tile_q = _pick_q_tile(Lq)
    n_q_tiles = Lq // tile_q

    # Scale folded into the q projection; weights in compute dtype, biases f32.
    wq = (params["wq"] * scale).astype(compute_dtype)
    bq = (params["bq"] * scale).astype(jnp.float32).reshape(1, -1)
    wk = params["wk"].astype(compute_dtype)
    bk = params["bk"].astype(jnp.float32).reshape(1, -1)
    wv = params["wv"].astype(compute_dtype)
    bv = params["bv"].astype(jnp.float32).reshape(1, -1)
    wo = params["wo"].astype(compute_dtype)
    bo = params["bo"].astype(jnp.float32).reshape(1, -1)

    # In production activations arrive in bf16 already; cast here so activation
    # DMA and every MXU matmul run at the bf16-native width.
    x_c = x.astype(compute_dtype)
    y_c = y.astype(compute_dtype)

    kern = functools.partial(fused_cross_attention_kernel,
                             n_heads=n_heads, d_head=d_head)

    const = lambda b, qi: (0, 0)  # weights/biases: one resident block

    def build(weight_pipeline_mode):
        def wspec(shape):
            if weight_pipeline_mode is None:
                return pl.BlockSpec(shape, const)
            return pl.BlockSpec(shape, const, pipeline_mode=weight_pipeline_mode)

        return pl.pallas_call(
            kern,
            out_shape=jax.ShapeDtypeStruct((B, Lq, d_embed), x.dtype),
            grid=(B, n_q_tiles),
            in_specs=[
                pl.BlockSpec((1, tile_q, d_embed), lambda b, qi: (b, qi, 0)),   # x
                pl.BlockSpec((1, Lkv, d_cross),    lambda b, qi: (b, 0, 0)),    # y
                wspec((d_embed, d_embed)),                                      # wq
                wspec((1, d_embed)),                                            # bq
                wspec((d_cross, d_embed)),                                      # wk
                wspec((1, d_embed)),                                            # bk
                wspec((d_cross, d_embed)),                                      # wv
                wspec((1, d_embed)),                                            # bv
                wspec((d_embed, d_embed)),                                      # wo
                wspec((1, d_embed)),                                            # bo
            ],
            out_specs=pl.BlockSpec((1, tile_q, d_embed), lambda b, qi: (b, qi, 0)),
            scratch_shapes=[
                pltpu.VMEM((Lkv, d_embed), compute_dtype),    # cached k
                pltpu.VMEM((Lkv, d_embed), compute_dtype),    # cached v
                pltpu.VMEM((tile_q, d_embed), jnp.float32),   # per-tile attn out
            ],
            compiler_params=pltpu.CompilerParams(
                # qi must be "arbitrary": the k/v cache init at qi==0 assumes the
                # tile loop runs sequentially per batch element; B stays parallel
                # (megacore-shardable on v7x).
                dimension_semantics=("parallel", "arbitrary"),
                vmem_limit_bytes=_vmem_limit_bytes(
                    tile_q, Lkv, d_embed, d_cross, compute_dtype, x.dtype)),
        )

    args = (x_c, y_c, wq, bq, wk, bk, wv, bv, wo, bo)
    try:
        # Constant index map -> single-buffer the resident weights/biases.
        return build(pl.Buffered(1))(*args)
    except Exception:
        # Fallback for jax versions that reject pipeline_mode on the main
        # pallas_call pipeline; semantics are identical (constant index map).
        return build(None)(*args)


# ---------------------------------------------------------------------------
# Pure-JAX reference for correctness checking
# ---------------------------------------------------------------------------
def cross_attention_ref(params, x, y, n_heads):
    B, Lq, d_embed = x.shape
    Lkv = y.shape[1]
    d_head = d_embed // n_heads
    q = x @ params["wq"] + params["bq"]
    k = y @ params["wk"] + params["bk"]
    v = y @ params["wv"] + params["bv"]
    q = q.reshape(B, Lq, n_heads, d_head).transpose(0, 2, 1, 3)
    k = k.reshape(B, Lkv, n_heads, d_head).transpose(0, 2, 1, 3)
    v = v.reshape(B, Lkv, n_heads, d_head).transpose(0, 2, 1, 3)
    w = jnp.einsum("bhqd,bhkd->bhqk", q, k) / math.sqrt(d_head)
    w = jax.nn.softmax(w, axis=-1)
    o = jnp.einsum("bhqk,bhkd->bhqd", w, v)
    o = o.transpose(0, 2, 1, 3).reshape(B, Lq, d_embed)
    return o @ params["wo"] + params["bo"]


# ---------------------------------------------------------------------------
# Main
# ---------------------------------------------------------------------------
if __name__ == "__main__":
    # Small shapes consistent with the module.
    B, n_heads, d_embed, d_cross = 2, 4, 32, 16
    Lq, Lkv = 8, 8

    key = jax.random.PRNGKey(0)
    keys = jax.random.split(key, 10)

    # Deterministic parameter init (weights stored as (d_in, d_out)).
    params = {
        "wq": jax.random.normal(keys[0], (d_embed, d_embed), jnp.float32) * 0.05,
        "bq": jax.random.normal(keys[1], (d_embed,), jnp.float32) * 0.05,
        "wk": jax.random.normal(keys[2], (d_cross, d_embed), jnp.float32) * 0.05,
        "bk": jax.random.normal(keys[3], (d_embed,), jnp.float32) * 0.05,
        "wv": jax.random.normal(keys[4], (d_cross, d_embed), jnp.float32) * 0.05,
        "bv": jax.random.normal(keys[5], (d_embed,), jnp.float32) * 0.05,
        "wo": jax.random.normal(keys[6], (d_embed, d_embed), jnp.float32) * 0.05,
        "bo": jax.random.normal(keys[7], (d_embed,), jnp.float32) * 0.05,
    }

    x = jax.random.normal(keys[8], (B, Lq, d_embed), jnp.float32)
    y = jax.random.normal(keys[9], (B, Lkv, d_cross), jnp.float32)

    ref = cross_attention_ref(params, x, y, n_heads)

    # f32 compute path: tight check against the f32 reference
    # (tolerance loosened slightly for the EUP approximate-reciprocal softmax).
    out_f32 = jax.block_until_ready(
        cross_attention_forward(params, x, y, n_heads, compute_dtype=jnp.float32))
    assert out_f32.shape == (B, Lq, d_embed)
    assert jnp.allclose(out_f32, ref, atol=2e-3, rtol=2e-3), "f32 mismatch vs reference"

    # bf16 compute path (production default, MXU-native): looser tolerance.
    out_bf16 = jax.block_until_ready(
        cross_attention_forward(params, x, y, n_heads, compute_dtype=jnp.bfloat16))
    assert out_bf16.shape == (B, Lq, d_embed)
    assert jnp.allclose(out_bf16, ref, atol=2e-2, rtol=2e-2), "bf16 mismatch vs reference"

    print("KERNEL_OK")
</pallas_src>

<mosaic_0001>
module attributes {stable_mosaic.version = 11 : i64} {
  func.func @fused_cross_attention_kernel(%arg0: i32, %arg1: i32, %arg2: memref<1x8x32xf32, #tpu.memory_space<vmem>>, %arg3: memref<1x8x16xf32, #tpu.memory_space<vmem>>, %arg4: memref<32x32xf32, #tpu.memory_space<vmem>>, %arg5: memref<1x32xf32, #tpu.memory_space<vmem>>, %arg6: memref<16x32xf32, #tpu.memory_space<vmem>>, %arg7: memref<1x32xf32, #tpu.memory_space<vmem>>, %arg8: memref<16x32xf32, #tpu.memory_space<vmem>>, %arg9: memref<1x32xf32, #tpu.memory_space<vmem>>, %arg10: memref<32x32xf32, #tpu.memory_space<vmem>>, %arg11: memref<1x32xf32, #tpu.memory_space<vmem>>, %arg12: memref<1x8x32xf32, #tpu.memory_space<vmem>>, %arg13: memref<8x32xf32, #tpu.memory_space<vmem>>, %arg14: memref<8x32xf32, #tpu.memory_space<vmem>>, %arg15: memref<8x32xf32, #tpu.memory_space<vmem>>) attributes {dimension_semantics = [#tpu.dimension_semantics<parallel>, #tpu.dimension_semantics<arbitrary>], iteration_bounds = array<i64: 2, 1>, scalar_prefetch = 0 : i64, scratch_operands = 3 : i64, tpu.core_type = #tpu.core_type<tc>, window_params = [{transform_indices = @transform_0, window_bounds = array<i64: 1, 8, 32>}, {transform_indices = @transform_1, window_bounds = array<i64: 1, 8, 16>}, {pipeline_mode = #tpu.pipeline_mode<synchronous>, transform_indices = @transform_2, window_bounds = array<i64: 32, 32>}, {pipeline_mode = #tpu.pipeline_mode<synchronous>, transform_indices = @transform_3, window_bounds = array<i64: 1, 32>}, {pipeline_mode = #tpu.pipeline_mode<synchronous>, transform_indices = @transform_4, window_bounds = array<i64: 16, 32>}, {pipeline_mode = #tpu.pipeline_mode<synchronous>, transform_indices = @transform_5, window_bounds = array<i64: 1, 32>}, {pipeline_mode = #tpu.pipeline_mode<synchronous>, transform_indices = @transform_6, window_bounds = array<i64: 16, 32>}, {pipeline_mode = #tpu.pipeline_mode<synchronous>, transform_indices = @transform_7, window_bounds = array<i64: 1, 32>}, {pipeline_mode = #tpu.pipeline_mode<synchronous>, transform_indices = @transform_8, window_bounds = array<i64: 32, 32>}, {pipeline_mode = #tpu.pipeline_mode<synchronous>, transform_indices = @transform_9, window_bounds = array<i64: 1, 32>}, {transform_indices = @transform_10, window_bounds = array<i64: 1, 8, 32>}]} {
    %c0_i32 = arith.constant 0 : i32
    %0 = arith.cmpi eq, %arg1, %c0_i32 : i32
    %1 = arith.extui %0 : i1 to i32
    %c0_i32_0 = arith.constant 0 : i32
    %2 = arith.cmpi ne, %1, %c0_i32_0 : i32
    scf.if %2 {
      %c0_42 = arith.constant 0 : index
      %c0_43 = arith.constant 0 : index
      %c0_44 = arith.constant 0 : index
      %85 = vector.load %arg3[%c0_42, %c0_43, %c0_44] : memref<1x8x16xf32, #tpu.memory_space<vmem>>, vector<1x8x16xf32>
      %86 = vector.shape_cast %85 : vector<1x8x16xf32> to vector<8x16xf32>
      %c0_45 = arith.constant 0 : index
      %c0_46 = arith.constant 0 : index
      %87 = vector.load %arg6[%c0_45, %c0_46] : memref<16x32xf32, #tpu.memory_space<vmem>>, vector<16x32xf32>
      %cst_47 = arith.constant dense<0.000000e+00> : vector<8x32xf32>
      %88 = tpu.matmul %86, %87, %cst_47 {dimension_numbers = #tpu.dot_dimension_numbers<[1], [0], [0], [1], [0, 0, 1, 1], [], []>} : vector<8x16xf32>, vector<16x32xf32>, vector<8x32xf32> -> vector<8x32xf32>
      %c0_48 = arith.constant 0 : index
      %c0_49 = arith.constant 0 : index
      %89 = vector.load %arg7[%c0_48, %c0_49] : memref<1x32xf32, #tpu.memory_space<vmem>>, vector<1x32xf32>
      %90 = vector.broadcast %89 : vector<1x32xf32> to vector<8x32xf32>
      %91 = arith.addf %88, %90 : vector<8x32xf32>
      %c0_50 = arith.constant 0 : index
      %c0_51 = arith.constant 0 : index
      %92 = vector.load %arg8[%c0_50, %c0_51] : memref<16x32xf32, #tpu.memory_space<vmem>>, vector<16x32xf32>
      %cst_52 = arith.constant dense<0.000000e+00> : vector<8x32xf32>
      %93 = tpu.matmul %86, %92, %cst_52 {dimension_numbers = #tpu.dot_dimension_numbers<[1], [0], [0], [1], [0, 0, 1, 1], [], []>} : vector<8x16xf32>, vector<16x32xf32>, vector<8x32xf32> -> vector<8x32xf32>
      %c0_53 = arith.constant 0 : index
      %c0_54 = arith.constant 0 : index
      %94 = vector.load %arg9[%c0_53, %c0_54] : memref<1x32xf32, #tpu.memory_space<vmem>>, vector<1x32xf32>
      %95 = vector.broadcast %94 : vector<1x32xf32> to vector<8x32xf32>
      %96 = arith.addf %93, %95 : vector<8x32xf32>
      %c0_55 = arith.constant 0 : index
      %c0_56 = arith.constant 0 : index
      %97 = vector.load %arg13[%c0_55, %c0_56] : memref<8x32xf32, #tpu.memory_space<vmem>>, vector<8x32xf32>
      tpu.vector_store %arg13[%c0_55, %c0_56], %91 {strides = array<i32>} : memref<8x32xf32, #tpu.memory_space<vmem>>, vector<8x32xf32>,
      %c0_57 = arith.constant 0 : index
      %c0_58 = arith.constant 0 : index
      %98 = vector.load %arg14[%c0_57, %c0_58] : memref<8x32xf32, #tpu.memory_space<vmem>>, vector<8x32xf32>
      tpu.vector_store %arg14[%c0_57, %c0_58], %96 {strides = array<i32>} : memref<8x32xf32, #tpu.memory_space<vmem>>, vector<8x32xf32>,
    } else {
    }
    %c0 = arith.constant 0 : index
    %c0_1 = arith.constant 0 : index
    %c0_2 = arith.constant 0 : index
    %3 = vector.load %arg2[%c0, %c0_1, %c0_2] : memref<1x8x32xf32, #tpu.memory_space<vmem>>, vector<1x8x32xf32>
    %4 = vector.shape_cast %3 : vector<1x8x32xf32> to vector<8x32xf32>
    %c0_3 = arith.constant 0 : index
    %c0_4 = arith.constant 0 : index
    %5 = vector.load %arg4[%c0_3, %c0_4] : memref<32x32xf32, #tpu.memory_space<vmem>>, vector<32x32xf32>
    %cst = arith.constant dense<0.000000e+00> : vector<8x32xf32>
    %6 = tpu.matmul %4, %5, %cst {dimension_numbers = #tpu.dot_dimension_numbers<[1], [0], [0], [1], [0, 0, 1, 1], [], []>} : vector<8x32xf32>, vector<32x32xf32>, vector<8x32xf32> -> vector<8x32xf32>
    %c0_5 = arith.constant 0 : index
    %c0_6 = arith.constant 0 : index
    %7 = vector.load %arg5[%c0_5, %c0_6] : memref<1x32xf32, #tpu.memory_space<vmem>>, vector<1x32xf32>
    %8 = vector.broadcast %7 : vector<1x32xf32> to vector<8x32xf32>
    %9 = arith.addf %6, %8 : vector<8x32xf32>
    %c0_7 = arith.constant 0 : index
    %c0_8 = arith.constant 0 : index
    %10 = vector.load %arg13[%c0_7, %c0_8] : memref<8x32xf32, #tpu.memory_space<vmem>>, vector<8x32xf32>
    %c0_9 = arith.constant 0 : index
    %c0_10 = arith.constant 0 : index
    %11 = vector.load %arg14[%c0_9, %c0_10] : memref<8x32xf32, #tpu.memory_space<vmem>>, vector<8x32xf32>
    %12 = vector.extract_strided_slice %9 {offsets = [0, 0], sizes = [8, 8], strides = [1, 1]} : vector<8x32xf32> to vector<8x8xf32>
    %13 = vector.extract_strided_slice %10 {offsets = [0, 0], sizes = [8, 8], strides = [1, 1]} : vector<8x32xf32> to vector<8x8xf32>
    %14 = vector.extract_strided_slice %11 {offsets = [0, 0], sizes = [8, 8], strides = [1, 1]} : vector<8x32xf32> to vector<8x8xf32>
    %cst_11 = arith.constant dense<0.000000e+00> : vector<8x8xf32>
    %15 = tpu.matmul %12, %13, %cst_11 {dimension_numbers = #tpu.dot_dimension_numbers<[1], [1], [0], [0], [0, 0, 1, 0], [], []>} : vector<8x8xf32>, vector<8x8xf32>, vector<8x8xf32> -> vector<8x8xf32>
    %cst_12 = arith.constant dense<0xFF800000> : vector<8xf32>
    %16 = vector.multi_reduction <maximumf>, %15, %cst_12 [1] : vector<8x8xf32> to vector<8xf32>
    %17 = vector.shape_cast %16 : vector<8xf32> to vector<8x1xf32>
    %18 = vector.broadcast %17 : vector<8x1xf32> to vector<8x8xf32>
    %19 = arith.subf %15, %18 : vector<8x8xf32>
    %20 = math.exp %19 : vector<8x8xf32>
    %cst_13 = arith.constant dense<0.000000e+00> : vector<8xf32>
    %21 = vector.multi_reduction <add>, %20, %cst_13 [1] : vector<8x8xf32> to vector<8xf32>
    %22 = vector.shape_cast %21 : vector<8xf32> to vector<8x1xf32>
    %23 = tpu.reciprocal %22 {approx = true} : vector<8x1xf32> -> vector<8x1xf32>
    %24 = vector.broadcast %23 : vector<8x1xf32> to vector<8x8xf32>
    %25 = arith.mulf %20, %24 : vector<8x8xf32>
    %cst_14 = arith.constant dense<0.000000e+00> : vector<8x8xf32>
    %26 = tpu.matmul %25, %14, %cst_14 {dimension_numbers = #tpu.dot_dimension_numbers<[1], [0], [0], [1], [0, 0, 1, 1], [], []>} : vector<8x8xf32>, vector<8x8xf32>, vector<8x8xf32> -> vector<8x8xf32>
    %c0_15 = arith.constant 0 : index
    %c0_16 = arith.constant 0 : index
    %27 = vector.load %arg15[%c0_15, %c0_16] : memref<8x32xf32, #tpu.memory_space<vmem>>, vector<8x8xf32>
    tpu.vector_store %arg15[%c0_15, %c0_16], %26 {strides = array<i32>} : memref<8x32xf32, #tpu.memory_space<vmem>>, vector<8x8xf32>,
    %28 = vector.extract_strided_slice %9 {offsets = [0, 8], sizes = [8, 8], strides = [1, 1]} : vector<8x32xf32> to vector<8x8xf32>
    %29 = vector.extract_strided_slice %10 {offsets = [0, 8], sizes = [8, 8], strides = [1, 1]} : vector<8x32xf32> to vector<8x8xf32>
    %30 = vector.extract_strided_slice %11 {offsets = [0, 8], sizes = [8, 8], strides = [1, 1]} : vector<8x32xf32> to vector<8x8xf32>
    %cst_17 = arith.constant dense<0.000000e+00> : vector<8x8xf32>
    %31 = tpu.matmul %28, %29, %cst_17 {dimension_numbers = #tpu.dot_dimension_numbers<[1], [1], [0], [0], [0, 0, 1, 0], [], []>} : vector<8x8xf32>, vector<8x8xf32>, vector<8x8xf32> -> vector<8x8xf32>
    %cst_18 = arith.constant dense<0xFF800000> : vector<8xf32>
    %32 = vector.multi_reduction <maximumf>, %31, %cst_18 [1] : vector<8x8xf32> to vector<8xf32>
    %33 = vector.shape_cast %32 : vector<8xf32> to vector<8x1xf32>
    %34 = vector.broadcast %33 : vector<8x1xf32> to vector<8x8xf32>
    %35 = arith.subf %31, %34 : vector<8x8xf32>
    %36 = math.exp %35 : vector<8x8xf32>
    %cst_19 = arith.constant dense<0.000000e+00> : vector<8xf32>
    %37 = vector.multi_reduction <add>, %36, %cst_19 [1] : vector<8x8xf32> to vector<8xf32>
    %38 = vector.shape_cast %37 : vector<8xf32> to vector<8x1xf32>
    %39 = tpu.reciprocal %38 {approx = true} : vector<8x1xf32> -> vector<8x1xf32>
    %40 = vector.broadcast %39 : vector<8x1xf32> to vector<8x8xf32>
    %41 = arith.mulf %36, %40 : vector<8x8xf32>
    %cst_20 = arith.constant dense<0.000000e+00> : vector<8x8xf32>
    %42 = tpu.matmul %41, %30, %cst_20 {dimension_numbers = #tpu.dot_dimension_numbers<[1], [0], [0], [1], [0, 0, 1, 1], [], []>} : vector<8x8xf32>, vector<8x8xf32>, vector<8x8xf32> -> vector<8x8xf32>
    %c0_21 = arith.constant 0 : index
    %c8 = arith.constant 8 : index
    %43 = vector.load %arg15[%c0_21, %c8] : memref<8x32xf32, #tpu.memory_space<vmem>>, vector<8x8xf32>
    tpu.vector_store %arg15[%c0_21, %c8], %42 {strides = array<i32>} : memref<8x32xf32, #tpu.memory_space<vmem>>, vector<8x8xf32>,
    %44 = vector.extract_strided_slice %9 {offsets = [0, 16], sizes = [8, 8], strides = [1, 1]} : vector<8x32xf32> to vector<8x8xf32>
    %45 = vector.extract_strided_slice %10 {offsets = [0, 16], sizes = [8, 8], strides = [1, 1]} : vector<8x32xf32> to vector<8x8xf32>
    %46 = vector.extract_strided_slice %11 {offsets = [0, 16], sizes = [8, 8], strides = [1, 1]} : vector<8x32xf32> to vector<8x8xf32>
    %cst_22 = arith.constant dense<0.000000e+00> : vector<8x8xf32>
    %47 = tpu.matmul %44, %45, %cst_22 {dimension_numbers = #tpu.dot_dimension_numbers<[1], [1], [0], [0], [0, 0, 1, 0], [], []>} : vector<8x8xf32>, vector<8x8xf32>, vector<8x8xf32> -> vector<8x8xf32>
    %cst_23 = arith.constant dense<0xFF800000> : vector<8xf32>
    %48 = vector.multi_reduction <maximumf>, %47, %cst_23 [1] : vector<8x8xf32> to vector<8xf32>
    %49 = vector.shape_cast %48 : vector<8xf32> to vector<8x1xf32>
    %50 = vector.broadcast %49 : vector<8x1xf32> to vector<8x8xf32>
    %51 = arith.subf %47, %50 : vector<8x8xf32>
    %52 = math.exp %51 : vector<8x8xf32>
    %cst_24 = arith.constant dense<0.000000e+00> : vector<8xf32>
    %53 = vector.multi_reduction <add>, %52, %cst_24 [1] : vector<8x8xf32> to vector<8xf32>
    %54 = vector.shape_cast %53 : vector<8xf32> to vector<8x1xf32>
    %55 = tpu.reciprocal %54 {approx = true} : vector<8x1xf32> -> vector<8x1xf32>
    %56 = vector.broadcast %55 : vector<8x1xf32> to vector<8x8xf32>
    %57 = arith.mulf %52, %56 : vector<8x8xf32>
    %cst_25 = arith.constant dense<0.000000e+00> : vector<8x8xf32>
    %58 = tpu.matmul %57, %46, %cst_25 {dimension_numbers = #tpu.dot_dimension_numbers<[1], [0], [0], [1], [0, 0, 1, 1], [], []>} : vector<8x8xf32>, vector<8x8xf32>, vector<8x8xf32> -> vector<8x8xf32>
    %c0_26 = arith.constant 0 : index
    %c16 = arith.constant 16 : index
    %59 = vector.load %arg15[%c0_26, %c16] : memref<8x32xf32, #tpu.memory_space<vmem>>, vector<8x8xf32>
    tpu.vector_store %arg15[%c0_26, %c16], %58 {strides = array<i32>} : memref<8x32xf32, #tpu.memory_space<vmem>>, vector<8x8xf32>,
    %60 = vector.extract_strided_slice %9 {offsets = [0, 24], sizes = [8, 8], strides = [1, 1]} : vector<8x32xf32> to vector<8x8xf32>
    %61 = vector.extract_strided_slice %10 {offsets = [0, 24], sizes = [8, 8], strides = [1, 1]} : vector<8x32xf32> to vector<8x8xf32>
    %62 = vector.extract_strided_slice %11 {offsets = [0, 24], sizes = [8, 8], strides = [1, 1]} : vector<8x32xf32> to vector<8x8xf32>
    %cst_27 = arith.constant dense<0.000000e+00> : vector<8x8xf32>
    %63 = tpu.matmul %60, %61, %cst_27 {dimension_numbers = #tpu.dot_dimension_numbers<[1], [1], [0], [0], [0, 0, 1, 0], [], []>} : vector<8x8xf32>, vector<8x8xf32>, vector<8x8xf32> -> vector<8x8xf32>
    %cst_28 = arith.constant dense<0xFF800000> : vector<8xf32>
    %64 = vector.multi_reduction <maximumf>, %63, %cst_28 [1] : vector<8x8xf32> to vector<8xf32>
    %65 = vector.shape_cast %64 : vector<8xf32> to vector<8x1xf32>
    %66 = vector.broadcast %65 : vector<8x1xf32> to vector<8x8xf32>
    %67 = arith.subf %63, %66 : vector<8x8xf32>
    %68 = math.exp %67 : vector<8x8xf32>
    %cst_29 = arith.constant dense<0.000000e+00> : vector<8xf32>
    %69 = vector.multi_reduction <add>, %68, %cst_29 [1] : vector<8x8xf32> to vector<8xf32>
    %70 = vector.shape_cast %69 : vector<8xf32> to vector<8x1xf32>
    %71 = tpu.reciprocal %70 {approx = true} : vector<8x1xf32> -> vector<8x1xf32>
    %72 = vector.broadcast %71 : vector<8x1xf32> to vector<8x8xf32>
    %73 = arith.mulf %68, %72 : vector<8x8xf32>
    %cst_30 = arith.constant dense<0.000000e+00> : vector<8x8xf32>
    %74 = tpu.matmul %73, %62, %cst_30 {dimension_numbers = #tpu.dot_dimension_numbers<[1], [0], [0], [1], [0, 0, 1, 1], [], []>} : vector<8x8xf32>, vector<8x8xf32>, vector<8x8xf32> -> vector<8x8xf32>
    %c0_31 = arith.constant 0 : index
    %c24 = arith.constant 24 : index
    %75 = vector.load %arg15[%c0_31, %c24] : memref<8x32xf32, #tpu.memory_space<vmem>>, vector<8x8xf32>
    tpu.vector_store %arg15[%c0_31, %c24], %74 {strides = array<i32>} : memref<8x32xf32, #tpu.memory_space<vmem>>, vector<8x8xf32>,
    %c0_32 = arith.constant 0 : index
    %c0_33 = arith.constant 0 : index
    %76 = vector.load %arg15[%c0_32, %c0_33] : memref<8x32xf32, #tpu.memory_space<vmem>>, vector<8x32xf32>
    %c0_34 = arith.constant 0 : index
    %c0_35 = arith.constant 0 : index
    %77 = vector.load %arg10[%c0_34, %c0_35] : memref<32x32xf32, #tpu.memory_space<vmem>>, vector<32x32xf32>
    %cst_36 = arith.constant dense<0.000000e+00> : vector<8x32xf32>
    %78 = tpu.matmul %76, %77, %cst_36 {dimension_numbers = #tpu.dot_dimension_numbers<[1], [0], [0], [1], [0, 0, 1, 1], [], []>} : vector<8x32xf32>, vector<32x32xf32>, vector<8x32xf32> -> vector<8x32xf32>
    %c0_37 = arith.constant 0 : index
    %c0_38 = arith.constant 0 : index
    %79 = vector.load %arg11[%c0_37, %c0_38] : memref<1x32xf32, #tpu.memory_space<vmem>>, vector<1x32xf32>
    %80 = vector.broadcast %79 : vector<1x32xf32> to vector<8x32xf32>
    %81 = arith.addf %78, %80 : vector<8x32xf32>
    %c0_39 = arith.constant 0 : index
    %c0_40 = arith.constant 0 : index
    %c0_41 = arith.constant 0 : index
    %82 = vector.load %arg12[%c0_39, %c0_40, %c0_41] : memref<1x8x32xf32, #tpu.memory_space<vmem>>, vector<1x8x32xf32>
    %83 = vector.shape_cast %82 : vector<1x8x32xf32> to vector<8x32xf32>
    %84 = vector.shape_cast %81 : vector<8x32xf32> to vector<1x8x32xf32>
    tpu.vector_store %arg12[%c0_39, %c0_40, %c0_41], %84 {strides = array<i32>} : memref<1x8x32xf32, #tpu.memory_space<vmem>>, vector<1x8x32xf32>,
    return
  }
  func.func @transform_0(%arg0: i32, %arg1: i32) -> (i32, i32, i32) {
    %c0_i32 = arith.constant 0 : i32
    %c0_i32_0 = arith.constant 0 : i32
    return %arg0, %arg1, %c0_i32 : i32, i32, i32
  }
  func.func @transform_1(%arg0: i32, %arg1: i32) -> (i32, i32, i32) {
    %c0_i32 = arith.constant 0 : i32
    %c0_i32_0 = arith.constant 0 : i32
    %c0_i32_1 = arith.constant 0 : i32
    return %arg0, %c0_i32, %c0_i32_0 : i32, i32, i32
  }
  func.func @transform_2(%arg0: i32, %arg1: i32) -> (i32, i32) {
    %c0_i32 = arith.constant 0 : i32
    %c0_i32_0 = arith.constant 0 : i32
    %c0_i32_1 = arith.constant 0 : i32
    return %c0_i32, %c0_i32_0 : i32, i32
  }
  func.func @transform_3(%arg0: i32, %arg1: i32) -> (i32, i32) {
    %c0_i32 = arith.constant 0 : i32
    %c0_i32_0 = arith.constant 0 : i32
    %c0_i32_1 = arith.constant 0 : i32
    return %c0_i32, %c0_i32_0 : i32, i32
  }
  func.func @transform_4(%arg0: i32, %arg1: i32) -> (i32, i32) {
    %c0_i32 = arith.constant 0 : i32
    %c0_i32_0 = arith.constant 0 : i32
    %c0_i32_1 = arith.constant 0 : i32
    return %c0_i32, %c0_i32_0 : i32, i32
  }
  func.func @transform_5(%arg0: i32, %arg1: i32) -> (i32, i32) {
    %c0_i32 = arith.constant 0 : i32
    %c0_i32_0 = arith.constant 0 : i32
    %c0_i32_1 = arith.constant 0 : i32
    return %c0_i32, %c0_i32_0 : i32, i32
  }
  func.func @transform_6(%arg0: i32, %arg1: i32) -> (i32, i32) {
    %c0_i32 = arith.constant 0 : i32
    %c0_i32_0 = arith.constant 0 : i32
    %c0_i32_1 = arith.constant 0 : i32
    return %c0_i32, %c0_i32_0 : i32, i32
  }
  func.func @transform_7(%arg0: i32, %arg1: i32) -> (i32, i32) {
    %c0_i32 = arith.constant 0 : i32
    %c0_i32_0 = arith.constant 0 : i32
    %c0_i32_1 = arith.constant 0 : i32
    return %c0_i32, %c0_i32_0 : i32, i32
  }
  func.func @transform_8(%arg0: i32, %arg1: i32) -> (i32, i32) {
    %c0_i32 = arith.constant 0 : i32
    %c0_i32_0 = arith.constant 0 : i32
    %c0_i32_1 = arith.constant 0 : i32
    return %c0_i32, %c0_i32_0 : i32, i32
  }
  func.func @transform_9(%arg0: i32, %arg1: i32) -> (i32, i32) {
    %c0_i32 = arith.constant 0 : i32
    %c0_i32_0 = arith.constant 0 : i32
    %c0_i32_1 = arith.constant 0 : i32
    return %c0_i32, %c0_i32_0 : i32, i32
  }
  func.func @transform_10(%arg0: i32, %arg1: i32) -> (i32, i32, i32) {
    %c0_i32 = arith.constant 0 : i32
    %c0_i32_0 = arith.constant 0 : i32
    return %arg0, %arg1, %c0_i32 : i32, i32, i32
  }
}

module attributes {stable_mosaic.version = 11 : i64} {
  func.func @fused_cross_attention_kernel(%arg0: i32, %arg1: i32, %arg2: memref<1x8x32xf32, #tpu.memory_space<vmem>>, %arg3: memref<1x8x16xf32, #tpu.memory_space<vmem>>, %arg4: memref<32x32xf32, #tpu.memory_space<vmem>>, %arg5: memref<1x32xf32, #tpu.memory_space<vmem>>, %arg6: memref<16x32xf32, #tpu.memory_space<vmem>>, %arg7: memref<1x32xf32, #tpu.memory_space<vmem>>, %arg8: memref<16x32xf32, #tpu.memory_space<vmem>>, %arg9: memref<1x32xf32, #tpu.memory_space<vmem>>, %arg10: memref<32x32xf32, #tpu.memory_space<vmem>>, %arg11: memref<1x32xf32, #tpu.memory_space<vmem>>, %arg12: memref<1x8x32xf32, #tpu.memory_space<vmem>>, %arg13: memref<8x32xf32, #tpu.memory_space<vmem>>, %arg14: memref<8x32xf32, #tpu.memory_space<vmem>>, %arg15: memref<8x32xf32, #tpu.memory_space<vmem>>) attributes {dimension_semantics = [#tpu.dimension_semantics<parallel>, #tpu.dimension_semantics<arbitrary>], iteration_bounds = array<i64: 2, 1>, scalar_prefetch = 0 : i64, scratch_operands = 3 : i64, tpu.core_type = #tpu.core_type<tc>, window_params = [{transform_indices = @transform_0, window_bounds = array<i64: 1, 8, 32>}, {transform_indices = @transform_1, window_bounds = array<i64: 1, 8, 16>}, {pipeline_mode = #tpu.pipeline_mode<synchronous>, transform_indices = @transform_2, window_bounds = array<i64: 32, 32>}, {pipeline_mode = #tpu.pipeline_mode<synchronous>, transform_indices = @transform_3, window_bounds = array<i64: 1, 32>}, {pipeline_mode = #tpu.pipeline_mode<synchronous>, transform_indices = @transform_4, window_bounds = array<i64: 16, 32>}, {pipeline_mode = #tpu.pipeline_mode<synchronous>, transform_indices = @transform_5, window_bounds = array<i64: 1, 32>}, {pipeline_mode = #tpu.pipeline_mode<synchronous>, transform_indices = @transform_6, window_bounds = array<i64: 16, 32>}, {pipeline_mode = #tpu.pipeline_mode<synchronous>, transform_indices = @transform_7, window_bounds = array<i64: 1, 32>}, {pipeline_mode = #tpu.pipeline_mode<synchronous>, transform_indices = @transform_8, window_bounds = array<i64: 32, 32>}, {pipeline_mode = #tpu.pipeline_mode<synchronous>, transform_indices = @transform_9, window_bounds = array<i64: 1, 32>}, {transform_indices = @transform_10, window_bounds = array<i64: 1, 8, 32>}]} {
    %c0_i32 = arith.constant 0 : i32
    %0 = arith.cmpi eq, %arg1, %c0_i32 : i32
    %1 = arith.extui %0 : i1 to i32
    %c0_i32_0 = arith.constant 0 : i32
    %2 = arith.cmpi ne, %1, %c0_i32_0 : i32
    scf.if %2 {
      %c0_42 = arith.constant 0 : index
      %c0_43 = arith.constant 0 : index
      %c0_44 = arith.constant 0 : index
      %85 = vector.load %arg3[%c0_42, %c0_43, %c0_44] : memref<1x8x16xf32, #tpu.memory_space<vmem>>, vector<1x8x16xf32>
      %86 = vector.shape_cast %85 : vector<1x8x16xf32> to vector<8x16xf32>
      %c0_45 = arith.constant 0 : index
      %c0_46 = arith.constant 0 : index
      %87 = vector.load %arg6[%c0_45, %c0_46] : memref<16x32xf32, #tpu.memory_space<vmem>>, vector<16x32xf32>
      %cst_47 = arith.constant dense<0.000000e+00> : vector<8x32xf32>
      %88 = tpu.matmul %86, %87, %cst_47 {dimension_numbers = #tpu.dot_dimension_numbers<[1], [0], [0], [1], [0, 0, 1, 1], [], []>} : vector<8x16xf32>, vector<16x32xf32>, vector<8x32xf32> -> vector<8x32xf32>
      %c0_48 = arith.constant 0 : index
      %c0_49 = arith.constant 0 : index
      %89 = vector.load %arg7[%c0_48, %c0_49] : memref<1x32xf32, #tpu.memory_space<vmem>>, vector<1x32xf32>
      %90 = vector.broadcast %89 : vector<1x32xf32> to vector<8x32xf32>
      %91 = arith.addf %88, %90 : vector<8x32xf32>
      %c0_50 = arith.constant 0 : index
      %c0_51 = arith.constant 0 : index
      %92 = vector.load %arg8[%c0_50, %c0_51] : memref<16x32xf32, #tpu.memory_space<vmem>>, vector<16x32xf32>
      %cst_52 = arith.constant dense<0.000000e+00> : vector<8x32xf32>
      %93 = tpu.matmul %86, %92, %cst_52 {dimension_numbers = #tpu.dot_dimension_numbers<[1], [0], [0], [1], [0, 0, 1, 1], [], []>} : vector<8x16xf32>, vector<16x32xf32>, vector<8x32xf32> -> vector<8x32xf32>
      %c0_53 = arith.constant 0 : index
      %c0_54 = arith.constant 0 : index
      %94 = vector.load %arg9[%c0_53, %c0_54] : memref<1x32xf32, #tpu.memory_space<vmem>>, vector<1x32xf32>
      %95 = vector.broadcast %94 : vector<1x32xf32> to vector<8x32xf32>
      %96 = arith.addf %93, %95 : vector<8x32xf32>
      %c0_55 = arith.constant 0 : index
      %c0_56 = arith.constant 0 : index
      %97 = vector.load %arg13[%c0_55, %c0_56] : memref<8x32xf32, #tpu.memory_space<vmem>>, vector<8x32xf32>
      tpu.vector_store %arg13[%c0_55, %c0_56], %91 {strides = array<i32>} : memref<8x32xf32, #tpu.memory_space<vmem>>, vector<8x32xf32>,
      %c0_57 = arith.constant 0 : index
      %c0_58 = arith.constant 0 : index
      %98 = vector.load %arg14[%c0_57, %c0_58] : memref<8x32xf32, #tpu.memory_space<vmem>>, vector<8x32xf32>
      tpu.vector_store %arg14[%c0_57, %c0_58], %96 {strides = array<i32>} : memref<8x32xf32, #tpu.memory_space<vmem>>, vector<8x32xf32>,
    } else {
    }
    %c0 = arith.constant 0 : index
    %c0_1 = arith.constant 0 : index
    %c0_2 = arith.constant 0 : index
    %3 = vector.load %arg2[%c0, %c0_1, %c0_2] : memref<1x8x32xf32, #tpu.memory_space<vmem>>, vector<1x8x32xf32>
    %4 = vector.shape_cast %3 : vector<1x8x32xf32> to vector<8x32xf32>
    %c0_3 = arith.constant 0 : index
    %c0_4 = arith.constant 0 : index
    %5 = vector.load %arg4[%c0_3, %c0_4] : memref<32x32xf32, #tpu.memory_space<vmem>>, vector<32x32xf32>
    %cst = arith.constant dense<0.000000e+00> : vector<8x32xf32>
    %6 = tpu.matmul %4, %5, %cst {dimension_numbers = #tpu.dot_dimension_numbers<[1], [0], [0], [1], [0, 0, 1, 1], [], []>} : vector<8x32xf32>, vector<32x32xf32>, vector<8x32xf32> -> vector<8x32xf32>
    %c0_5 = arith.constant 0 : index
    %c0_6 = arith.constant 0 : index
    %7 = vector.load %arg5[%c0_5, %c0_6] : memref<1x32xf32, #tpu.memory_space<vmem>>, vector<1x32xf32>
    %8 = vector.broadcast %7 : vector<1x32xf32> to vector<8x32xf32>
    %9 = arith.addf %6, %8 : vector<8x32xf32>
    %c0_7 = arith.constant 0 : index
    %c0_8 = arith.constant 0 : index
    %10 = vector.load %arg13[%c0_7, %c0_8] : memref<8x32xf32, #tpu.memory_space<vmem>>, vector<8x32xf32>
    %c0_9 = arith.constant 0 : index
    %c0_10 = arith.constant 0 : index
    %11 = vector.load %arg14[%c0_9, %c0_10] : memref<8x32xf32, #tpu.memory_space<vmem>>, vector<8x32xf32>
    %12 = vector.extract_strided_slice %9 {offsets = [0, 0], sizes = [8, 8], strides = [1, 1]} : vector<8x32xf32> to vector<8x8xf32>
    %13 = vector.extract_strided_slice %10 {offsets = [0, 0], sizes = [8, 8], strides = [1, 1]} : vector<8x32xf32> to vector<8x8xf32>
    %14 = vector.extract_strided_slice %11 {offsets = [0, 0], sizes = [8, 8], strides = [1, 1]} : vector<8x32xf32> to vector<8x8xf32>
    %cst_11 = arith.constant dense<0.000000e+00> : vector<8x8xf32>
    %15 = tpu.matmul %12, %13, %cst_11 {dimension_numbers = #tpu.dot_dimension_numbers<[1], [1], [0], [0], [0, 0, 1, 0], [], []>} : vector<8x8xf32>, vector<8x8xf32>, vector<8x8xf32> -> vector<8x8xf32>
    %cst_12 = arith.constant dense<0xFF800000> : vector<8xf32>
    %16 = vector.multi_reduction <maximumf>, %15, %cst_12 [1] : vector<8x8xf32> to vector<8xf32>
    %17 = vector.shape_cast %16 : vector<8xf32> to vector<8x1xf32>
    %18 = vector.broadcast %17 : vector<8x1xf32> to vector<8x8xf32>
    %19 = arith.subf %15, %18 : vector<8x8xf32>
    %20 = math.exp %19 : vector<8x8xf32>
    %cst_13 = arith.constant dense<0.000000e+00> : vector<8xf32>
    %21 = vector.multi_reduction <add>, %20, %cst_13 [1] : vector<8x8xf32> to vector<8xf32>
    %22 = vector.shape_cast %21 : vector<8xf32> to vector<8x1xf32>
    %23 = tpu.reciprocal %22 {approx = true} : vector<8x1xf32> -> vector<8x1xf32>
    %24 = vector.broadcast %23 : vector<8x1xf32> to vector<8x8xf32>
    %25 = arith.mulf %20, %24 : vector<8x8xf32>
    %cst_14 = arith.constant dense<0.000000e+00> : vector<8x8xf32>
    %26 = tpu.matmul %25, %14, %cst_14 {dimension_numbers = #tpu.dot_dimension_numbers<[1], [0], [0], [1], [0, 0, 1, 1], [], []>} : vector<8x8xf32>, vector<8x8xf32>, vector<8x8xf32> -> vector<8x8xf32>
    %c0_15 = arith.constant 0 : index
    %c0_16 = arith.constant 0 : index
    %27 = vector.load %arg15[%c0_15, %c0_16] : memref<8x32xf32, #tpu.memory_space<vmem>>, vector<8x8xf32>
    tpu.vector_store %arg15[%c0_15, %c0_16], %26 {strides = array<i32>} : memref<8x32xf32, #tpu.memory_space<vmem>>, vector<8x8xf32>,
    %28 = vector.extract_strided_slice %9 {offsets = [0, 8], sizes = [8, 8], strides = [1, 1]} : vector<8x32xf32> to vector<8x8xf32>
    %29 = vector.extract_strided_slice %10 {offsets = [0, 8], sizes = [8, 8], strides = [1, 1]} : vector<8x32xf32> to vector<8x8xf32>
    %30 = vector.extract_strided_slice %11 {offsets = [0, 8], sizes = [8, 8], strides = [1, 1]} : vector<8x32xf32> to vector<8x8xf32>
    %cst_17 = arith.constant dense<0.000000e+00> : vector<8x8xf32>
    %31 = tpu.matmul %28, %29, %cst_17 {dimension_numbers = #tpu.dot_dimension_numbers<[1], [1], [0], [0], [0, 0, 1, 0], [], []>} : vector<8x8xf32>, vector<8x8xf32>, vector<8x8xf32> -> vector<8x8xf32>
    %cst_18 = arith.constant dense<0xFF800000> : vector<8xf32>
    %32 = vector.multi_reduction <maximumf>, %31, %cst_18 [1] : vector<8x8xf32> to vector<8xf32>
    %33 = vector.shape_cast %32 : vector<8xf32> to vector<8x1xf32>
    %34 = vector.broadcast %33 : vector<8x1xf32> to vector<8x8xf32>
    %35 = arith.subf %31, %34 : vector<8x8xf32>
    %36 = math.exp %35 : vector<8x8xf32>
    %cst_19 = arith.constant dense<0.000000e+00> : vector<8xf32>
    %37 = vector.multi_reduction <add>, %36, %cst_19 [1] : vector<8x8xf32> to vector<8xf32>
    %38 = vector.shape_cast %37 : vector<8xf32> to vector<8x1xf32>
    %39 = tpu.reciprocal %38 {approx = true} : vector<8x1xf32> -> vector<8x1xf32>
    %40 = vector.broadcast %39 : vector<8x1xf32> to vector<8x8xf32>
    %41 = arith.mulf %36, %40 : vector<8x8xf32>
    %cst_20 = arith.constant dense<0.000000e+00> : vector<8x8xf32>
    %42 = tpu.matmul %41, %30, %cst_20 {dimension_numbers = #tpu.dot_dimension_numbers<[1], [0], [0], [1], [0, 0, 1, 1], [], []>} : vector<8x8xf32>, vector<8x8xf32>, vector<8x8xf32> -> vector<8x8xf32>
    %c0_21 = arith.constant 0 : index
    %c8 = arith.constant 8 : index
    %43 = vector.load %arg15[%c0_21, %c8] : memref<8x32xf32, #tpu.memory_space<vmem>>, vector<8x8xf32>
    tpu.vector_store %arg15[%c0_21, %c8], %42 {strides = array<i32>} : memref<8x32xf32, #tpu.memory_space<vmem>>, vector<8x8xf32>,
    %44 = vector.extract_strided_slice %9 {offsets = [0, 16], sizes = [8, 8], strides = [1, 1]} : vector<8x32xf32> to vector<8x8xf32>
    %45 = vector.extract_strided_slice %10 {offsets = [0, 16], sizes = [8, 8], strides = [1, 1]} : vector<8x32xf32> to vector<8x8xf32>
    %46 = vector.extract_strided_slice %11 {offsets = [0, 16], sizes = [8, 8], strides = [1, 1]} : vector<8x32xf32> to vector<8x8xf32>
    %cst_22 = arith.constant dense<0.000000e+00> : vector<8x8xf32>
    %47 = tpu.matmul %44, %45, %cst_22 {dimension_numbers = #tpu.dot_dimension_numbers<[1], [1], [0], [0], [0, 0, 1, 0], [], []>} : vector<8x8xf32>, vector<8x8xf32>, vector<8x8xf32> -> vector<8x8xf32>
    %cst_23 = arith.constant dense<0xFF800000> : vector<8xf32>
    %48 = vector.multi_reduction <maximumf>, %47, %cst_23 [1] : vector<8x8xf32> to vector<8xf32>
    %49 = vector.shape_cast %48 : vector<8xf32> to vector<8x1xf32>
    %50 = vector.broadcast %49 : vector<8x1xf32> to vector<8x8xf32>
    %51 = arith.subf %47, %50 : vector<8x8xf32>
    %52 = math.exp %51 : vector<8x8xf32>
    %cst_24 = arith.constant dense<0.000000e+00> : vector<8xf32>
    %53 = vector.multi_reduction <add>, %52, %cst_24 [1] : vector<8x8xf32> to vector<8xf32>
    %54 = vector.shape_cast %53 : vector<8xf32> to vector<8x1xf32>
    %55 = tpu.reciprocal %54 {approx = true} : vector<8x1xf32> -> vector<8x1xf32>
    %56 = vector.broadcast %55 : vector<8x1xf32> to vector<8x8xf32>
    %57 = arith.mulf %52, %56 : vector<8x8xf32>
    %cst_25 = arith.constant dense<0.000000e+00> : vector<8x8xf32>
    %58 = tpu.matmul %57, %46, %cst_25 {dimension_numbers = #tpu.dot_dimension_numbers<[1], [0], [0], [1], [0, 0, 1, 1], [], []>} : vector<8x8xf32>, vector<8x8xf32>, vector<8x8xf32> -> vector<8x8xf32>
    %c0_26 = arith.constant 0 : index
    %c16 = arith.constant 16 : index
    %59 = vector.load %arg15[%c0_26, %c16] : memref<8x32xf32, #tpu.memory_space<vmem>>, vector<8x8xf32>
    tpu.vector_store %arg15[%c0_26, %c16], %58 {strides = array<i32>} : memref<8x32xf32, #tpu.memory_space<vmem>>, vector<8x8xf32>,
    %60 = vector.extract_strided_slice %9 {offsets = [0, 24], sizes = [8, 8], strides = [1, 1]} : vector<8x32xf32> to vector<8x8xf32>
    %61 = vector.extract_strided_slice %10 {offsets = [0, 24], sizes = [8, 8], strides = [1, 1]} : vector<8x32xf32> to vector<8x8xf32>
    %62 = vector.extract_strided_slice %11 {offsets = [0, 24], sizes = [8, 8], strides = [1, 1]} : vector<8x32xf32> to vector<8x8xf32>
    %cst_27 = arith.constant dense<0.000000e+00> : vector<8x8xf32>
    %63 = tpu.matmul %60, %61, %cst_27 {dimension_numbers = #tpu.dot_dimension_numbers<[1], [1], [0], [0], [0, 0, 1, 0], [], []>} : vector<8x8xf32>, vector<8x8xf32>, vector<8x8xf32> -> vector<8x8xf32>
    %cst_28 = arith.constant dense<0xFF800000> : vector<8xf32>
    %64 = vector.multi_reduction <maximumf>, %63, %cst_28 [1] : vector<8x8xf32> to vector<8xf32>
    %65 = vector.shape_cast %64 : vector<8xf32> to vector<8x1xf32>
    %66 = vector.broadcast %65 : vector<8x1xf32> to vector<8x8xf32>
    %67 = arith.subf %63, %66 : vector<8x8xf32>
    %68 = math.exp %67 : vector<8x8xf32>
    %cst_29 = arith.constant dense<0.000000e+00> : vector<8xf32>
    %69 = vector.multi_reduction <add>, %68, %cst_29 [1] : vector<8x8xf32> to vector<8xf32>
    %70 = vector.shape_cast %69 : vector<8xf32> to vector<8x1xf32>
    %71 = tpu.reciprocal %70 {approx = true} : vector<8x1xf32> -> vector<8x1xf32>
    %72 = vector.broadcast %71 : vector<8x1xf32> to vector<8x8xf32>
    %73 = arith.mulf %68, %72 : vector<8x8xf32>
    %cst_30 = arith.constant dense<0.000000e+00> : vector<8x8xf32>
    %74 = tpu.matmul %73, %62, %cst_30 {dimension_numbers = #tpu.dot_dimension_numbers<[1], [0], [0], [1], [0, 0, 1, 1], [], []>} : vector<8x8xf32>, vector<8x8xf32>, vector<8x8xf32> -> vector<8x8xf32>
    %c0_31 = arith.constant 0 : index
    %c24 = arith.constant 24 : index
    %75 = vector.load %arg15[%c0_31, %c24] : memref<8x32xf32, #tpu.memory_space<vmem>>, vector<8x8xf32>
    tpu.vector_store %arg15[%c0_31, %c24], %74 {strides = array<i32>} : memref<8x32xf32, #tpu.memory_space<vmem>>, vector<8x8xf32>,
    %c0_32 = arith.constant 0 : index
    %c0_33 = arith.constant 0 : index
    %76 = vector.load %arg15[%c0_32, %c0_33] : memref<8x32xf32, #tpu.memory_space<vmem>>, vector<8x32xf32>
    %c0_34 = arith.constant 0 : index
    %c0_35 = arith.constant 0 : index
    %77 = vector.load %arg10[%c0_34, %c0_35] : memref<32x32xf32, #tpu.memory_space<vmem>>, vector<32x32xf32>
    %cst_36 = arith.constant dense<0.000000e+00> : vector<8x32xf32>
    %78 = tpu.matmul %76, %77, %cst_36 {dimension_numbers = #tpu.dot_dimension_numbers<[1], [0], [0], [1], [0, 0, 1, 1], [], []>} : vector<8x32xf32>, vector<32x32xf32>, vector<8x32xf32> -> vector<8x32xf32>
    %c0_37 = arith.constant 0 : index
    %c0_38 = arith.constant 0 : index
    %79 = vector.load %arg11[%c0_37, %c0_38] : memref<1x32xf32, #tpu.memory_space<vmem>>, vector<1x32xf32>
    %80 = vector.broadcast %79 : vector<1x32xf32> to vector<8x32xf32>
    %81 = arith.addf %78, %80 : vector<8x32xf32>
    %c0_39 = arith.constant 0 : index
    %c0_40 = arith.constant 0 : index
    %c0_41 = arith.constant 0 : index
    %82 = vector.load %arg12[%c0_39, %c0_40, %c0_41] : memref<1x8x32xf32, #tpu.memory_space<vmem>>, vector<1x8x32xf32>
    %83 = vector.shape_cast %82 : vector<1x8x32xf32> to vector<8x32xf32>
    %84 = vector.shape_cast %81 : vector<8x32xf32> to vector<1x8x32xf32>
    tpu.vector_store %arg12[%c0_39, %c0_40, %c0_41], %84 {strides = array<i32>} : memref<1x8x32xf32, #tpu.memory_space<vmem>>, vector<1x8x32xf32>,
    return
  }
  func.func @transform_0(%arg0: i32, %arg1: i32) -> (i32, i32, i32) {
    %c0_i32 = arith.constant 0 : i32
    %c0_i32_0 = arith.constant 0 : i32
    return %arg0, %arg1, %c0_i32 : i32, i32, i32
  }
  func.func @transform_1(%arg0: i32, %arg1: i32) -> (i32, i32, i32) {
    %c0_i32 = arith.constant 0 : i32
    %c0_i32_0 = arith.constant 0 : i32
    %c0_i32_1 = arith.constant 0 : i32
    return %arg0, %c0_i32, %c0_i32_0 : i32, i32, i32
  }
  func.func @transform_2(%arg0: i32, %arg1: i32) -> (i32, i32) {
    %c0_i32 = arith.constant 0 : i32
    %c0_i32_0 = arith.constant 0 : i32
    %c0_i32_1 = arith.constant 0 : i32
    return %c0_i32, %c0_i32_0 : i32, i32
  }
  func.func @transform_3(%arg0: i32, %arg1: i32) -> (i32, i32) {
    %c0_i32 = arith.constant 0 : i32
    %c0_i32_0 = arith.constant 0 : i32
    %c0_i32_1 = arith.constant 0 : i32
    return %c0_i32, %c0_i32_0 : i32, i32
  }
  func.func @transform_4(%arg0: i32, %arg1: i32) -> (i32, i32) {
    %c0_i32 = arith.constant 0 : i32
    %c0_i32_0 = arith.constant 0 : i32
    %c0_i32_1 = arith.constant 0 : i32
    return %c0_i32, %c0_i32_0 : i32, i32
  }
  func.func @transform_5(%arg0: i32, %arg1: i32) -> (i32, i32) {
    %c0_i32 = arith.constant 0 : i32
    %c0_i32_0 = arith.constant 0 : i32
    %c0_i32_1 = arith.constant 0 : i32
    return %c0_i32, %c0_i32_0 : i32, i32
  }
  func.func @transform_6(%arg0: i32, %arg1: i32) -> (i32, i32) {
    %c0_i32 = arith.constant 0 : i32
    %c0_i32_0 = arith.constant 0 : i32
    %c0_i32_1 = arith.constant 0 : i32
    return %c0_i32, %c0_i32_0 : i32, i32
  }
  func.func @transform_7(%arg0: i32, %arg1: i32) -> (i32, i32) {
    %c0_i32 = arith.constant 0 : i32
    %c0_i32_0 = arith.constant 0 : i32
    %c0_i32_1 = arith.constant 0 : i32
    return %c0_i32, %c0_i32_0 : i32, i32
  }
  func.func @transform_8(%arg0: i32, %arg1: i32) -> (i32, i32) {
    %c0_i32 = arith.constant 0 : i32
    %c0_i32_0 = arith.constant 0 : i32
    %c0_i32_1 = arith.constant 0 : i32
    return %c0_i32, %c0_i32_0 : i32, i32
  }
  func.func @transform_9(%arg0: i32, %arg1: i32) -> (i32, i32) {
    %c0_i32 = arith.constant 0 : i32
    %c0_i32_0 = arith.constant 0 : i32
    %c0_i32_1 = arith.constant 0 : i32
    return %c0_i32, %c0_i32_0 : i32, i32
  }
  func.func @transform_10(%arg0: i32, %arg1: i32) -> (i32, i32, i32) {
    %c0_i32 = arith.constant 0 : i32
    %c0_i32_0 = arith.constant 0 : i32
    return %arg0, %arg1, %c0_i32 : i32, i32, i32
  }
}

</mosaic_0001>

<llo_original>
// kernel: tpu_custom_call.1
$region0: #{tpu_custom_call.1}
  #allocation0 [shape = 'u32[]', space=smem, size = 0x4, offset = 0x4, fixed_abs, tag = 'smem constant byte address 0x4 - core index']
  #allocation1 [shape = 'u32[144,128]{1,0:T(1,128)}', space=vmem, size = 0x12000, scoped, tag = 'internal scratch']
  #allocation2 [shape = 'f32[8,32]{1,0:T(8,128)}', space=vmem, size = 0x1000, scoped, tag = 'scratch operand']
  #allocation3 [shape = 'f32[8,32]{1,0:T(8,128)}', space=vmem, size = 0x1000, scoped, tag = 'scratch operand']
  #allocation4 [shape = 'f32[8,32]{1,0:T(8,128)}', space=vmem, size = 0x1000, scoped, tag = 'scratch operand']
  %s0 = inlined_call_operand.hbm [shape: f32[2,8,32], index: 0, kind: input, shape index: {}]
  %s1 = inlined_call_operand.hbm [shape: f32[2,8,16], index: 1, kind: input, shape index: {}]
  %s2 = inlined_call_operand.hbm [shape: f32[32,32], index: 2, kind: input, shape index: {}]
  %s3 = inlined_call_operand.vmem [shape: f32[1,32], index: 3, kind: input, shape index: {}]
  %s4 = inlined_call_operand.hbm [shape: f32[16,32], index: 4, kind: input, shape index: {}]
  %s5 = inlined_call_operand.vmem [shape: f32[1,32], index: 5, kind: input, shape index: {}]
  %s6 = inlined_call_operand.vmem [shape: f32[16,32], index: 6, kind: input, shape index: {}]
  %s7 = inlined_call_operand.vmem [shape: f32[1,32], index: 7, kind: input, shape index: {}]
  %s8 = inlined_call_operand.hbm [shape: f32[32,32], index: 8, kind: input, shape index: {}]
  %s9 = inlined_call_operand.vmem [shape: f32[1,32], index: 9, kind: input, shape index: {}]
  %s10 = inlined_call_operand.hbm [shape: f32[2,8,32], index: 10, kind: output, shape index: {}]
  %s11 = sld [smem:[#allocation0]]
  $region97: #{tpu_custom_call.1} parent=0
    _
  %s13 = ssub.s32 1, %s11
  %s14 = scalar_select 0, %s13, %s11
  $region1: #{tpu_custom_call.1} parent=0
    #allocation5 [shape = 'u8[8192]{0}', space=vmem, size = 0x2000, scoped, tag = 'input window, operand 0']
    #allocation6 [shape = 's32[2]{0}', space=sflag, size = 0x8, scoped, tag = 'scoped memory for tpu_custom_call.1']
    #allocation7 [shape = 's32[2]{0}', space=sflag, size = 0x8, scoped, tag = 'scoped memory for tpu_custom_call.1']
    #allocation8 [shape = 'u8[8192]{0}', space=vmem, size = 0x2000, scoped, tag = 'input window, operand 1']
    #allocation9 [shape = 's32[2]{0}', space=sflag, size = 0x8, scoped, tag = 'scoped memory for tpu_custom_call.1']
    #allocation10 [shape = 'u8[16384]{0}', space=vmem, size = 0x4000, scoped, tag = 'input window, operand 2, single buffered']
    #allocation11 [shape = 'u8[8192]{0}', space=vmem, size = 0x2000, scoped, tag = 'input window, operand 4, single buffered']
    #allocation12 [shape = 's32[1]{0}', space=sflag, size = 0x4, scoped, tag = 'scoped memory for tpu_custom_call.1']
    #allocation13 [shape = 'u8[16384]{0}', space=vmem, size = 0x4000, scoped, tag = 'input window, operand 8, single buffered']
    #allocation14 [shape = 'u8[8192]{0}', space=vmem, size = 0x2000, scoped, tag = 'output window, operand 0']
    %15 = vsyncpa [#allocation6], 0
    %s16 = scalar_lea.sflag [#allocation6], 1
    %17 = vsyncpa %s16, 0
    %18 = vsyncpa [#allocation9], 0
    %s19 = scalar_lea.sflag [#allocation9], 1
    %20 = vsyncpa %s19, 0
    %21 = vsyncpa [#allocation12], 0
    %22 = vsyncpa [#allocation7], 0
    %s23 = scalar_lea.sflag [#allocation7], 1
    %24 = vsyncpa %s23, 0
    loop: start=0, step=1, limit=4
    $region2: #{tpu_custom_call.1} parent=1 // loop_pre_header
      _
    $region3: #{tpu_custom_call.1} parent=1 // loop_header
      %s26 = sphi 0, %s30
      %p27 = scmp.ge.s32.totalorder %s26, 4
      %s33 = sphi 0, %s45
      %s34 = sphi 0, %s41
      %s35 = sphi 0, %s33
      %s36 = sphi 0, %s34
      %s37 = sphi 0, %s35
      %s38 = sphi 0, %s36
      %s50 = sphi 0, %s52
      %s53 = sphi 0, %s50
      %s54 = sphi 0, %s53
      %s70 = sphi 0, %s54
      %s76 = sphi 0, %s78
      %s79 = sphi 0, %s76
      %s80 = sphi 0, %s79
      %s96 = sphi 0, %s80
      %s100 = sphi 0, %s100
      %s102 = sphi 0, %s100
      %s103 = sphi 0, %s102
      %s117 = sphi 0, %s103
      %s121 = sphi 0, %s121
      %s123 = sphi 0, %s121
      %s124 = sphi 0, %s123
      %s138 = sphi 0, %s124
      %s142 = sphi 0, %s142
      %s144 = sphi 0, %s142
      %s145 = sphi 0, %s144
      %s159 = sphi 0, %s145
      %s163 = sphi 0, %s163
      %s165 = sphi 0, %s163
      %s166 = sphi 0, %s165
      %s180 = sphi 0, %s166
      %s184 = sphi 0, %s184
      %s186 = sphi 0, %s184
      %s187 = sphi 0, %s186
      %s201 = sphi 0, %s187
      %s205 = sphi 0, %s205
      %s207 = sphi 0, %s205
      %s208 = sphi 0, %s207
      %s222 = sphi 0, %s208
      %s226 = sphi 0, %s226
      %s228 = sphi 0, %s226
      %s229 = sphi 0, %s228
      %s243 = sphi 0, %s229
      %s247 = sphi 0, %s247
      %s249 = sphi 0, %s247
      %s250 = sphi 0, %s249
      %s264 = sphi 0, %s250
      %s272 = sphi 0, %s274
      %s275 = sphi 0, %s272
      %s276 = sphi 0, %s275
      %s292 = sphi 0, %s276
    $region4: #{tpu_custom_call.1} parent=1 // loop_header_branch
      %29 = sbr.rel (%p27) target = $region8
    $region5: #{tpu_custom_call.1} parent=1 // loop_body
      %s31 = ssub.s32 %s26, 1
      %s32 = ssub.s32 %s26, 2
      %s39 = sadd.s32 1, %s34
      %p40 = scmp.ge.s32.totalorder %s39, 1
      %s41 = scalar_select %p40, 0, %s39
      %s42 = sadd.s32 1, %s33
      %s43 = scalar_select %p40, %s42, %s33
      %p44 = scmp.ge.s32.totalorder %s43, 2
      %s45 = scalar_select %p44, 0, %s43
      %s46 = ssub.s32 %s33, %s45
      %s47 = ssub.s32 %s34, %s41
      %s48 = sor.u32 %s46, %s47
      %p49 = scmp.eq.s32.totalorder %s48, 0
      %s51 = sadd.s32 %s50, 1
      %s52 = scalar_select %p49, %s50, %s51
      %p55 = pneg %p49
      %p56 = scmp.eq.s32.totalorder %s26, 1
      %p57 = por %p55, %p56
      %p58 = scmp.ne.s32.totalorder %s50, %s53
      %p59 = scmp.eq.s32.totalorder %s26, 0
      %p60 = por %p58, %p59
      %p61 = scmp.ne.s32.totalorder %s50, %s53
      %p62 = scmp.eq.s32.totalorder %s31, 1
      %p63 = por %p61, %p62
      %p64 = scmp.ne.s32.totalorder %s53, %s54
      %p65 = scmp.eq.s32.totalorder %s31, 0
      %p66 = por %p64, %p65
      %p67 = scmp.ne.s32.totalorder %s53, %s54
      %p68 = scmp.eq.s32.totalorder %s32, 1
      %p69 = por %p67, %p68
      %p71 = scmp.ne.s32.totalorder %s54, %s70
      %p72 = scmp.eq.s32.totalorder %s32, 0
      %p73 = por %p71, %p72
      %s74 = ssub.s32 %s33, %s45
      %p75 = scmp.eq.s32.totalorder %s74, 0
      %s77 = sadd.s32 %s76, 1
      %s78 = scalar_select %p75, %s76, %s77
      %p81 = pneg %p75
      %p82 = scmp.eq.s32.totalorder %s26, 1
      %p83 = por %p81, %p82
      %p84 = scmp.ne.s32.totalorder %s76, %s79
      %p85 = scmp.eq.s32.totalorder %s26, 0
      %p86 = por %p84, %p85
      %p87 = scmp.ne.s32.totalorder %s76, %s79
      %p88 = scmp.eq.s32.totalorder %s31, 1
      %p89 = por %p87, %p88
      %p90 = scmp.ne.s32.totalorder %s79, %s80
      %p91 = scmp.eq.s32.totalorder %s31, 0
      %p92 = por %p90, %p91
      %p93 = scmp.ne.s32.totalorder %s79, %s80
      %p94 = scmp.eq.s32.totalorder %s32, 1
      %p95 = por %p93, %p94
      %p97 = scmp.ne.s32.totalorder %s80, %s96
      %p98 = scmp.eq.s32.totalorder %s32, 0
      %p99 = por %p97, %p98
      %s101 = sadd.s32 %s100, 1
      %p104 = scmp.eq.s32.totalorder %s26, 1
      %p105 = scmp.ne.s32.totalorder %s100, %s102
      %p106 = scmp.eq.s32.totalorder %s26, 0
      %p107 = por %p105, %p106
      %p108 = scmp.ne.s32.totalorder %s100, %s102
      %p109 = scmp.eq.s32.totalorder %s31, 1
      %p110 = por %p108, %p109
      %p111 = scmp.ne.s32.totalorder %s102, %s103
      %p112 = scmp.eq.s32.totalorder %s31, 0
      %p113 = por %p111, %p112
      %p114 = scmp.ne.s32.totalorder %s102, %s103
      %p115 = scmp.eq.s32.totalorder %s32, 1
      %p116 = por %p114, %p115
      %p118 = scmp.ne.s32.totalorder %s103, %s117
      %p119 = scmp.eq.s32.totalorder %s32, 0
      %p120 = por %p118, %p119
      %s122 = sadd.s32 %s121, 1
      %p125 = scmp.eq.s32.totalorder %s26, 1
      %p126 = scmp.ne.s32.totalorder %s121, %s123
      %p127 = scmp.eq.s32.totalorder %s26, 0
      %p128 = por %p126, %p127
      %p129 = scmp.ne.s32.totalorder %s121, %s123
      %p130 = scmp.eq.s32.totalorder %s31, 1
      %p131 = por %p129, %p130
      %p132 = scmp.ne.s32.totalorder %s123, %s124
      %p133 = scmp.eq.s32.totalorder %s31, 0
      %p134 = por %p132, %p133
      %p135 = scmp.ne.s32.totalorder %s123, %s124
      %p136 = scmp.eq.s32.totalorder %s32, 1
      %p137 = por %p135, %p136
      %p139 = scmp.ne.s32.totalorder %s124, %s138
      %p140 = scmp.eq.s32.totalorder %s32, 0
      %p141 = por %p139, %p140
      %s143 = sadd.s32 %s142, 1
      %p146 = scmp.eq.s32.totalorder %s26, 1
      %p147 = scmp.ne.s32.totalorder %s142, %s144
      %p148 = scmp.eq.s32.totalorder %s26, 0
      %p149 = por %p147, %p148
      %p150 = scmp.ne.s32.totalorder %s142, %s144
      %p151 = scmp.eq.s32.totalorder %s31, 1
      %p152 = por %p150, %p151
      %p153 = scmp.ne.s32.totalorder %s144, %s145
      %p154 = scmp.eq.s32.totalorder %s31, 0
      %p155 = por %p153, %p154
      %p156 = scmp.ne.s32.totalorder %s144, %s145
      %p157 = scmp.eq.s32.totalorder %s32, 1
      %p158 = por %p156, %p157
      %p160 = scmp.ne.s32.totalorder %s145, %s159
      %p161 = scmp.eq.s32.totalorder %s32, 0
      %p162 = por %p160, %p161
      %s164 = sadd.s32 %s163, 1
      %p167 = scmp.eq.s32.totalorder %s26, 1
      %p168 = scmp.ne.s32.totalorder %s163, %s165
      %p169 = scmp.eq.s32.totalorder %s26, 0
      %p170 = por %p168, %p169
      %p171 = scmp.ne.s32.totalorder %s163, %s165
      %p172 = scmp.eq.s32.totalorder %s31, 1
      %p173 = por %p171, %p172
      %p174 = scmp.ne.s32.totalorder %s165, %s166
      %p175 = scmp.eq.s32.totalorder %s31, 0
      %p176 = por %p174, %p175
      %p177 = scmp.ne.s32.totalorder %s165, %s166
      %p178 = scmp.eq.s32.totalorder %s32, 1
      %p179 = por %p177, %p178
      %p181 = scmp.ne.s32.totalorder %s166, %s180
      %p182 = scmp.eq.s32.totalorder %s32, 0
      %p183 = por %p181, %p182
      %s185 = sadd.s32 %s184, 1
      %p188 = scmp.eq.s32.totalorder %s26, 1
      %p189 = scmp.ne.s32.totalorder %s184, %s186
      %p190 = scmp.eq.s32.totalorder %s26, 0
      %p191 = por %p189, %p190
      %p192 = scmp.ne.s32.totalorder %s184, %s186
      %p193 = scmp.eq.s32.totalorder %s31, 1
      %p194 = por %p192, %p193
      %p195 = scmp.ne.s32.totalorder %s186, %s187
      %p196 = scmp.eq.s32.totalorder %s31, 0
      %p197 = por %p195, %p196
      %p198 = scmp.ne.s32.totalorder %s186, %s187
      %p199 = scmp.eq.s32.totalorder %s32, 1
      %p200 = por %p198, %p199
      %p202 = scmp.ne.s32.totalorder %s187, %s201
      %p203 = scmp.eq.s32.totalorder %s32, 0
      %p204 = por %p202, %p203
      %s206 = sadd.s32 %s205, 1
      %p209 = scmp.eq.s32.totalorder %s26, 1
      %p210 = scmp.ne.s32.totalorder %s205, %s207
      %p211 = scmp.eq.s32.totalorder %s26, 0
      %p212 = por %p210, %p211
      %p213 = scmp.ne.s32.totalorder %s205, %s207
      %p214 = scmp.eq.s32.totalorder %s31, 1
      %p215 = por %p213, %p214
      %p216 = scmp.ne.s32.totalorder %s207, %s208
      %p217 = scmp.eq.s32.totalorder %s31, 0
      %p218 = por %p216, %p217
      %p219 = scmp.ne.s32.totalorder %s207, %s208
      %p220 = scmp.eq.s32.totalorder %s32, 1
      %p221 = por %p219, %p220
      %p223 = scmp.ne.s32.totalorder %s208, %s222
      %p224 = scmp.eq.s32.totalorder %s32, 0
      %p225 = por %p223, %p224
      %s227 = sadd.s32 %s226, 1
      %p230 = scmp.eq.s32.totalorder %s26, 1
      %p231 = scmp.ne.s32.totalorder %s226, %s228
      %p232 = scmp.eq.s32.totalorder %s26, 0
      %p233 = por %p231, %p232
      %p234 = scmp.ne.s32.totalorder %s226, %s228
      %p235 = scmp.eq.s32.totalorder %s31, 1
      %p236 = por %p234, %p235
      %p237 = scmp.ne.s32.totalorder %s228, %s229
      %p238 = scmp.eq.s32.totalorder %s31, 0
      %p239 = por %p237, %p238
      %p240 = scmp.ne.s32.totalorder %s228, %s229
      %p241 = scmp.eq.s32.totalorder %s32, 1
      %p242 = por %p240, %p241
      %p244 = scmp.ne.s32.totalorder %s229, %s243
      %p245 = scmp.eq.s32.totalorder %s32, 0
      %p246 = por %p244, %p245
      %s248 = sadd.s32 %s247, 1
      %p251 = scmp.eq.s32.totalorder %s26, 1
      %p252 = scmp.ne.s32.totalorder %s247, %s249
      %p253 = scmp.eq.s32.totalorder %s26, 0
      %p254 = por %p252, %p253
      %p255 = scmp.ne.s32.totalorder %s247, %s249
      %p256 = scmp.eq.s32.totalorder %s31, 1
      %p257 = por %p255, %p256
      %p258 = scmp.ne.s32.totalorder %s249, %s250
      %p259 = scmp.eq.s32.totalorder %s31, 0
      %p260 = por %p258, %p259
      %p261 = scmp.ne.s32.totalorder %s249, %s250
      %p262 = scmp.eq.s32.totalorder %s32, 1
      %p263 = por %p261, %p262
      %p265 = scmp.ne.s32.totalorder %s250, %s264
      %p266 = scmp.eq.s32.totalorder %s32, 0
      %p267 = por %p265, %p266
      %s268 = ssub.s32 %s33, %s45
      %s269 = ssub.s32 %s34, %s41
      %s270 = sor.u32 %s268, %s269
      %p271 = scmp.eq.s32.totalorder %s270, 0
      %s273 = sadd.s32 %s272, 1
      %s274 = scalar_select %p271, %s272, %s273
      %p277 = pneg %p271
      %p278 = scmp.eq.s32.totalorder %s26, 1
      %p279 = por %p277, %p278
      %p280 = scmp.ne.s32.totalorder %s272, %s275
      %p281 = scmp.eq.s32.totalorder %s26, 0
      %p282 = por %p280, %p281
      %p283 = scmp.ne.s32.totalorder %s272, %s275
      %p284 = scmp.eq.s32.totalorder %s31, 1
      %p285 = por %p283, %p284
      %p286 = scmp.ne.s32.totalorder %s275, %s276
      %p287 = scmp.eq.s32.totalorder %s31, 0
      %p288 = por %p286, %p287
      %p289 = scmp.ne.s32.totalorder %s275, %s276
      %p290 = scmp.eq.s32.totalorder %s32, 1
      %p291 = por %p289, %p290
      %p293 = scmp.ne.s32.totalorder %s276, %s292
      %p294 = scmp.eq.s32.totalorder %s32, 0
      %p295 = por %p293, %p294
      %p296 = scmp.le.s32.totalorder 1, %s26
      %p297 = scmp.lt.s32.totalorder %s26, 3
      %p298 = pnand %p296, %p297
      %p299 = pneg %p298
      // Predicated region
      $region9: #{tpu_custom_call.1} parent=5 // pred_check
        _
      $region10: #{tpu_custom_call.1} parent=5 // pred_check_branch
        %301 = sbr.rel (%p298) target = $region12
      $region11: #{tpu_custom_call.1} parent=5 // pred_region
        %s302 = ssub.s32 %s26, 1
        // Predicated region
        $region13: #{tpu_custom_call.1} parent=11 // pred_check
          %p303 = pneg %p113
        $region14: #{tpu_custom_call.1} parent=11 // pred_check_branch
          %305 = sbr.rel (%p303) target = $region16
        $region15: #{tpu_custom_call.1} parent=11 // pred_region
          %s307 = ssub.s32 512, 512
          %308 = vsyncadd [#allocation9], %s307
          %s309 = sshll.u32 [#allocation10], 4
          %s310 = int_to_ptr.vmem [resolvable:$true] %s309
          %315 = dma.hbm_to_vmem [thread:$0]  %s2, 512, %s310, [#allocation9], 128, 128, 8
        $region16: #{tpu_custom_call.1} parent=11 // pred_fallthru
          _
        // Predicated region
        $region17: #{tpu_custom_call.1} parent=11 // pred_check
          %p316 = pneg %p134
        $region18: #{tpu_custom_call.1} parent=11 // pred_check_branch
          %318 = sbr.rel (%p316) target = $region20
        $region19: #{tpu_custom_call.1} parent=11 // pred_region
          _
        $region20: #{tpu_custom_call.1} parent=11 // pred_fallthru
          _
        // Predicated region
        $region21: #{tpu_custom_call.1} parent=11 // pred_check
          %p319 = pneg %p155
        $region22: #{tpu_custom_call.1} parent=11 // pred_check_branch
          %321 = sbr.rel (%p319) target = $region24
        $region23: #{tpu_custom_call.1} parent=11 // pred_region
          %s323 = ssub.s32 256, 256
          %324 = vsyncadd [#allocation12], %s323
          %s325 = sshll.u32 [#allocation11], 4
          %s326 = int_to_ptr.vmem [resolvable:$true] %s325
          %331 = dma.hbm_to_vmem [thread:$0]  %s4, 256, %s326, [#allocation12], 128, 128, 8
        $region24: #{tpu_custom_call.1} parent=11 // pred_fallthru
          _
        // Predicated region
        $region25: #{tpu_custom_call.1} parent=11 // pred_check
          %p332 = pneg %p176
        $region26: #{tpu_custom_call.1} parent=11 // pred_check_branch
          %334 = sbr.rel (%p332) target = $region28
        $region27: #{tpu_custom_call.1} parent=11 // pred_region
          _
        $region28: #{tpu_custom_call.1} parent=11 // pred_fallthru
          _
        // Predicated region
        $region29: #{tpu_custom_call.1} parent=11 // pred_check
          %p335 = pneg %p197
        $region30: #{tpu_custom_call.1} parent=11 // pred_check_branch
          %337 = sbr.rel (%p335) target = $region32
        $region31: #{tpu_custom_call.1} parent=11 // pred_region
          _
        $region32: #{tpu_custom_call.1} parent=11 // pred_fallthru
          _
        // Predicated region
        $region33: #{tpu_custom_call.1} parent=11 // pred_check
          %p338 = pneg %p218
        $region34: #{tpu_custom_call.1} parent=11 // pred_check_branch
          %340 = sbr.rel (%p338) target = $region36
        $region35: #{tpu_custom_call.1} parent=11 // pred_region
          _
        $region36: #{tpu_custom_call.1} parent=11 // pred_fallthru
          _
        // Predicated region
        $region37: #{tpu_custom_call.1} parent=11 // pred_check
          %p341 = pneg %p239
        $region38: #{tpu_custom_call.1} parent=11 // pred_check_branch
          %343 = sbr.rel (%p341) target = $region40
        $region39: #{tpu_custom_call.1} parent=11 // pred_region
          %s345 = ssub.s32 512, 512
          %346 = vsyncadd [#allocation12], %s345
          %s347 = sshll.u32 [#allocation13], 4
          %s348 = int_to_ptr.vmem [resolvable:$true] %s347
          %353 = dma.hbm_to_vmem [thread:$0]  %s8, 512, %s348, [#allocation12], 128, 128, 8
        $region40: #{tpu_custom_call.1} parent=11 // pred_fallthru
          _
        // Predicated region
        $region41: #{tpu_custom_call.1} parent=11 // pred_check
          %p354 = pneg %p260
        $region42: #{tpu_custom_call.1} parent=11 // pred_check_branch
          %356 = sbr.rel (%p354) target = $region44
        $region43: #{tpu_custom_call.1} parent=11 // pred_region
          _
        $region44: #{tpu_custom_call.1} parent=11 // pred_fallthru
          _
      $region12: #{tpu_custom_call.1} parent=5 // pred_fallthru
        _
      %p357 = scmp.lt.s32.totalorder %s26, 2
      // Predicated region
      $region45: #{tpu_custom_call.1} parent=5 // pred_check
        %p358 = pneg %p357
      $region46: #{tpu_custom_call.1} parent=5 // pred_check_branch
        %360 = sbr.rel (%p358) target = $region48
      $region47: #{tpu_custom_call.1} parent=5 // pred_region
        // Predicated region
        $region49: #{tpu_custom_call.1} parent=47 // pred_check
          %p361 = pneg %p60
        $region50: #{tpu_custom_call.1} parent=47 // pred_check_branch
          %363 = sbr.rel (%p361) target = $region52
        $region51: #{tpu_custom_call.1} parent=47 // pred_region
          %s364 = sand.u32 %s50, 1
          %s365 = scalar_lea.sflag [#allocation6], %s364
          %s366 = sand.u32 %s50, 1
          %s367 = smul.addr %s366, 8
          %s368 = scalar_lea.vmem [#allocation5], %s367
          %s370 = ssub.s32 128, 128
          %371 = vsyncadd %s365, %s370
          %s372 = sadd.s32 %s34, %s33
          %s373 = smul.addr %s372, 128
          %s374 = scalar_lea.hbm %s0, %s373
          %s376 = sshll.u32 %s368, 4
          %s377 = int_to_ptr.vmem [resolvable:$true] %s376
          %379 = dma.hbm_to_vmem [thread:$0]  %s374, 128, %s377, %s365
        $region52: #{tpu_custom_call.1} parent=47 // pred_fallthru
          _
        // Predicated region
        $region53: #{tpu_custom_call.1} parent=47 // pred_check
          %p380 = pneg %p86
        $region54: #{tpu_custom_call.1} parent=47 // pred_check_branch
          %382 = sbr.rel (%p380) target = $region56
        $region55: #{tpu_custom_call.1} parent=47 // pred_region
          %s383 = sand.u32 %s26, 1
          %s384 = scalar_lea.sflag [#allocation9], %s383
          %s385 = sand.u32 %s76, 1
          %s386 = smul.addr %s385, 8
          %s387 = scalar_lea.vmem [#allocation8], %s386
          %s389 = ssub.s32 128, 128
          %390 = vsyncadd %s384, %s389
          %s391 = smul.addr %s33, 128
          %s392 = scalar_lea.hbm %s1, %s391
          %s394 = sshll.u32 %s387, 4
          %s395 = int_to_ptr.vmem [resolvable:$true] %s394
          %397 = dma.hbm_to_vmem [thread:$0]  %s392, 128, %s395, %s384
        $region56: #{tpu_custom_call.1} parent=47 // pred_fallthru
          _
      $region48: #{tpu_custom_call.1} parent=5 // pred_fallthru
        _
      %p398 = scmp.le.s32.totalorder 1, %s26
      %p399 = scmp.lt.s32.totalorder %s26, 3
      %p400 = pnand %p398, %p399
      %p401 = pneg %p400
      // Predicated region
      $region57: #{tpu_custom_call.1} parent=5 // pred_check
        _
      $region58: #{tpu_custom_call.1} parent=5 // pred_check_branch
        %403 = sbr.rel (%p400) target = $region60
      $region59: #{tpu_custom_call.1} parent=5 // pred_region
        %s404 = ssub.s32 %s26, 1
        %s405 = sand.u32 %s53, 1
        %s406 = scalar_lea.sflag [#allocation6], %s405
        %s407 = sand.u32 %s53, 1
        %s408 = smul.addr %s407, 8
        %s409 = scalar_lea.vmem [#allocation5], %s408
        // Predicated region
        $region61: #{tpu_custom_call.1} parent=59 // pred_check
          %p410 = pneg %p66
        $region62: #{tpu_custom_call.1} parent=59 // pred_check_branch
          %412 = sbr.rel (%p410) target = $region64
        $region63: #{tpu_custom_call.1} parent=59 // pred_region
          %413 = dma.done %s406, 128
        $region64: #{tpu_custom_call.1} parent=59 // pred_fallthru
          _
        %s414 = sand.u32 %s31, 1
        %s415 = scalar_lea.sflag [#allocation9], %s414
        %s416 = sand.u32 %s79, 1
        %s417 = smul.addr %s416, 8
        %s418 = scalar_lea.vmem [#allocation8], %s417
        // Predicated region
        $region65: #{tpu_custom_call.1} parent=59 // pred_check
          %p419 = pneg %p92
        $region66: #{tpu_custom_call.1} parent=59 // pred_check_branch
          %421 = sbr.rel (%p419) target = $region68
        $region67: #{tpu_custom_call.1} parent=59 // pred_region
          %422 = dma.done %s415, 128
        $region68: #{tpu_custom_call.1} parent=59 // pred_fallthru
          _
        // Predicated region
        $region69: #{tpu_custom_call.1} parent=59 // pred_check
          %p423 = pneg %p113
        $region70: #{tpu_custom_call.1} parent=59 // pred_check_branch
          %425 = sbr.rel (%p423) target = $region72
        $region71: #{tpu_custom_call.1} parent=59 // pred_region
          %426 = dma.done [#allocation9], 512
        $region72: #{tpu_custom_call.1} parent=59 // pred_fallthru
          _
        // Predicated region
        $region73: #{tpu_custom_call.1} parent=59 // pred_check
          %p427 = pneg %p155
        $region74: #{tpu_custom_call.1} parent=59 // pred_check_branch
          %429 = sbr.rel (%p427) target = $region76
        $region75: #{tpu_custom_call.1} parent=59 // pred_region
          %430 = dma.done [#allocation12], 256
        $region76: #{tpu_custom_call.1} parent=59 // pred_fallthru
          _
        // Predicated region
        $region77: #{tpu_custom_call.1} parent=59 // pred_check
          %p431 = pneg %p239
        $region78: #{tpu_custom_call.1} parent=59 // pred_check_branch
          %433 = sbr.rel (%p431) target = $region80
        $region79: #{tpu_custom_call.1} parent=59 // pred_region
          %434 = dma.done [#allocation12], 512
        $region80: #{tpu_custom_call.1} parent=59 // pred_fallthru
          _
        %s435 = sand.u32 %s53, 1
        %s436 = scalar_lea.sflag [#allocation6], %s435
        %s437 = sand.u32 %s53, 1
        %s438 = smul.addr %s437, 8
        %s439 = scalar_lea.vmem [#allocation5], %s438
        %p440 = pneg %p66
        %p441 = pneg %p63
        %s442 = sand.u32 %s31, 1
        %s443 = scalar_lea.sflag [#allocation9], %s442
        %s444 = sand.u32 %s79, 1
        %s445 = smul.addr %s444, 8
        %s446 = scalar_lea.vmem [#allocation8], %s445
        %p447 = pneg %p92
        %p448 = pneg %p89
        %p449 = pneg %p113
        %p450 = pneg %p110
        %p451 = pneg %p134
        %p452 = pneg %p131
        %p453 = pneg %p155
        %p454 = pneg %p152
        %p455 = pneg %p176
        %p456 = pneg %p173
        %p457 = pneg %p197
        %p458 = pneg %p194
        %p459 = pneg %p218
        %p460 = pneg %p215
        %p461 = pneg %p239
        %p462 = pneg %p236
        %p463 = pneg %p260
        %p464 = pneg %p257
        %p465 = pneg %p288
        %p466 = pneg %p285
        %s467 = sand.u32 %s275, 1
        %s468 = scalar_lea.sflag [#allocation7], %s467
        %s469 = sand.u32 %s275, 1
        %s470 = smul.addr %s469, 8
        %s471 = scalar_lea.vmem [#allocation14], %s470
        %p472 = scmp.eq.s32.totalorder %s36, 0
        // Predicated region
        $region81: #{tpu_custom_call.1} parent=59 // pred_check
          %p473 = pneg %p472
        $region82: #{tpu_custom_call.1} parent=59 // pred_check_branch
          %475 = sbr.rel (%p473) target = $region84
        $region83: #{tpu_custom_call.1} parent=59 // pred_region
          %v476 = vld [vmem:[%s418] sm:$0xff]
          %v477 = vld [vmem:[#allocation11] sm:$0xff]
          %v478 = vld [vmem:[#allocation11 + $0x8] sm:$0xff]
          %v479 = vld [vmem:[%s5] sm:$0x1]
          %v481 = vlaneseq
          %v482 = vshrl.u32 %v481, 7
          %v483 = vsub.s32 0, %v482
          %v484 = vrot.slane %v479, %v483
          %vm486 = vcmask 130048
          %v488 = vsel %vm486, %v476, 0
          %490 = vmatprep.subr.mxu0 0.0
          %491 = vmatpush1.msra.mxu0 %v477
          %492 = vmatprep.subr.mxu0 0.0
          %493 = vmatpush1.msra.mxu0 %v478
          %494 = vmatprep.subr.mxu0 0.0
          %495 = vmatpush1.msra.mxu0 0.0
          %496 = vmatprep.subr.mxu0 0.0
          %497 = vmatpush1.msra.mxu0 0.0
          %498 = vmatprep.subr.mxu0 0.0
          %499 = vmatpush1.msra.mxu0 0.0
          %500 = vmatprep.subr.mxu0 0.0
          %501 = vmatpush1.msra.mxu0 0.0
          %502 = vmatprep.subr.mxu0 0.0
          %503 = vmatpush1.msra.mxu0 0.0
          %504 = vmatprep.subr.mxu0 0.0
          %505 = vmatpush1.msra.mxu0 0.0
          %506 = vmatprep.subr.mxu0 0.0
          %507 = vmatpush1.msra.mxu0 0.0
          %508 = vmatprep.subr.mxu0 0.0
          %509 = vmatpush1.msra.mxu0 0.0
          %510 = vmatprep.subr.mxu0 0.0
          %511 = vmatpush1.msra.mxu0 0.0
          %512 = vmatprep.subr.mxu0 0.0
          %513 = vmatpush1.msra.mxu0 0.0
          %514 = vmatprep.subr.mxu0 0.0
          %515 = vmatpush1.msra.mxu0 0.0
          %516 = vmatprep.subr.mxu0 0.0
          %517 = vmatpush1.msra.mxu0 0.0
          %518 = vmatprep.subr.mxu0 0.0
          %519 = vmatpush1.msra.mxu0 0.0
          %520 = vmatprep.subr.mxu0 0.0
          %521 = vmatpush1.msra.mxu0 0.0
          %522 = vmatprep.subr.mxu0 0.0
          %523 = vmatpush1.msra.mxu0 0.0
          %524 = vmatprep.subr.mxu0 0.0
          %525 = vmatpush1.msra.mxu0 0.0
          %526 = vmatprep.subr.mxu0 0.0
          %527 = vmatpush1.msra.mxu0 0.0
          %528 = vmatprep.subr.mxu0 0.0
          %529 = vmatpush1.msra.mxu0 0.0
          %530 = vmatprep.subr.mxu0 0.0
          %531 = vmatpush1.msra.mxu0 0.0
          %532 = vmatprep.subr.mxu0 0.0
          %533 = vmatpush1.msra.mxu0 0.0
          %534 = vmatprep.subr.mxu0 0.0
          %535 = vmatpush1.msra.mxu0 0.0
          %536 = vmatprep.subr.mxu0 0.0
          %537 = vmatpush1.msra.mxu0 0.0
          %538 = vmatprep.subr.mxu0 0.0
          %539 = vmatpush1.msra.mxu0 0.0
          %540 = vmatprep.subr.mxu0 0.0
          %541 = vmatpush1.msra.mxu0 0.0
          %542 = vmatprep.subr.mxu0 0.0
          %543 = vmatpush1.msra.mxu0 0.0
          %544 = vmatprep.subr.mxu0 0.0
          %545 = vmatpush1.msra.mxu0 0.0
          %546 = vmatprep.subr.mxu0 0.0
          %547 = vmatpush1.msra.mxu0 0.0
          %548 = vmatprep.subr.mxu0 0.0
          %549 = vmatpush1.msra.mxu0 0.0
          %550 = vmatprep.subr.mxu0 0.0
          %551 = vmatpush1.msra.mxu0 0.0
          %552 = vmatprep.subr.mxu0 0.0
          %553 = vmatpush1.msra.mxu0 0.0
          %554 = vmatprep.mubr.f32.mxu0 0.0
          %555 = vmatmul.mubr.f32.gmra.mrb[0].mxu0 %v488
          %v556 = vpop.f32.mrb[0].mxu0
          %v557 = vadd.f32 %v484, %v556
          %v558 = vpop.f32.mrb[0].mxu0
          %559 = vdwg.mxu0
          %v560 = vld [vmem:[%s6] sm:$0xff]
          %v561 = vld [vmem:[%s6 + $0x8] sm:$0xff]
          %v562 = vld [vmem:[%s7] sm:$0x1]
          %v564 = vlaneseq
          %v565 = vshrl.u32 %v564, 7
          %v566 = vsub.s32 0, %v565
          %v567 = vrot.slane %v562, %v566
          %569 = vmatprep.subr.mxu0 0.0
          %570 = vmatpush1.msra.mxu0 %v560
          %571 = vmatprep.subr.mxu0 0.0
          %572 = vmatpush1.msra.mxu0 %v561
          %573 = vmatprep.subr.mxu0 0.0
          %574 = vmatpush1.msra.mxu0 0.0
          %575 = vmatprep.subr.mxu0 0.0
          %576 = vmatpush1.msra.mxu0 0.0
          %577 = vmatprep.subr.mxu0 0.0
          %578 = vmatpush1.msra.mxu0 0.0
          %579 = vmatprep.subr.mxu0 0.0
          %580 = vmatpush1.msra.mxu0 0.0
          %581 = vmatprep.subr.mxu0 0.0
          %582 = vmatpush1.msra.mxu0 0.0
          %583 = vmatprep.subr.mxu0 0.0
          %584 = vmatpush1.msra.mxu0 0.0
          %585 = vmatprep.subr.mxu0 0.0
          %586 = vmatpush1.msra.mxu0 0.0
          %587 = vmatprep.subr.mxu0 0.0
          %588 = vmatpush1.msra.mxu0 0.0
          %589 = vmatprep.subr.mxu0 0.0
          %590 = vmatpush1.msra.mxu0 0.0
          %591 = vmatprep.subr.mxu0 0.0
          %592 = vmatpush1.msra.mxu0 0.0
          %593 = vmatprep.subr.mxu0 0.0
          %594 = vmatpush1.msra.mxu0 0.0
          %595 = vmatprep.subr.mxu0 0.0
          %596 = vmatpush1.msra.mxu0 0.0
          %597 = vmatprep.subr.mxu0 0.0
          %598 = vmatpush1.msra.mxu0 0.0
          %599 = vmatprep.subr.mxu0 0.0
          %600 = vmatpush1.msra.mxu0 0.0
          %601 = vmatprep.subr.mxu0 0.0
          %602 = vmatpush1.msra.mxu0 0.0
          %603 = vmatprep.subr.mxu0 0.0
          %604 = vmatpush1.msra.mxu0 0.0
          %605 = vmatprep.subr.mxu0 0.0
          %606 = vmatpush1.msra.mxu0 0.0
          %607 = vmatprep.subr.mxu0 0.0
          %608 = vmatpush1.msra.mxu0 0.0
          %609 = vmatprep.subr.mxu0 0.0
          %610 = vmatpush1.msra.mxu0 0.0
          %611 = vmatprep.subr.mxu0 0.0
          %612 = vmatpush1.msra.mxu0 0.0
          %613 = vmatprep.subr.mxu0 0.0
          %614 = vmatpush1.msra.mxu0 0.0
          %615 = vmatprep.subr.mxu0 0.0
          %616 = vmatpush1.msra.mxu0 0.0
          %617 = vmatprep.subr.mxu0 0.0
          %618 = vmatpush1.msra.mxu0 0.0
          %619 = vmatprep.subr.mxu0 0.0
          %620 = vmatpush1.msra.mxu0 0.0
          %621 = vmatprep.subr.mxu0 0.0
          %622 = vmatpush1.msra.mxu0 0.0
          %623 = vmatprep.subr.mxu0 0.0
          %624 = vmatpush1.msra.mxu0 0.0
          %625 = vmatprep.subr.mxu0 0.0
          %626 = vmatpush1.msra.mxu0 0.0
          %627 = vmatprep.subr.mxu0 0.0
          %628 = vmatpush1.msra.mxu0 0.0
          %629 = vmatprep.subr.mxu0 0.0
          %630 = vmatpush1.msra.mxu0 0.0
          %631 = vmatprep.subr.mxu0 0.0
          %632 = vmatpush1.msra.mxu0 0.0
          %633 = vmatprep.mubr.f32.mxu0 0.0
          %634 = vmatmul.mubr.f32.gmra.mrb[0].mxu0 %v488
          %v635 = vpop.f32.mrb[0].mxu0
          %v636 = vadd.f32 %v567, %v635
          %v637 = vpop.f32.mrb[0].mxu0
          %638 = vdwg.mxu0
          %vm639 = vcmask 261120
          %640 = vst.msk [vmem:[#allocation2] sm:$0xff] %vm639, %v557
          %641 = vst.msk [vmem:[#allocation3] sm:$0xff] %vm639, %v636
        $region84: #{tpu_custom_call.1} parent=59 // pred_fallthru
          _
        %v642 = vld [vmem:[%s409] sm:$0xff]
        %v643 = vld [vmem:[#allocation10] sm:$0xff]
        %v644 = vld [vmem:[#allocation10 + $0x8] sm:$0xff]
        %v645 = vld [vmem:[#allocation10 + $0x10] sm:$0xff]
        %v646 = vld [vmem:[#allocation10 + $0x18] sm:$0xff]
        %v647 = vld [vmem:[%s3] sm:$0x1]
        %v649 = vlaneseq
        %v650 = vshrl.u32 %v649, 7
        %v651 = vsub.s32 0, %v650
        %v652 = vrot.slane %v647, %v651
        %vm654 = vcmask 261120
        %v656 = vsel %vm654, %v642, 0
        %658 = vmatprep.subr.mxu0 0.0
        %659 = vmatpush1.msra.mxu0 %v643
        %660 = vmatprep.subr.mxu0 0.0
        %661 = vmatpush1.msra.mxu0 %v644
        %662 = vmatprep.subr.mxu0 0.0
        %663 = vmatpush1.msra.mxu0 %v645
        %664 = vmatprep.subr.mxu0 0.0
        %665 = vmatpush1.msra.mxu0 %v646
        %666 = vmatprep.subr.mxu0 0.0
        %667 = vmatpush1.msra.mxu0 0.0
        %668 = vmatprep.subr.mxu0 0.0
        %669 = vmatpush1.msra.mxu0 0.0
        %670 = vmatprep.subr.mxu0 0.0
        %671 = vmatpush1.msra.mxu0 0.0
        %672 = vmatprep.subr.mxu0 0.0
        %673 = vmatpush1.msra.mxu0 0.0
        %674 = vmatprep.subr.mxu0 0.0
        %675 = vmatpush1.msra.mxu0 0.0
        %676 = vmatprep.subr.mxu0 0.0
        %677 = vmatpush1.msra.mxu0 0.0
        %678 = vmatprep.subr.mxu0 0.0
        %679 = vmatpush1.msra.mxu0 0.0
        %680 = vmatprep.subr.mxu0 0.0
        %681 = vmatpush1.msra.mxu0 0.0
        %682 = vmatprep.subr.mxu0 0.0
        %683 = vmatpush1.msra.mxu0 0.0
        %684 = vmatprep.subr.mxu0 0.0
        %685 = vmatpush1.msra.mxu0 0.0
        %686 = vmatprep.subr.mxu0 0.0
        %687 = vmatpush1.msra.mxu0 0.0
        %688 = vmatprep.subr.mxu0 0.0
        %689 = vmatpush1.msra.mxu0 0.0
        %690 = vmatprep.subr.mxu0 0.0
        %691 = vmatpush1.msra.mxu0 0.0
        %692 = vmatprep.subr.mxu0 0.0
        %693 = vmatpush1.msra.mxu0 0.0
        %694 = vmatprep.subr.mxu0 0.0
        %695 = vmatpush1.msra.mxu0 0.0
        %696 = vmatprep.subr.mxu0 0.0
        %697 = vmatpush1.msra.mxu0 0.0
        %698 = vmatprep.subr.mxu0 0.0
        %699 = vmatpush1.msra.mxu0 0.0
        %700 = vmatprep.subr.mxu0 0.0
        %701 = vmatpush1.msra.mxu0 0.0
        %702 = vmatprep.subr.mxu0 0.0
        %703 = vmatpush1.msra.mxu0 0.0
        %704 = vmatprep.subr.mxu0 0.0
        %705 = vmatpush1.msra.mxu0 0.0
        %706 = vmatprep.subr.mxu0 0.0
        %707 = vmatpush1.msra.mxu0 0.0
        %708 = vmatprep.subr.mxu0 0.0
        %709 = vmatpush1.msra.mxu0 0.0
        %710 = vmatprep.subr.mxu0 0.0
        %711 = vmatpush1.msra.mxu0 0.0
        %712 = vmatprep.subr.mxu0 0.0
        %713 = vmatpush1.msra.mxu0 0.0
        %714 = vmatprep.subr.mxu0 0.0
        %715 = vmatpush1.msra.mxu0 0.0
        %716 = vmatprep.subr.mxu0 0.0
        %717 = vmatpush1.msra.mxu0 0.0
        %718 = vmatprep.subr.mxu0 0.0
        %719 = vmatpush1.msra.mxu0 0.0
        %720 = vmatprep.subr.mxu0 0.0
        %721 = vmatpush1.msra.mxu0 0.0
        %722 = vmatprep.mubr.f32.mxu0 0.0
        %723 = vmatmul.mubr.f32.gmra.mrb[0].mxu0 %v656
        %v724 = vpop.f32.mrb[0].mxu0
        %v725 = vadd.f32 %v652, %v724
        %v726 = vpop.f32.mrb[0].mxu0
        %727 = vdwg.mxu0
        %v728 = vld [vmem:[#allocation2] sm:$0xff]
        %v729 = vld [vmem:[#allocation3] sm:$0xff]
        %vm730 = vcmask 64512
        %v732 = vsel %vm730, %v725, 0
        %v735 = vsel %vm730, %v728, 0
        %737 = vmatprep.subr.mxu0 0.0
        %738 = vmatpush1.xpose.msra.mxu0 %v735
        %739 = vmatprep.subr.mxu0 0.0
        %740 = vmatpush1.xpose.msra.mxu0 0.0
        %741 = vmatprep.subr.mxu0 0.0
        %742 = vmatpush1.xpose.msra.mxu0 0.0
        %743 = vmatprep.subr.mxu0 0.0
        %744 = vmatpush1.xpose.msra.mxu0 0.0
        %745 = vmatprep.subr.mxu0 0.0
        %746 = vmatpush1.xpose.msra.mxu0 0.0
        %747 = vmatprep.subr.mxu0 0.0
        %748 = vmatpush1.xpose.msra.mxu0 0.0
        %749 = vmatprep.subr.mxu0 0.0
        %750 = vmatpush1.xpose.msra.mxu0 0.0
        %751 = vmatprep.subr.mxu0 0.0
        %752 = vmatpush1.xpose.msra.mxu0 0.0
        %753 = vmatprep.subr.mxu0 0.0
        %754 = vmatpush1.xpose.msra.mxu0 0.0
        %755 = vmatprep.subr.mxu0 0.0
        %756 = vmatpush1.xpose.msra.mxu0 0.0
        %757 = vmatprep.subr.mxu0 0.0
        %758 = vmatpush1.xpose.msra.mxu0 0.0
        %759 = vmatprep.subr.mxu0 0.0
        %760 = vmatpush1.xpose.msra.mxu0 0.0
        %761 = vmatprep.subr.mxu0 0.0
        %762 = vmatpush1.xpose.msra.mxu0 0.0
        %763 = vmatprep.subr.mxu0 0.0
        %764 = vmatpush1.xpose.msra.mxu0 0.0
        %765 = vmatprep.subr.mxu0 0.0
        %766 = vmatpush1.xpose.msra.mxu0 0.0
        %767 = vmatprep.subr.mxu0 0.0
        %768 = vmatpush1.xpose.msra.mxu0 0.0
        %769 = vmatprep.subr.mxu0 0.0
        %770 = vmatpush1.xpose.msra.mxu0 0.0
        %771 = vmatprep.subr.mxu0 0.0
        %772 = vmatpush1.xpose.msra.mxu0 0.0
        %773 = vmatprep.subr.mxu0 0.0
        %774 = vmatpush1.xpose.msra.mxu0 0.0
        %775 = vmatprep.subr.mxu0 0.0
        %776 = vmatpush1.xpose.msra.mxu0 0.0
        %777 = vmatprep.subr.mxu0 0.0
        %778 = vmatpush1.xpose.msra.mxu0 0.0
        %779 = vmatprep.subr.mxu0 0.0
        %780 = vmatpush1.xpose.msra.mxu0 0.0
        %781 = vmatprep.subr.mxu0 0.0
        %782 = vmatpush1.xpose.msra.mxu0 0.0
        %783 = vmatprep.subr.mxu0 0.0
        %784 = vmatpush1.xpose.msra.mxu0 0.0
        %785 = vmatprep.subr.mxu0 0.0
        %786 = vmatpush1.xpose.msra.mxu0 0.0
        %787 = vmatprep.subr.mxu0 0.0
        %788 = vmatpush1.xpose.msra.mxu0 0.0
        %789 = vmatprep.subr.mxu0 0.0
        %790 = vmatpush1.xpose.msra.mxu0 0.0
        %791 = vmatprep.subr.mxu0 0.0
        %792 = vmatpush1.xpose.msra.mxu0 0.0
        %793 = vmatprep.subr.mxu0 0.0
        %794 = vmatpush1.xpose.msra.mxu0 0.0
        %795 = vmatprep.subr.mxu0 0.0
        %796 = vmatpush1.xpose.msra.mxu0 0.0
        %797 = vmatprep.subr.mxu0 0.0
        %798 = vmatpush1.xpose.msra.mxu0 0.0
        %799 = vmatprep.subr.mxu0 0.0
        %800 = vmatpush1.xpose.msra.mxu0 0.0
        %801 = vmatprep.mubr.f32.mxu0 0.0
        %802 = vmatmul.mubr.f32.gmra.mrb[0].mxu0 %v732
        %v803 = vpop.f32.mrb[0].mxu0
        %v804 = vadd.f32 0.0, %v803
        %v805 = vpop.f32.mrb[0].mxu0
        %806 = vdwg.mxu0
        %v807 = vsel %vm730, %v804, -inf
        %808 = vmax.xlane.f32.xlu0 %v807
        %v809 = vpop.xlane.xlu0 %808
        %v810 = vsub.f32 %v804, %v809
        %v811 = vmul.f32 %v810, 1.442695
        %v812 = vpow.pop %v811
        %v813 = vsel %vm730, %v812, 0.0
        %814 = vadd.xlane.f32.xlu0 %v813
        %v815 = vpop.xlane.xlu0 %814
        %v816 = vrcp.pop %v815
        %v817 = vmul.f32 %v812, %v816
        %v819 = vsel %vm730, %v817, 0
        %821 = vmatprep.subr.mxu0 0.0
        %822 = vmatpush1.msra.mxu0 %v729
        %823 = vmatprep.subr.mxu0 0.0
        %824 = vmatpush1.msra.mxu0 0.0
        %825 = vmatprep.subr.mxu0 0.0
        %826 = vmatpush1.msra.mxu0 0.0
        %827 = vmatprep.subr.mxu0 0.0
        %828 = vmatpush1.msra.mxu0 0.0
        %829 = vmatprep.subr.mxu0 0.0
        %830 = vmatpush1.msra.mxu0 0.0
        %831 = vmatprep.subr.mxu0 0.0
        %832 = vmatpush1.msra.mxu0 0.0
        %833 = vmatprep.subr.mxu0 0.0
        %834 = vmatpush1.msra.mxu0 0.0
        %835 = vmatprep.subr.mxu0 0.0
        %836 = vmatpush1.msra.mxu0 0.0
        %837 = vmatprep.subr.mxu0 0.0
        %838 = vmatpush1.msra.mxu0 0.0
        %839 = vmatprep.subr.mxu0 0.0
        %840 = vmatpush1.msra.mxu0 0.0
        %841 = vmatprep.subr.mxu0 0.0
        %842 = vmatpush1.msra.mxu0 0.0
        %843 = vmatprep.subr.mxu0 0.0
        %844 = vmatpush1.msra.mxu0 0.0
        %845 = vmatprep.subr.mxu0 0.0
        %846 = vmatpush1.msra.mxu0 0.0
        %847 = vmatprep.subr.mxu0 0.0
        %848 = vmatpush1.msra.mxu0 0.0
        %849 = vmatprep.subr.mxu0 0.0
        %850 = vmatpush1.msra.mxu0 0.0
        %851 = vmatprep.subr.mxu0 0.0
        %852 = vmatpush1.msra.mxu0 0.0
        %853 = vmatprep.subr.mxu0 0.0
        %854 = vmatpush1.msra.mxu0 0.0
        %855 = vmatprep.subr.mxu0 0.0
        %856 = vmatpush1.msra.mxu0 0.0
        %857 = vmatprep.subr.mxu0 0.0
        %858 = vmatpush1.msra.mxu0 0.0
        %859 = vmatprep.subr.mxu0 0.0
        %860 = vmatpush1.msra.mxu0 0.0
        %861 = vmatprep.subr.mxu0 0.0
        %862 = vmatpush1.msra.mxu0 0.0
        %863 = vmatprep.subr.mxu0 0.0
        %864 = vmatpush1.msra.mxu0 0.0
        %865 = vmatprep.subr.mxu0 0.0
        %866 = vmatpush1.msra.mxu0 0.0
        %867 = vmatprep.subr.mxu0 0.0
        %868 = vmatpush1.msra.mxu0 0.0
        %869 = vmatprep.subr.mxu0 0.0
        %870 = vmatpush1.msra.mxu0 0.0
        %871 = vmatprep.subr.mxu0 0.0
        %872 = vmatpush1.msra.mxu0 0.0
        %873 = vmatprep.subr.mxu0 0.0
        %874 = vmatpush1.msra.mxu0 0.0
        %875 = vmatprep.subr.mxu0 0.0
        %876 = vmatpush1.msra.mxu0 0.0
        %877 = vmatprep.subr.mxu0 0.0
        %878 = vmatpush1.msra.mxu0 0.0
        %879 = vmatprep.subr.mxu0 0.0
        %880 = vmatpush1.msra.mxu0 0.0
        %881 = vmatprep.subr.mxu0 0.0
        %882 = vmatpush1.msra.mxu0 0.0
        %883 = vmatprep.subr.mxu0 0.0
        %884 = vmatpush1.msra.mxu0 0.0
        %885 = vmatprep.mubr.f32.mxu0 0.0
        %886 = vmatmul.mubr.f32.gmra.mrb[0].mxu0 %v819
        %v887 = vpop.f32.mrb[0].mxu0
        %v888 = vadd.f32 0.0, %v887
        %v889 = vpop.f32.mrb[0].mxu0
        %890 = vdwg.mxu0
        %891 = vst.msk [vmem:[#allocation4] sm:$0xff] %vm730, %v888
        %892 = vrot.lane.b32.xlu0 %v725, 120
        %v893 = vpop.permute.xlu0 %892
        %894 = vrot.lane.b32.xlu0 %v728, 120
        %v895 = vpop.permute.xlu0 %894
        %v896 = vsel %vm730, %v893, 0
        %v898 = vsel %vm730, %v895, 0
        %900 = vmatprep.subr.mxu0 0.0
        %901 = vmatpush1.xpose.msra.mxu0 %v898
        %902 = vmatprep.subr.mxu0 0.0
        %903 = vmatpush1.xpose.msra.mxu0 0.0
        %904 = vmatprep.subr.mxu0 0.0
        %905 = vmatpush1.xpose.msra.mxu0 0.0
        %906 = vmatprep.subr.mxu0 0.0
        %907 = vmatpush1.xpose.msra.mxu0 0.0
        %908 = vmatprep.subr.mxu0 0.0
        %909 = vmatpush1.xpose.msra.mxu0 0.0
        %910 = vmatprep.subr.mxu0 0.0
        %911 = vmatpush1.xpose.msra.mxu0 0.0
        %912 = vmatprep.subr.mxu0 0.0
        %913 = vmatpush1.xpose.msra.mxu0 0.0
        %914 = vmatprep.subr.mxu0 0.0
        %915 = vmatpush1.xpose.msra.mxu0 0.0
        %916 = vmatprep.subr.mxu0 0.0
        %917 = vmatpush1.xpose.msra.mxu0 0.0
        %918 = vmatprep.subr.mxu0 0.0
        %919 = vmatpush1.xpose.msra.mxu0 0.0
        %920 = vmatprep.subr.mxu0 0.0
        %921 = vmatpush1.xpose.msra.mxu0 0.0
        %922 = vmatprep.subr.mxu0 0.0
        %923 = vmatpush1.xpose.msra.mxu0 0.0
        %924 = vmatprep.subr.mxu0 0.0
        %925 = vmatpush1.xpose.msra.mxu0 0.0
        %926 = vmatprep.subr.mxu0 0.0
        %927 = vmatpush1.xpose.msra.mxu0 0.0
        %928 = vmatprep.subr.mxu0 0.0
        %929 = vmatpush1.xpose.msra.mxu0 0.0
        %930 = vmatprep.subr.mxu0 0.0
        %931 = vmatpush1.xpose.msra.mxu0 0.0
        %932 = vmatprep.subr.mxu0 0.0
        %933 = vmatpush1.xpose.msra.mxu0 0.0
        %934 = vmatprep.subr.mxu0 0.0
        %935 = vmatpush1.xpose.msra.mxu0 0.0
        %936 = vmatprep.subr.mxu0 0.0
        %937 = vmatpush1.xpose.msra.mxu0 0.0
        %938 = vmatprep.subr.mxu0 0.0
        %939 = vmatpush1.xpose.msra.mxu0 0.0
        %940 = vmatprep.subr.mxu0 0.0
        %941 = vmatpush1.xpose.msra.mxu0 0.0
        %942 = vmatprep.subr.mxu0 0.0
        %943 = vmatpush1.xpose.msra.mxu0 0.0
        %944 = vmatprep.subr.mxu0 0.0
        %945 = vmatpush1.xpose.msra.mxu0 0.0
        %946 = vmatprep.subr.mxu0 0.0
        %947 = vmatpush1.xpose.msra.mxu0 0.0
        %948 = vmatprep.subr.mxu0 0.0
        %949 = vmatpush1.xpose.msra.mxu0 0.0
        %950 = vmatprep.subr.mxu0 0.0
        %951 = vmatpush1.xpose.msra.mxu0 0.0
        %952 = vmatprep.subr.mxu0 0.0
        %953 = vmatpush1.xpose.msra.mxu0 0.0
        %954 = vmatprep.subr.mxu0 0.0
        %955 = vmatpush1.xpose.msra.mxu0 0.0
        %956 = vmatprep.subr.mxu0 0.0
        %957 = vmatpush1.xpose.msra.mxu0 0.0
        %958 = vmatprep.subr.mxu0 0.0
        %959 = vmatpush1.xpose.msra.mxu0 0.0
        %960 = vmatprep.subr.mxu0 0.0
        %961 = vmatpush1.xpose.msra.mxu0 0.0
        %962 = vmatprep.subr.mxu0 0.0
        %963 = vmatpush1.xpose.msra.mxu0 0.0
        %964 = vmatprep.mubr.f32.mxu0 0.0
        %965 = vmatmul.mubr.f32.gmra.mrb[0].mxu0 %v896
        %v966 = vpop.f32.mrb[0].mxu0
        %v967 = vadd.f32 0.0, %v966
        %v968 = vpop.f32.mrb[0].mxu0
        %969 = vdwg.mxu0
        %v970 = vsel %vm730, %v967, -inf
        %971 = vmax.xlane.f32.xlu0 %v970
        %v972 = vpop.xlane.xlu0 %971
        %v973 = vsub.f32 %v967, %v972
        %v974 = vmul.f32 %v973, 1.442695
        %v975 = vpow.pop %v974
        %v976 = vsel %vm730, %v975, 0.0
        %977 = vadd.xlane.f32.xlu0 %v976
        %v978 = vpop.xlane.xlu0 %977
        %v979 = vrcp.pop %v978
        %v980 = vmul.f32 %v975, %v979
        %982 = vrot.lane.b32.xlu0 %v729, 120
        %v983 = vpop.permute.xlu0 %982
        %v986 = vsel %vm730, %v980, 0
        %988 = vmatprep.subr.mxu0 0.0
        %989 = vmatpush1.msra.mxu0 %v983
        %990 = vmatprep.subr.mxu0 0.0
        %991 = vmatpush1.msra.mxu0 0.0
        %992 = vmatprep.subr.mxu0 0.0
        %993 = vmatpush1.msra.mxu0 0.0
        %994 = vmatprep.subr.mxu0 0.0
        %995 = vmatpush1.msra.mxu0 0.0
        %996 = vmatprep.subr.mxu0 0.0
        %997 = vmatpush1.msra.mxu0 0.0
        %998 = vmatprep.subr.mxu0 0.0
        %999 = vmatpush1.msra.mxu0 0.0
        %1000 = vmatprep.subr.mxu0 0.0
        %1001 = vmatpush1.msra.mxu0 0.0
        %1002 = vmatprep.subr.mxu0 0.0
        %1003 = vmatpush1.msra.mxu0 0.0
        %1004 = vmatprep.subr.mxu0 0.0
        %1005 = vmatpush1.msra.mxu0 0.0
        %1006 = vmatprep.subr.mxu0 0.0
        %1007 = vmatpush1.msra.mxu0 0.0
        %1008 = vmatprep.subr.mxu0 0.0
        %1009 = vmatpush1.msra.mxu0 0.0
        %1010 = vmatprep.subr.mxu0 0.0
        %1011 = vmatpush1.msra.mxu0 0.0
        %1012 = vmatprep.subr.mxu0 0.0
        %1013 = vmatpush1.msra.mxu0 0.0
        %1014 = vmatprep.subr.mxu0 0.0
        %1015 = vmatpush1.msra.mxu0 0.0
        %1016 = vmatprep.subr.mxu0 0.0
        %1017 = vmatpush1.msra.mxu0 0.0
        %1018 = vmatprep.subr.mxu0 0.0
        %1019 = vmatpush1.msra.mxu0 0.0
        %1020 = vmatprep.subr.mxu0 0.0
        %1021 = vmatpush1.msra.mxu0 0.0
        %1022 = vmatprep.subr.mxu0 0.0
        %1023 = vmatpush1.msra.mxu0 0.0
        %1024 = vmatprep.subr.mxu0 0.0
        %1025 = vmatpush1.msra.mxu0 0.0
        %1026 = vmatprep.subr.mxu0 0.0
        %1027 = vmatpush1.msra.mxu0 0.0
        %1028 = vmatprep.subr.mxu0 0.0
        %1029 = vmatpush1.msra.mxu0 0.0
        %1030 = vmatprep.subr.mxu0 0.0
        %1031 = vmatpush1.msra.mxu0 0.0
        %1032 = vmatprep.subr.mxu0 0.0
        %1033 = vmatpush1.msra.mxu0 0.0
        %1034 = vmatprep.subr.mxu0 0.0
        %1035 = vmatpush1.msra.mxu0 0.0
        %1036 = vmatprep.subr.mxu0 0.0
        %1037 = vmatpush1.msra.mxu0 0.0
        %1038 = vmatprep.subr.mxu0 0.0
        %1039 = vmatpush1.msra.mxu0 0.0
        %1040 = vmatprep.subr.mxu0 0.0
        %1041 = vmatpush1.msra.mxu0 0.0
        %1042 = vmatprep.subr.mxu0 0.0
        %1043 = vmatpush1.msra.mxu0 0.0
        %1044 = vmatprep.subr.mxu0 0.0
        %1045 = vmatpush1.msra.mxu0 0.0
        %1046 = vmatprep.subr.mxu0 0.0
        %1047 = vmatpush1.msra.mxu0 0.0
        %1048 = vmatprep.subr.mxu0 0.0
        %1049 = vmatpush1.msra.mxu0 0.0
        %1050 = vmatprep.subr.mxu0 0.0
        %1051 = vmatpush1.msra.mxu0 0.0
        %1052 = vmatprep.mubr.f32.mxu0 0.0
        %1053 = vmatmul.mubr.f32.gmra.mrb[0].mxu0 %v986
        %v1054 = vpop.f32.mrb[0].mxu0
        %v1055 = vadd.f32 0.0, %v1054
        %v1056 = vpop.f32.mrb[0].mxu0
        %1057 = vdwg.mxu0
        %1059 = vrot.lane.b32.xlu0 %v1055, 8
        %v1060 = vpop.permute.xlu0 %1059
        %vm1062 = vcmask 130112
        %1063 = vst.msk [vmem:[#allocation4] sm:$0xff] %vm1062, %v1060
        %1064 = vrot.lane.b32.xlu0 %v725, 112
        %v1065 = vpop.permute.xlu0 %1064
        %1066 = vrot.lane.b32.xlu0 %v728, 112
        %v1067 = vpop.permute.xlu0 %1066
        %v1068 = vsel %vm730, %v1065, 0
        %v1070 = vsel %vm730, %v1067, 0
        %1072 = vmatprep.subr.mxu0 0.0
        %1073 = vmatpush1.xpose.msra.mxu0 %v1070
        %1074 = vmatprep.subr.mxu0 0.0
        %1075 = vmatpush1.xpose.msra.mxu0 0.0
        %1076 = vmatprep.subr.mxu0 0.0
        %1077 = vmatpush1.xpose.msra.mxu0 0.0
        %1078 = vmatprep.subr.mxu0 0.0
        %1079 = vmatpush1.xpose.msra.mxu0 0.0
        %1080 = vmatprep.subr.mxu0 0.0
        %1081 = vmatpush1.xpose.msra.mxu0 0.0
        %1082 = vmatprep.subr.mxu0 0.0
        %1083 = vmatpush1.xpose.msra.mxu0 0.0
        %1084 = vmatprep.subr.mxu0 0.0
        %1085 = vmatpush1.xpose.msra.mxu0 0.0
        %1086 = vmatprep.subr.mxu0 0.0
        %1087 = vmatpush1.xpose.msra.mxu0 0.0
        %1088 = vmatprep.subr.mxu0 0.0
        %1089 = vmatpush1.xpose.msra.mxu0 0.0
        %1090 = vmatprep.subr.mxu0 0.0
        %1091 = vmatpush1.xpose.msra.mxu0 0.0
        %1092 = vmatprep.subr.mxu0 0.0
        %1093 = vmatpush1.xpose.msra.mxu0 0.0
        %1094 = vmatprep.subr.mxu0 0.0
        %1095 = vmatpush1.xpose.msra.mxu0 0.0
        %1096 = vmatprep.subr.mxu0 0.0
        %1097 = vmatpush1.xpose.msra.mxu0 0.0
        %1098 = vmatprep.subr.mxu0 0.0
        %1099 = vmatpush1.xpose.msra.mxu0 0.0
        %1100 = vmatprep.subr.mxu0 0.0
        %1101 = vmatpush1.xpose.msra.mxu0 0.0
        %1102 = vmatprep.subr.mxu0 0.0
        %1103 = vmatpush1.xpose.msra.mxu0 0.0
        %1104 = vmatprep.subr.mxu0 0.0
        %1105 = vmatpush1.xpose.msra.mxu0 0.0
        %1106 = vmatprep.subr.mxu0 0.0
        %1107 = vmatpush1.xpose.msra.mxu0 0.0
        %1108 = vmatprep.subr.mxu0 0.0
        %1109 = vmatpush1.xpose.msra.mxu0 0.0
        %1110 = vmatprep.subr.mxu0 0.0
        %1111 = vmatpush1.xpose.msra.mxu0 0.0
        %1112 = vmatprep.subr.mxu0 0.0
        %1113 = vmatpush1.xpose.msra.mxu0 0.0
        %1114 = vmatprep.subr.mxu0 0.0
        %1115 = vmatpush1.xpose.msra.mxu0 0.0
        %1116 = vmatprep.subr.mxu0 0.0
        %1117 = vmatpush1.xpose.msra.mxu0 0.0
        %1118 = vmatprep.subr.mxu0 0.0
        %1119 = vmatpush1.xpose.msra.mxu0 0.0
        %1120 = vmatprep.subr.mxu0 0.0
        %1121 = vmatpush1.xpose.msra.mxu0 0.0
        %1122 = vmatprep.subr.mxu0 0.0
        %1123 = vmatpush1.xpose.msra.mxu0 0.0
        %1124 = vmatprep.subr.mxu0 0.0
        %1125 = vmatpush1.xpose.msra.mxu0 0.0
        %1126 = vmatprep.subr.mxu0 0.0
        %1127 = vmatpush1.xpose.msra.mxu0 0.0
        %1128 = vmatprep.subr.mxu0 0.0
        %1129 = vmatpush1.xpose.msra.mxu0 0.0
        %1130 = vmatprep.subr.mxu0 0.0
        %1131 = vmatpush1.xpose.msra.mxu0 0.0
        %1132 = vmatprep.subr.mxu0 0.0
        %1133 = vmatpush1.xpose.msra.mxu0 0.0
        %1134 = vmatprep.subr.mxu0 0.0
        %1135 = vmatpush1.xpose.msra.mxu0 0.0
        %1136 = vmatprep.mubr.f32.mxu0 0.0
        %1137 = vmatmul.mubr.f32.gmra.mrb[0].mxu0 %v1068
        %v1138 = vpop.f32.mrb[0].mxu0
        %v1139 = vadd.f32 0.0, %v1138
        %v1140 = vpop.f32.mrb[0].mxu0
        %1141 = vdwg.mxu0
        %v1142 = vsel %vm730, %v1139, -inf
        %1143 = vmax.xlane.f32.xlu0 %v1142
        %v1144 = vpop.xlane.xlu0 %1143
        %v1145 = vsub.f32 %v1139, %v1144
        %v1146 = vmul.f32 %v1145, 1.442695
        %v1147 = vpow.pop %v1146
        %v1148 = vsel %vm730, %v1147, 0.0
        %1149 = vadd.xlane.f32.xlu0 %v1148
        %v1150 = vpop.xlane.xlu0 %1149
        %v1151 = vrcp.pop %v1150
        %v1152 = vmul.f32 %v1147, %v1151
        %1153 = vrot.lane.b32.xlu0 %v729, 112
        %v1154 = vpop.permute.xlu0 %1153
        %v1157 = vsel %vm730, %v1152, 0
        %1159 = vmatprep.subr.mxu0 0.0
        %1160 = vmatpush1.msra.mxu0 %v1154
        %1161 = vmatprep.subr.mxu0 0.0
        %1162 = vmatpush1.msra.mxu0 0.0
        %1163 = vmatprep.subr.mxu0 0.0
        %1164 = vmatpush1.msra.mxu0 0.0
        %1165 = vmatprep.subr.mxu0 0.0
        %1166 = vmatpush1.msra.mxu0 0.0
        %1167 = vmatprep.subr.mxu0 0.0
        %1168 = vmatpush1.msra.mxu0 0.0
        %1169 = vmatprep.subr.mxu0 0.0
        %1170 = vmatpush1.msra.mxu0 0.0
        %1171 = vmatprep.subr.mxu0 0.0
        %1172 = vmatpush1.msra.mxu0 0.0
        %1173 = vmatprep.subr.mxu0 0.0
        %1174 = vmatpush1.msra.mxu0 0.0
        %1175 = vmatprep.subr.mxu0 0.0
        %1176 = vmatpush1.msra.mxu0 0.0
        %1177 = vmatprep.subr.mxu0 0.0
        %1178 = vmatpush1.msra.mxu0 0.0
        %1179 = vmatprep.subr.mxu0 0.0
        %1180 = vmatpush1.msra.mxu0 0.0
        %1181 = vmatprep.subr.mxu0 0.0
        %1182 = vmatpush1.msra.mxu0 0.0
        %1183 = vmatprep.subr.mxu0 0.0
        %1184 = vmatpush1.msra.mxu0 0.0
        %1185 = vmatprep.subr.mxu0 0.0
        %1186 = vmatpush1.msra.mxu0 0.0
        %1187 = vmatprep.subr.mxu0 0.0
        %1188 = vmatpush1.msra.mxu0 0.0
        %1189 = vmatprep.subr.mxu0 0.0
        %1190 = vmatpush1.msra.mxu0 0.0
        %1191 = vmatprep.subr.mxu0 0.0
        %1192 = vmatpush1.msra.mxu0 0.0
        %1193 = vmatprep.subr.mxu0 0.0
        %1194 = vmatpush1.msra.mxu0 0.0
        %1195 = vmatprep.subr.mxu0 0.0
        %1196 = vmatpush1.msra.mxu0 0.0
        %1197 = vmatprep.subr.mxu0 0.0
        %1198 = vmatpush1.msra.mxu0 0.0
        %1199 = vmatprep.subr.mxu0 0.0
        %1200 = vmatpush1.msra.mxu0 0.0
        %1201 = vmatprep.subr.mxu0 0.0
        %1202 = vmatpush1.msra.mxu0 0.0
        %1203 = vmatprep.subr.mxu0 0.0
        %1204 = vmatpush1.msra.mxu0 0.0
        %1205 = vmatprep.subr.mxu0 0.0
        %1206 = vmatpush1.msra.mxu0 0.0
        %1207 = vmatprep.subr.mxu0 0.0
        %1208 = vmatpush1.msra.mxu0 0.0
        %1209 = vmatprep.subr.mxu0 0.0
        %1210 = vmatpush1.msra.mxu0 0.0
        %1211 = vmatprep.subr.mxu0 0.0
        %1212 = vmatpush1.msra.mxu0 0.0
        %1213 = vmatprep.subr.mxu0 0.0
        %1214 = vmatpush1.msra.mxu0 0.0
        %1215 = vmatprep.subr.mxu0 0.0
        %1216 = vmatpush1.msra.mxu0 0.0
        %1217 = vmatprep.subr.mxu0 0.0
        %1218 = vmatpush1.msra.mxu0 0.0
        %1219 = vmatprep.subr.mxu0 0.0
        %1220 = vmatpush1.msra.mxu0 0.0
        %1221 = vmatprep.subr.mxu0 0.0
        %1222 = vmatpush1.msra.mxu0 0.0
        %1223 = vmatprep.mubr.f32.mxu0 0.0
        %1224 = vmatmul.mubr.f32.gmra.mrb[0].mxu0 %v1157
        %v1225 = vpop.f32.mrb[0].mxu0
        %v1226 = vadd.f32 0.0, %v1225
        %v1227 = vpop.f32.mrb[0].mxu0
        %1228 = vdwg.mxu0
        %1230 = vrot.lane.b32.xlu0 %v1226, 16
        %v1231 = vpop.permute.xlu0 %1230
        %vm1233 = vcmask 195712
        %1234 = vst.msk [vmem:[#allocation4] sm:$0xff] %vm1233, %v1231
        %1235 = vrot.lane.b32.xlu0 %v725, 104
        %v1236 = vpop.permute.xlu0 %1235
        %1237 = vrot.lane.b32.xlu0 %v728, 104
        %v1238 = vpop.permute.xlu0 %1237
        %v1239 = vsel %vm730, %v1236, 0
        %v1241 = vsel %vm730, %v1238, 0
        %1243 = vmatprep.subr.mxu0 0.0
        %1244 = vmatpush1.xpose.msra.mxu0 %v1241
        %1245 = vmatprep.subr.mxu0 0.0
        %1246 = vmatpush1.xpose.msra.mxu0 0.0
        %1247 = vmatprep.subr.mxu0 0.0
        %1248 = vmatpush1.xpose.msra.mxu0 0.0
        %1249 = vmatprep.subr.mxu0 0.0
        %1250 = vmatpush1.xpose.msra.mxu0 0.0
        %1251 = vmatprep.subr.mxu0 0.0
        %1252 = vmatpush1.xpose.msra.mxu0 0.0
        %1253 = vmatprep.subr.mxu0 0.0
        %1254 = vmatpush1.xpose.msra.mxu0 0.0
        %1255 = vmatprep.subr.mxu0 0.0
        %1256 = vmatpush1.xpose.msra.mxu0 0.0
        %1257 = vmatprep.subr.mxu0 0.0
        %1258 = vmatpush1.xpose.msra.mxu0 0.0
        %1259 = vmatprep.subr.mxu0 0.0
        %1260 = vmatpush1.xpose.msra.mxu0 0.0
        %1261 = vmatprep.subr.mxu0 0.0
        %1262 = vmatpush1.xpose.msra.mxu0 0.0
        %1263 = vmatprep.subr.mxu0 0.0
        %1264 = vmatpush1.xpose.msra.mxu0 0.0
        %1265 = vmatprep.subr.mxu0 0.0
        %1266 = vmatpush1.xpose.msra.mxu0 0.0
        %1267 = vmatprep.subr.mxu0 0.0
        %1268 = vmatpush1.xpose.msra.mxu0 0.0
        %1269 = vmatprep.subr.mxu0 0.0
        %1270 = vmatpush1.xpose.msra.mxu0 0.0
        %1271 = vmatprep.subr.mxu0 0.0
        %1272 = vmatpush1.xpose.msra.mxu0 0.0
        %1273 = vmatprep.subr.mxu0 0.0
        %1274 = vmatpush1.xpose.msra.mxu0 0.0
        %1275 = vmatprep.subr.mxu0 0.0
        %1276 = vmatpush1.xpose.msra.mxu0 0.0
        %1277 = vmatprep.subr.mxu0 0.0
        %1278 = vmatpush1.xpose.msra.mxu0 0.0
        %1279 = vmatprep.subr.mxu0 0.0
        %1280 = vmatpush1.xpose.msra.mxu0 0.0
        %1281 = vmatprep.subr.mxu0 0.0
        %1282 = vmatpush1.xpose.msra.mxu0 0.0
        %1283 = vmatprep.subr.mxu0 0.0
        %1284 = vmatpush1.xpose.msra.mxu0 0.0
        %1285 = vmatprep.subr.mxu0 0.0
        %1286 = vmatpush1.xpose.msra.mxu0 0.0
        %1287 = vmatprep.subr.mxu0 0.0
        %1288 = vmatpush1.xpose.msra.mxu0 0.0
        %1289 = vmatprep.subr.mxu0 0.0
        %1290 = vmatpush1.xpose.msra.mxu0 0.0
        %1291 = vmatprep.subr.mxu0 0.0
        %1292 = vmatpush1.xpose.msra.mxu0 0.0
        %1293 = vmatprep.subr.mxu0 0.0
        %1294 = vmatpush1.xpose.msra.mxu0 0.0
        %1295 = vmatprep.subr.mxu0 0.0
        %1296 = vmatpush1.xpose.msra.mxu0 0.0
        %1297 = vmatprep.subr.mxu0 0.0
        %1298 = vmatpush1.xpose.msra.mxu0 0.0
        %1299 = vmatprep.subr.mxu0 0.0
        %1300 = vmatpush1.xpose.msra.mxu0 0.0
        %1301 = vmatprep.subr.mxu0 0.0
        %1302 = vmatpush1.xpose.msra.mxu0 0.0
        %1303 = vmatprep.subr.mxu0 0.0
        %1304 = vmatpush1.xpose.msra.mxu0 0.0
        %1305 = vmatprep.subr.mxu0 0.0
        %1306 = vmatpush1.xpose.msra.mxu0 0.0
        %1307 = vmatprep.mubr.f32.mxu0 0.0
        %1308 = vmatmul.mubr.f32.gmra.mrb[0].mxu0 %v1239
        %v1309 = vpop.f32.mrb[0].mxu0
        %v1310 = vadd.f32 0.0, %v1309
        %v1311 = vpop.f32.mrb[0].mxu0
        %1312 = vdwg.mxu0
        %v1313 = vsel %vm730, %v1310, -inf
        %1314 = vmax.xlane.f32.xlu0 %v1313
        %v1315 = vpop.xlane.xlu0 %1314
        %v1316 = vsub.f32 %v1310, %v1315
        %v1317 = vmul.f32 %v1316, 1.442695
        %v1318 = vpow.pop %v1317
        %v1319 = vsel %vm730, %v1318, 0.0
        %1320 = vadd.xlane.f32.xlu0 %v1319
        %v1321 = vpop.xlane.xlu0 %1320
        %v1322 = vrcp.pop %v1321
        %v1323 = vmul.f32 %v1318, %v1322
        %1324 = vrot.lane.b32.xlu0 %v729, 104
        %v1325 = vpop.permute.xlu0 %1324
        %v1328 = vsel %vm730, %v1323, 0
        %1330 = vmatprep.subr.mxu0 0.0
        %1331 = vmatpush1.msra.mxu0 %v1325
        %1332 = vmatprep.subr.mxu0 0.0
        %1333 = vmatpush1.msra.mxu0 0.0
        %1334 = vmatprep.subr.mxu0 0.0
        %1335 = vmatpush1.msra.mxu0 0.0
        %1336 = vmatprep.subr.mxu0 0.0
        %1337 = vmatpush1.msra.mxu0 0.0
        %1338 = vmatprep.subr.mxu0 0.0
        %1339 = vmatpush1.msra.mxu0 0.0
        %1340 = vmatprep.subr.mxu0 0.0
        %1341 = vmatpush1.msra.mxu0 0.0
        %1342 = vmatprep.subr.mxu0 0.0
        %1343 = vmatpush1.msra.mxu0 0.0
        %1344 = vmatprep.subr.mxu0 0.0
        %1345 = vmatpush1.msra.mxu0 0.0
        %1346 = vmatprep.subr.mxu0 0.0
        %1347 = vmatpush1.msra.mxu0 0.0
        %1348 = vmatprep.subr.mxu0 0.0
        %1349 = vmatpush1.msra.mxu0 0.0
        %1350 = vmatprep.subr.mxu0 0.0
        %1351 = vmatpush1.msra.mxu0 0.0
        %1352 = vmatprep.subr.mxu0 0.0
        %1353 = vmatpush1.msra.mxu0 0.0
        %1354 = vmatprep.subr.mxu0 0.0
        %1355 = vmatpush1.msra.mxu0 0.0
        %1356 = vmatprep.subr.mxu0 0.0
        %1357 = vmatpush1.msra.mxu0 0.0
        %1358 = vmatprep.subr.mxu0 0.0
        %1359 = vmatpush1.msra.mxu0 0.0
        %1360 = vmatprep.subr.mxu0 0.0
        %1361 = vmatpush1.msra.mxu0 0.0
        %1362 = vmatprep.subr.mxu0 0.0
        %1363 = vmatpush1.msra.mxu0 0.0
        %1364 = vmatprep.subr.mxu0 0.0
        %1365 = vmatpush1.msra.mxu0 0.0
        %1366 = vmatprep.subr.mxu0 0.0
        %1367 = vmatpush1.msra.mxu0 0.0
        %1368 = vmatprep.subr.mxu0 0.0
        %1369 = vmatpush1.msra.mxu0 0.0
        %1370 = vmatprep.subr.mxu0 0.0
        %1371 = vmatpush1.msra.mxu0 0.0
        %1372 = vmatprep.subr.mxu0 0.0
        %1373 = vmatpush1.msra.mxu0 0.0
        %1374 = vmatprep.subr.mxu0 0.0
        %1375 = vmatpush1.msra.mxu0 0.0
        %1376 = vmatprep.subr.mxu0 0.0
        %1377 = vmatpush1.msra.mxu0 0.0
        %1378 = vmatprep.subr.mxu0 0.0
        %1379 = vmatpush1.msra.mxu0 0.0
        %1380 = vmatprep.subr.mxu0 0.0
        %1381 = vmatpush1.msra.mxu0 0.0
        %1382 = vmatprep.subr.mxu0 0.0
        %1383 = vmatpush1.msra.mxu0 0.0
        %1384 = vmatprep.subr.mxu0 0.0
        %1385 = vmatpush1.msra.mxu0 0.0
        %1386 = vmatprep.subr.mxu0 0.0
        %1387 = vmatpush1.msra.mxu0 0.0
        %1388 = vmatprep.subr.mxu0 0.0
        %1389 = vmatpush1.msra.mxu0 0.0
        %1390 = vmatprep.subr.mxu0 0.0
        %1391 = vmatpush1.msra.mxu0 0.0
        %1392 = vmatprep.subr.mxu0 0.0
        %1393 = vmatpush1.msra.mxu0 0.0
        %1394 = vmatprep.mubr.f32.mxu0 0.0
        %1395 = vmatmul.mubr.f32.gmra.mrb[0].mxu0 %v1328
        %v1396 = vpop.f32.mrb[0].mxu0
        %v1397 = vadd.f32 0.0, %v1396
        %v1398 = vpop.f32.mrb[0].mxu0
        %1399 = vdwg.mxu0
        %1401 = vrot.lane.b32.xlu0 %v1397, 24
        %v1402 = vpop.permute.xlu0 %1401
        %vm1404 = vcmask 261312
        %1405 = vst.msk [vmem:[#allocation4] sm:$0xff] %vm1404, %v1402
        %v1406 = vld [vmem:[#allocation4] sm:$0xff]
        %v1407 = vld [vmem:[#allocation13] sm:$0xff]
        %v1408 = vld [vmem:[#allocation13 + $0x8] sm:$0xff]
        %v1409 = vld [vmem:[#allocation13 + $0x10] sm:$0xff]
        %v1410 = vld [vmem:[#allocation13 + $0x18] sm:$0xff]
        %v1411 = vld [vmem:[%s9] sm:$0x1]
        %v1413 = vlaneseq
        %v1414 = vshrl.u32 %v1413, 7
        %v1415 = vsub.s32 0, %v1414
        %v1416 = vrot.slane %v1411, %v1415
        %v1419 = vsel %vm654, %v1406, 0
        %1421 = vmatprep.subr.mxu0 0.0
        %1422 = vmatpush1.msra.mxu0 %v1407
        %1423 = vmatprep.subr.mxu0 0.0
        %1424 = vmatpush1.msra.mxu0 %v1408
        %1425 = vmatprep.subr.mxu0 0.0
        %1426 = vmatpush1.msra.mxu0 %v1409
        %1427 = vmatprep.subr.mxu0 0.0
        %1428 = vmatpush1.msra.mxu0 %v1410
        %1429 = vmatprep.subr.mxu0 0.0
        %1430 = vmatpush1.msra.mxu0 0.0
        %1431 = vmatprep.subr.mxu0 0.0
        %1432 = vmatpush1.msra.mxu0 0.0
        %1433 = vmatprep.subr.mxu0 0.0
        %1434 = vmatpush1.msra.mxu0 0.0
        %1435 = vmatprep.subr.mxu0 0.0
        %1436 = vmatpush1.msra.mxu0 0.0
        %1437 = vmatprep.subr.mxu0 0.0
        %1438 = vmatpush1.msra.mxu0 0.0
        %1439 = vmatprep.subr.mxu0 0.0
        %1440 = vmatpush1.msra.mxu0 0.0
        %1441 = vmatprep.subr.mxu0 0.0
        %1442 = vmatpush1.msra.mxu0 0.0
        %1443 = vmatprep.subr.mxu0 0.0
        %1444 = vmatpush1.msra.mxu0 0.0
        %1445 = vmatprep.subr.mxu0 0.0
        %1446 = vmatpush1.msra.mxu0 0.0
        %1447 = vmatprep.subr.mxu0 0.0
        %1448 = vmatpush1.msra.mxu0 0.0
        %1449 = vmatprep.subr.mxu0 0.0
        %1450 = vmatpush1.msra.mxu0 0.0
        %1451 = vmatprep.subr.mxu0 0.0
        %1452 = vmatpush1.msra.mxu0 0.0
        %1453 = vmatprep.subr.mxu0 0.0
        %1454 = vmatpush1.msra.mxu0 0.0
        %1455 = vmatprep.subr.mxu0 0.0
        %1456 = vmatpush1.msra.mxu0 0.0
        %1457 = vmatprep.subr.mxu0 0.0
        %1458 = vmatpush1.msra.mxu0 0.0
        %1459 = vmatprep.subr.mxu0 0.0
        %1460 = vmatpush1.msra.mxu0 0.0
        %1461 = vmatprep.subr.mxu0 0.0
        %1462 = vmatpush1.msra.mxu0 0.0
        %1463 = vmatprep.subr.mxu0 0.0
        %1464 = vmatpush1.msra.mxu0 0.0
        %1465 = vmatprep.subr.mxu0 0.0
        %1466 = vmatpush1.msra.mxu0 0.0
        %1467 = vmatprep.subr.mxu0 0.0
        %1468 = vmatpush1.msra.mxu0 0.0
        %1469 = vmatprep.subr.mxu0 0.0
        %1470 = vmatpush1.msra.mxu0 0.0
        %1471 = vmatprep.subr.mxu0 0.0
        %1472 = vmatpush1.msra.mxu0 0.0
        %1473 = vmatprep.subr.mxu0 0.0
        %1474 = vmatpush1.msra.mxu0 0.0
        %1475 = vmatprep.subr.mxu0 0.0
        %1476 = vmatpush1.msra.mxu0 0.0
        %1477 = vmatprep.subr.mxu0 0.0
        %1478 = vmatpush1.msra.mxu0 0.0
        %1479 = vmatprep.subr.mxu0 0.0
        %1480 = vmatpush1.msra.mxu0 0.0
        %1481 = vmatprep.subr.mxu0 0.0
        %1482 = vmatpush1.msra.mxu0 0.0
        %1483 = vmatprep.subr.mxu0 0.0
        %1484 = vmatpush1.msra.mxu0 0.0
        %1485 = vmatprep.mubr.f32.mxu0 0.0
        %1486 = vmatmul.mubr.f32.gmra.mrb[0].mxu0 %v1419
        %v1487 = vpop.f32.mrb[0].mxu0
        %v1488 = vadd.f32 %v1416, %v1487
        %v1489 = vpop.f32.mrb[0].mxu0
        %1490 = vdwg.mxu0
        %1491 = vst.msk [vmem:[%s471] sm:$0xff] %vm654, %v1488
        %s1492 = sand.u32 %s275, 1
        %s1493 = scalar_lea.sflag [#allocation7], %s1492
        %s1494 = sand.u32 %s275, 1
        %s1495 = smul.addr %s1494, 8
        %s1496 = scalar_lea.vmem [#allocation14], %s1495
        // Predicated region
        $region85: #{tpu_custom_call.1} parent=59 // pred_check
          %p1497 = pneg %p285
        $region86: #{tpu_custom_call.1} parent=59 // pred_check_branch
          %1499 = sbr.rel (%p1497) target = $region88
        $region87: #{tpu_custom_call.1} parent=59 // pred_region
          %s1501 = ssub.s32 128, 128
          %1502 = vsyncadd %s1493, %s1501
          %s1503 = sadd.s32 %s36, %s35
          %s1504 = smul.addr %s1503, 128
          %s1505 = scalar_lea.hbm %s10, %s1504
          %s1507 = sshll.u32 %s1496, 4
          %s1508 = int_to_ptr.vmem [resolvable:$true] %s1507
          %1510 = dma.vmem_to_hbm [thread:$0]  %s1508, 128, %s1505, %s1493
        $region88: #{tpu_custom_call.1} parent=59 // pred_fallthru
          _
      $region60: #{tpu_custom_call.1} parent=5 // pred_fallthru
        _
      %p1511 = scmp.le.s32.totalorder 2, %s26
      // Predicated region
      $region89: #{tpu_custom_call.1} parent=5 // pred_check
        %p1512 = pneg %p1511
      $region90: #{tpu_custom_call.1} parent=5 // pred_check_branch
        %1514 = sbr.rel (%p1512) target = $region92
      $region91: #{tpu_custom_call.1} parent=5 // pred_region
        %s1515 = ssub.s32 %s26, 2
        // Predicated region
        $region93: #{tpu_custom_call.1} parent=91 // pred_check
          %p1516 = pneg %p291
        $region94: #{tpu_custom_call.1} parent=91 // pred_check_branch
          %1518 = sbr.rel (%p1516) target = $region96
        $region95: #{tpu_custom_call.1} parent=91 // pred_region
          %s1519 = sand.u32 %s276, 1
          %s1520 = scalar_lea.sflag [#allocation7], %s1519
          %s1521 = sand.u32 %s276, 1
          %s1522 = smul.addr %s1521, 8
          %s1523 = scalar_lea.vmem [#allocation14], %s1522
          %1524 = dma.done %s1520, 128
        $region96: #{tpu_custom_call.1} parent=91 // pred_fallthru
          _
      $region92: #{tpu_custom_call.1} parent=5 // pred_fallthru
        _
    $region6: #{tpu_custom_call.1} parent=1 // loop_footer
      %s30 = sadd.s32 1, %s26
    $region7: #{tpu_custom_call.1} parent=1 // loop_footer_branch
      %25 = sbr.rel target = $region3
    $region8: #{tpu_custom_call.1} parent=1 // loop_exit
      _
    %1525 = vsyncpa [#allocation6], 1
    %s1526 = scalar_lea.sflag [#allocation6], 1
    %1527 = vsyncpa %s1526, 1
    %1528 = vsyncpa [#allocation9], 1
    %s1529 = scalar_lea.sflag [#allocation9], 1
    %1530 = vsyncpa %s1529, 1
    %1531 = vsyncpa [#allocation12], 1
    %1532 = vsyncpa [#allocation7], 1
    %s1533 = scalar_lea.sflag [#allocation7], 1
    %1534 = vsyncpa %s1533, 1

// kernel: tpu_custom_call.1
$region0: #{tpu_custom_call.1}
  #allocation0 [shape = 'u32[]', space=smem, size = 0x4, offset = 0x4, fixed_abs, tag = 'smem constant byte address 0x4 - core index']
  #allocation1 [shape = 'u32[144,128]{1,0:T(1,128)}', space=vmem, size = 0x12000, scoped, tag = 'internal scratch']
  #allocation2 [shape = 'f32[8,32]{1,0:T(8,128)}', space=vmem, size = 0x1000, scoped, tag = 'scratch operand']
  #allocation3 [shape = 'f32[8,32]{1,0:T(8,128)}', space=vmem, size = 0x1000, scoped, tag = 'scratch operand']
  #allocation4 [shape = 'f32[8,32]{1,0:T(8,128)}', space=vmem, size = 0x1000, scoped, tag = 'scratch operand']
  %s0 = inlined_call_operand.hbm [shape: f32[2,8,32], index: 0, kind: input, shape index: {}]
  %s1 = inlined_call_operand.hbm [shape: f32[2,8,16], index: 1, kind: input, shape index: {}]
  %s2 = inlined_call_operand.hbm [shape: f32[32,32], index: 2, kind: input, shape index: {}]
  %s3 = inlined_call_operand.vmem [shape: f32[1,32], index: 3, kind: input, shape index: {}]
  %s4 = inlined_call_operand.hbm [shape: f32[16,32], index: 4, kind: input, shape index: {}]
  %s5 = inlined_call_operand.vmem [shape: f32[1,32], index: 5, kind: input, shape index: {}]
  %s6 = inlined_call_operand.vmem [shape: f32[16,32], index: 6, kind: input, shape index: {}]
  %s7 = inlined_call_operand.vmem [shape: f32[1,32], index: 7, kind: input, shape index: {}]
  %s8 = inlined_call_operand.hbm [shape: f32[32,32], index: 8, kind: input, shape index: {}]
  %s9 = inlined_call_operand.vmem [shape: f32[1,32], index: 9, kind: input, shape index: {}]
  %s10 = inlined_call_operand.hbm [shape: f32[2,8,32], index: 10, kind: output, shape index: {}]
  %s11 = sld [smem:[#allocation0]]
  $region97: #{tpu_custom_call.1} parent=0
    _
  %s13 = ssub.s32 1, %s11
  %s14 = scalar_select 0, %s13, %s11
  $region1: #{tpu_custom_call.1} parent=0
    #allocation5 [shape = 'u8[8192]{0}', space=vmem, size = 0x2000, scoped, tag = 'input window, operand 0']
    #allocation6 [shape = 's32[2]{0}', space=sflag, size = 0x8, scoped, tag = 'scoped memory for tpu_custom_call.1']
    #allocation7 [shape = 's32[2]{0}', space=sflag, size = 0x8, scoped, tag = 'scoped memory for tpu_custom_call.1']
    #allocation8 [shape = 'u8[8192]{0}', space=vmem, size = 0x2000, scoped, tag = 'input window, operand 1']
    #allocation9 [shape = 's32[2]{0}', space=sflag, size = 0x8, scoped, tag = 'scoped memory for tpu_custom_call.1']
    #allocation10 [shape = 'u8[16384]{0}', space=vmem, size = 0x4000, scoped, tag = 'input window, operand 2, single buffered']
    #allocation11 [shape = 'u8[8192]{0}', space=vmem, size = 0x2000, scoped, tag = 'input window, operand 4, single buffered']
    #allocation12 [shape = 's32[1]{0}', space=sflag, size = 0x4, scoped, tag = 'scoped memory for tpu_custom_call.1']
    #allocation13 [shape = 'u8[16384]{0}', space=vmem, size = 0x4000, scoped, tag = 'input window, operand 8, single buffered']
    #allocation14 [shape = 'u8[8192]{0}', space=vmem, size = 0x2000, scoped, tag = 'output window, operand 0']
    %15 = vsyncpa [#allocation6], 0
    %s16 = scalar_lea.sflag [#allocation6], 1
    %17 = vsyncpa %s16, 0
    %18 = vsyncpa [#allocation9], 0
    %s19 = scalar_lea.sflag [#allocation9], 1
    %20 = vsyncpa %s19, 0
    %21 = vsyncpa [#allocation12], 0
    %22 = vsyncpa [#allocation7], 0
    %s23 = scalar_lea.sflag [#allocation7], 1
    %24 = vsyncpa %s23, 0
    loop: start=0, step=1, limit=4
    $region2: #{tpu_custom_call.1} parent=1 // loop_pre_header
      _
    $region3: #{tpu_custom_call.1} parent=1 // loop_header
      %s26 = sphi 0, %s30
      %p27 = scmp.ge.s32.totalorder %s26, 4
      %s33 = sphi 0, %s45
      %s34 = sphi 0, %s41
      %s35 = sphi 0, %s33
      %s36 = sphi 0, %s34
      %s37 = sphi 0, %s35
      %s38 = sphi 0, %s36
      %s50 = sphi 0, %s52
      %s53 = sphi 0, %s50
      %s54 = sphi 0, %s53
      %s70 = sphi 0, %s54
      %s76 = sphi 0, %s78
      %s79 = sphi 0, %s76
      %s80 = sphi 0, %s79
      %s96 = sphi 0, %s80
      %s100 = sphi 0, %s100
      %s102 = sphi 0, %s100
      %s103 = sphi 0, %s102
      %s117 = sphi 0, %s103
      %s121 = sphi 0, %s121
      %s123 = sphi 0, %s121
      %s124 = sphi 0, %s123
      %s138 = sphi 0, %s124
      %s142 = sphi 0, %s142
      %s144 = sphi 0, %s142
      %s145 = sphi 0, %s144
      %s159 = sphi 0, %s145
      %s163 = sphi 0, %s163
      %s165 = sphi 0, %s163
      %s166 = sphi 0, %s165
      %s180 = sphi 0, %s166
      %s184 = sphi 0, %s184
      %s186 = sphi 0, %s184
      %s187 = sphi 0, %s186
      %s201 = sphi 0, %s187
      %s205 = sphi 0, %s205
      %s207 = sphi 0, %s205
      %s208 = sphi 0, %s207
      %s222 = sphi 0, %s208
      %s226 = sphi 0, %s226
      %s228 = sphi 0, %s226
      %s229 = sphi 0, %s228
      %s243 = sphi 0, %s229
      %s247 = sphi 0, %s247
      %s249 = sphi 0, %s247
      %s250 = sphi 0, %s249
      %s264 = sphi 0, %s250
      %s272 = sphi 0, %s274
      %s275 = sphi 0, %s272
      %s276 = sphi 0, %s275
      %s292 = sphi 0, %s276
    $region4: #{tpu_custom_call.1} parent=1 // loop_header_branch
      %29 = sbr.rel (%p27) target = $region8
    $region5: #{tpu_custom_call.1} parent=1 // loop_body
      %s31 = ssub.s32 %s26, 1
      %s32 = ssub.s32 %s26, 2
      %s39 = sadd.s32 1, %s34
      %p40 = scmp.ge.s32.totalorder %s39, 1
      %s41 = scalar_select %p40, 0, %s39
      %s42 = sadd.s32 1, %s33
      %s43 = scalar_select %p40, %s42, %s33
      %p44 = scmp.ge.s32.totalorder %s43, 2
      %s45 = scalar_select %p44, 0, %s43
      %s46 = ssub.s32 %s33, %s45
      %s47 = ssub.s32 %s34, %s41
      %s48 = sor.u32 %s46, %s47
      %p49 = scmp.eq.s32.totalorder %s48, 0
      %s51 = sadd.s32 %s50, 1
      %s52 = scalar_select %p49, %s50, %s51
      %p55 = pneg %p49
      %p56 = scmp.eq.s32.totalorder %s26, 1
      %p57 = por %p55, %p56
      %p58 = scmp.ne.s32.totalorder %s50, %s53
      %p59 = scmp.eq.s32.totalorder %s26, 0
      %p60 = por %p58, %p59
      %p61 = scmp.ne.s32.totalorder %s50, %s53
      %p62 = scmp.eq.s32.totalorder %s31, 1
      %p63 = por %p61, %p62
      %p64 = scmp.ne.s32.totalorder %s53, %s54
      %p65 = scmp.eq.s32.totalorder %s31, 0
      %p66 = por %p64, %p65
      %p67 = scmp.ne.s32.totalorder %s53, %s54
      %p68 = scmp.eq.s32.totalorder %s32, 1
      %p69 = por %p67, %p68
      %p71 = scmp.ne.s32.totalorder %s54, %s70
      %p72 = scmp.eq.s32.totalorder %s32, 0
      %p73 = por %p71, %p72
      %s74 = ssub.s32 %s33, %s45
      %p75 = scmp.eq.s32.totalorder %s74, 0
      %s77 = sadd.s32 %s76, 1
      %s78 = scalar_select %p75, %s76, %s77
      %p81 = pneg %p75
      %p82 = scmp.eq.s32.totalorder %s26, 1
      %p83 = por %p81, %p82
      %p84 = scmp.ne.s32.totalorder %s76, %s79
      %p85 = scmp.eq.s32.totalorder %s26, 0
      %p86 = por %p84, %p85
      %p87 = scmp.ne.s32.totalorder %s76, %s79
      %p88 = scmp.eq.s32.totalorder %s31, 1
      %p89 = por %p87, %p88
      %p90 = scmp.ne.s32.totalorder %s79, %s80
      %p91 = scmp.eq.s32.totalorder %s31, 0
      %p92 = por %p90, %p91
      %p93 = scmp.ne.s32.totalorder %s79, %s80
      %p94 = scmp.eq.s32.totalorder %s32, 1
      %p95 = por %p93, %p94
      %p97 = scmp.ne.s32.totalorder %s80, %s96
      %p98 = scmp.eq.s32.totalorder %s32, 0
      %p99 = por %p97, %p98
      %s101 = sadd.s32 %s100, 1
      %p104 = scmp.eq.s32.totalorder %s26, 1
      %p105 = scmp.ne.s32.totalorder %s100, %s102
      %p106 = scmp.eq.s32.totalorder %s26, 0
      %p107 = por %p105, %p106
      %p108 = scmp.ne.s32.totalorder %s100, %s102
      %p109 = scmp.eq.s32.totalorder %s31, 1
      %p110 = por %p108, %p109
      %p111 = scmp.ne.s32.totalorder %s102, %s103
      %p112 = scmp.eq.s32.totalorder %s31, 0
      %p113 = por %p111, %p112
      %p114 = scmp.ne.s32.totalorder %s102, %s103
      %p115 = scmp.eq.s32.totalorder %s32, 1
      %p116 = por %p114, %p115
      %p118 = scmp.ne.s32.totalorder %s103, %s117
      %p119 = scmp.eq.s32.totalorder %s32, 0
      %p120 = por %p118, %p119
      %s122 = sadd.s32 %s121, 1
      %p125 = scmp.eq.s32.totalorder %s26, 1
      %p126 = scmp.ne.s32.totalorder %s121, %s123
      %p127 = scmp.eq.s32.totalorder %s26, 0
      %p128 = por %p126, %p127
      %p129 = scmp.ne.s32.totalorder %s121, %s123
      %p130 = scmp.eq.s32.totalorder %s31, 1
      %p131 = por %p129, %p130
      %p132 = scmp.ne.s32.totalorder %s123, %s124
      %p133 = scmp.eq.s32.totalorder %s31, 0
      %p134 = por %p132, %p133
      %p135 = scmp.ne.s32.totalorder %s123, %s124
      %p136 = scmp.eq.s32.totalorder %s32, 1
      %p137 = por %p135, %p136
      %p139 = scmp.ne.s32.totalorder %s124, %s138
      %p140 = scmp.eq.s32.totalorder %s32, 0
      %p141 = por %p139, %p140
      %s143 = sadd.s32 %s142, 1
      %p146 = scmp.eq.s32.totalorder %s26, 1
      %p147 = scmp.ne.s32.totalorder %s142, %s144
      %p148 = scmp.eq.s32.totalorder %s26, 0
      %p149 = por %p147, %p148
      %p150 = scmp.ne.s32.totalorder %s142, %s144
      %p151 = scmp.eq.s32.totalorder %s31, 1
      %p152 = por %p150, %p151
      %p153 = scmp.ne.s32.totalorder %s144, %s145
      %p154 = scmp.eq.s32.totalorder %s31, 0
      %p155 = por %p153, %p154
      %p156 = scmp.ne.s32.totalorder %s144, %s145
      %p157 = scmp.eq.s32.totalorder %s32, 1
      %p158 = por %p156, %p157
      %p160 = scmp.ne.s32.totalorder %s145, %s159
      %p161 = scmp.eq.s32.totalorder %s32, 0
      %p162 = por %p160, %p161
      %s164 = sadd.s32 %s163, 1
      %p167 = scmp.eq.s32.totalorder %s26, 1
      %p168 = scmp.ne.s32.totalorder %s163, %s165
      %p169 = scmp.eq.s32.totalorder %s26, 0
      %p170 = por %p168, %p169
      %p171 = scmp.ne.s32.totalorder %s163, %s165
      %p172 = scmp.eq.s32.totalorder %s31, 1
      %p173 = por %p171, %p172
      %p174 = scmp.ne.s32.totalorder %s165, %s166
      %p175 = scmp.eq.s32.totalorder %s31, 0
      %p176 = por %p174, %p175
      %p177 = scmp.ne.s32.totalorder %s165, %s166
      %p178 = scmp.eq.s32.totalorder %s32, 1
      %p179 = por %p177, %p178
      %p181 = scmp.ne.s32.totalorder %s166, %s180
      %p182 = scmp.eq.s32.totalorder %s32, 0
      %p183 = por %p181, %p182
      %s185 = sadd.s32 %s184, 1
      %p188 = scmp.eq.s32.totalorder %s26, 1
      %p189 = scmp.ne.s32.totalorder %s184, %s186
      %p190 = scmp.eq.s32.totalorder %s26, 0
      %p191 = por %p189, %p190
      %p192 = scmp.ne.s32.totalorder %s184, %s186
      %p193 = scmp.eq.s32.totalorder %s31, 1
      %p194 = por %p192, %p193
      %p195 = scmp.ne.s32.totalorder %s186, %s187
      %p196 = scmp.eq.s32.totalorder %s31, 0
      %p197 = por %p195, %p196
      %p198 = scmp.ne.s32.totalorder %s186, %s187
      %p199 = scmp.eq.s32.totalorder %s32, 1
      %p200 = por %p198, %p199
      %p202 = scmp.ne.s32.totalorder %s187, %s201
      %p203 = scmp.eq.s32.totalorder %s32, 0
      %p204 = por %p202, %p203
      %s206 = sadd.s32 %s205, 1
      %p209 = scmp.eq.s32.totalorder %s26, 1
      %p210 = scmp.ne.s32.totalorder %s205, %s207
      %p211 = scmp.eq.s32.totalorder %s26, 0
      %p212 = por %p210, %p211
      %p213 = scmp.ne.s32.totalorder %s205, %s207
      %p214 = scmp.eq.s32.totalorder %s31, 1
      %p215 = por %p213, %p214
      %p216 = scmp.ne.s32.totalorder %s207, %s208
      %p217 = scmp.eq.s32.totalorder %s31, 0
      %p218 = por %p216, %p217
      %p219 = scmp.ne.s32.totalorder %s207, %s208
      %p220 = scmp.eq.s32.totalorder %s32, 1
      %p221 = por %p219, %p220
      %p223 = scmp.ne.s32.totalorder %s208, %s222
      %p224 = scmp.eq.s32.totalorder %s32, 0
      %p225 = por %p223, %p224
      %s227 = sadd.s32 %s226, 1
      %p230 = scmp.eq.s32.totalorder %s26, 1
      %p231 = scmp.ne.s32.totalorder %s226, %s228
      %p232 = scmp.eq.s32.totalorder %s26, 0
      %p233 = por %p231, %p232
      %p234 = scmp.ne.s32.totalorder %s226, %s228
      %p235 = scmp.eq.s32.totalorder %s31, 1
      %p236 = por %p234, %p235
      %p237 = scmp.ne.s32.totalorder %s228, %s229
      %p238 = scmp.eq.s32.totalorder %s31, 0
      %p239 = por %p237, %p238
      %p240 = scmp.ne.s32.totalorder %s228, %s229
      %p241 = scmp.eq.s32.totalorder %s32, 1
      %p242 = por %p240, %p241
      %p244 = scmp.ne.s32.totalorder %s229, %s243
      %p245 = scmp.eq.s32.totalorder %s32, 0
      %p246 = por %p244, %p245
      %s248 = sadd.s32 %s247, 1
      %p251 = scmp.eq.s32.totalorder %s26, 1
      %p252 = scmp.ne.s32.totalorder %s247, %s249
      %p253 = scmp.eq.s32.totalorder %s26, 0
      %p254 = por %p252, %p253
      %p255 = scmp.ne.s32.totalorder %s247, %s249
      %p256 = scmp.eq.s32.totalorder %s31, 1
      %p257 = por %p255, %p256
      %p258 = scmp.ne.s32.totalorder %s249, %s250
      %p259 = scmp.eq.s32.totalorder %s31, 0
      %p260 = por %p258, %p259
      %p261 = scmp.ne.s32.totalorder %s249, %s250
      %p262 = scmp.eq.s32.totalorder %s32, 1
      %p263 = por %p261, %p262
      %p265 = scmp.ne.s32.totalorder %s250, %s264
      %p266 = scmp.eq.s32.totalorder %s32, 0
      %p267 = por %p265, %p266
      %s268 = ssub.s32 %s33, %s45
      %s269 = ssub.s32 %s34, %s41
      %s270 = sor.u32 %s268, %s269
      %p271 = scmp.eq.s32.totalorder %s270, 0
      %s273 = sadd.s32 %s272, 1
      %s274 = scalar_select %p271, %s272, %s273
      %p277 = pneg %p271
      %p278 = scmp.eq.s32.totalorder %s26, 1
      %p279 = por %p277, %p278
      %p280 = scmp.ne.s32.totalorder %s272, %s275
      %p281 = scmp.eq.s32.totalorder %s26, 0
      %p282 = por %p280, %p281
      %p283 = scmp.ne.s32.totalorder %s272, %s275
      %p284 = scmp.eq.s32.totalorder %s31, 1
      %p285 = por %p283, %p284
      %p286 = scmp.ne.s32.totalorder %s275, %s276
      %p287 = scmp.eq.s32.totalorder %s31, 0
      %p288 = por %p286, %p287
      %p289 = scmp.ne.s32.totalorder %s275, %s276
      %p290 = scmp.eq.s32.totalorder %s32, 1
      %p291 = por %p289, %p290
      %p293 = scmp.ne.s32.totalorder %s276, %s292
      %p294 = scmp.eq.s32.totalorder %s32, 0
      %p295 = por %p293, %p294
      %p296 = scmp.le.s32.totalorder 1, %s26
      %p297 = scmp.lt.s32.totalorder %s26, 3
      %p298 = pnand %p296, %p297
      %p299 = pneg %p298
      // Predicated region
      $region9: #{tpu_custom_call.1} parent=5 // pred_check
        _
      $region10: #{tpu_custom_call.1} parent=5 // pred_check_branch
        %301 = sbr.rel (%p298) target = $region12
      $region11: #{tpu_custom_call.1} parent=5 // pred_region
        %s302 = ssub.s32 %s26, 1
        // Predicated region
        $region13: #{tpu_custom_call.1} parent=11 // pred_check
          %p303 = pneg %p113
        $region14: #{tpu_custom_call.1} parent=11 // pred_check_branch
          %305 = sbr.rel (%p303) target = $region16
        $region15: #{tpu_custom_call.1} parent=11 // pred_region
          %s307 = ssub.s32 512, 512
          %308 = vsyncadd [#allocation9], %s307
          %s309 = sshll.u32 [#allocation10], 4
          %s310 = int_to_ptr.vmem [resolvable:$true] %s309
          %315 = dma.hbm_to_vmem [thread:$0]  %s2, 512, %s310, [#allocation9], 128, 128, 8
        $region16: #{tpu_custom_call.1} parent=11 // pred_fallthru
          _
        // Predicated region
        $region17: #{tpu_custom_call.1} parent=11 // pred_check
          %p316 = pneg %p134
        $region18: #{tpu_custom_call.1} parent=11 // pred_check_branch
          %318 = sbr.rel (%p316) target = $region20
        $region19: #{tpu_custom_call.1} parent=11 // pred_region
          _
        $region20: #{tpu_custom_call.1} parent=11 // pred_fallthru
          _
        // Predicated region
        $region21: #{tpu_custom_call.1} parent=11 // pred_check
          %p319 = pneg %p155
        $region22: #{tpu_custom_call.1} parent=11 // pred_check_branch
          %321 = sbr.rel (%p319) target = $region24
        $region23: #{tpu_custom_call.1} parent=11 // pred_region
          %s323 = ssub.s32 256, 256
          %324 = vsyncadd [#allocation12], %s323
          %s325 = sshll.u32 [#allocation11], 4
          %s326 = int_to_ptr.vmem [resolvable:$true] %s325
          %331 = dma.hbm_to_vmem [thread:$0]  %s4, 256, %s326, [#allocation12], 128, 128, 8
        $region24: #{tpu_custom_call.1} parent=11 // pred_fallthru
          _
        // Predicated region
        $region25: #{tpu_custom_call.1} parent=11 // pred_check
          %p332 = pneg %p176
        $region26: #{tpu_custom_call.1} parent=11 // pred_check_branch
          %334 = sbr.rel (%p332) target = $region28
        $region27: #{tpu_custom_call.1} parent=11 // pred_region
          _
        $region28: #{tpu_custom_call.1} parent=11 // pred_fallthru
          _
        // Predicated region
        $region29: #{tpu_custom_call.1} parent=11 // pred_check
          %p335 = pneg %p197
        $region30: #{tpu_custom_call.1} parent=11 // pred_check_branch
          %337 = sbr.rel (%p335) target = $region32
        $region31: #{tpu_custom_call.1} parent=11 // pred_region
          _
        $region32: #{tpu_custom_call.1} parent=11 // pred_fallthru
          _
        // Predicated region
        $region33: #{tpu_custom_call.1} parent=11 // pred_check
          %p338 = pneg %p218
        $region34: #{tpu_custom_call.1} parent=11 // pred_check_branch
          %340 = sbr.rel (%p338) target = $region36
        $region35: #{tpu_custom_call.1} parent=11 // pred_region
          _
        $region36: #{tpu_custom_call.1} parent=11 // pred_fallthru
          _
        // Predicated region
        $region37: #{tpu_custom_call.1} parent=11 // pred_check
          %p341 = pneg %p239
        $region38: #{tpu_custom_call.1} parent=11 // pred_check_branch
          %343 = sbr.rel (%p341) target = $region40
        $region39: #{tpu_custom_call.1} parent=11 // pred_region
          %s345 = ssub.s32 512, 512
          %346 = vsyncadd [#allocation12], %s345
          %s347 = sshll.u32 [#allocation13], 4
          %s348 = int_to_ptr.vmem [resolvable:$true] %s347
          %353 = dma.hbm_to_vmem [thread:$0]  %s8, 512, %s348, [#allocation12], 128, 128, 8
        $region40: #{tpu_custom_call.1} parent=11 // pred_fallthru
          _
        // Predicated region
        $region41: #{tpu_custom_call.1} parent=11 // pred_check
          %p354 = pneg %p260
        $region42: #{tpu_custom_call.1} parent=11 // pred_check_branch
          %356 = sbr.rel (%p354) target = $region44
        $region43: #{tpu_custom_call.1} parent=11 // pred_region
          _
        $region44: #{tpu_custom_call.1} parent=11 // pred_fallthru
          _
      $region12: #{tpu_custom_call.1} parent=5 // pred_fallthru
        _
      %p357 = scmp.lt.s32.totalorder %s26, 2
      // Predicated region
      $region45: #{tpu_custom_call.1} parent=5 // pred_check
        %p358 = pneg %p357
      $region46: #{tpu_custom_call.1} parent=5 // pred_check_branch
        %360 = sbr.rel (%p358) target = $region48
      $region47: #{tpu_custom_call.1} parent=5 // pred_region
        // Predicated region
        $region49: #{tpu_custom_call.1} parent=47 // pred_check
          %p361 = pneg %p60
        $region50: #{tpu_custom_call.1} parent=47 // pred_check_branch
          %363 = sbr.rel (%p361) target = $region52
        $region51: #{tpu_custom_call.1} parent=47 // pred_region
          %s364 = sand.u32 %s50, 1
          %s365 = scalar_lea.sflag [#allocation6], %s364
          %s366 = sand.u32 %s50, 1
          %s367 = smul.addr %s366, 8
          %s368 = scalar_lea.vmem [#allocation5], %s367
          %s370 = ssub.s32 128, 128
          %371 = vsyncadd %s365, %s370
          %s372 = sadd.s32 %s34, %s33
          %s373 = smul.addr %s372, 128
          %s374 = scalar_lea.hbm %s0, %s373
          %s376 = sshll.u32 %s368, 4
          %s377 = int_to_ptr.vmem [resolvable:$true] %s376
          %379 = dma.hbm_to_vmem [thread:$0]  %s374, 128, %s377, %s365
        $region52: #{tpu_custom_call.1} parent=47 // pred_fallthru
          _
        // Predicated region
        $region53: #{tpu_custom_call.1} parent=47 // pred_check
          %p380 = pneg %p86
        $region54: #{tpu_custom_call.1} parent=47 // pred_check_branch
          %382 = sbr.rel (%p380) target = $region56
        $region55: #{tpu_custom_call.1} parent=47 // pred_region
          %s383 = sand.u32 %s26, 1
          %s384 = scalar_lea.sflag [#allocation9], %s383
          %s385 = sand.u32 %s76, 1
          %s386 = smul.addr %s385, 8
          %s387 = scalar_lea.vmem [#allocation8], %s386
          %s389 = ssub.s32 128, 128
          %390 = vsyncadd %s384, %s389
          %s391 = smul.addr %s33, 128
          %s392 = scalar_lea.hbm %s1, %s391
          %s394 = sshll.u32 %s387, 4
          %s395 = int_to_ptr.vmem [resolvable:$true] %s394
          %397 = dma.hbm_to_vmem [thread:$0]  %s392, 128, %s395, %s384
        $region56: #{tpu_custom_call.1} parent=47 // pred_fallthru
          _
      $region48: #{tpu_custom_call.1} parent=5 // pred_fallthru
        _
      %p398 = scmp.le.s32.totalorder 1, %s26
      %p399 = scmp.lt.s32.totalorder %s26, 3
      %p400 = pnand %p398, %p399
      %p401 = pneg %p400
      // Predicated region
      $region57: #{tpu_custom_call.1} parent=5 // pred_check
        _
      $region58: #{tpu_custom_call.1} parent=5 // pred_check_branch
        %403 = sbr.rel (%p400) target = $region60
      $region59: #{tpu_custom_call.1} parent=5 // pred_region
        %s404 = ssub.s32 %s26, 1
        %s405 = sand.u32 %s53, 1
        %s406 = scalar_lea.sflag [#allocation6], %s405
        %s407 = sand.u32 %s53, 1
        %s408 = smul.addr %s407, 8
        %s409 = scalar_lea.vmem [#allocation5], %s408
        // Predicated region
        $region61: #{tpu_custom_call.1} parent=59 // pred_check
          %p410 = pneg %p66
        $region62: #{tpu_custom_call.1} parent=59 // pred_check_branch
          %412 = sbr.rel (%p410) target = $region64
        $region63: #{tpu_custom_call.1} parent=59 // pred_region
          %413 = dma.done %s406, 128
        $region64: #{tpu_custom_call.1} parent=59 // pred_fallthru
          _
        %s414 = sand.u32 %s31, 1
        %s415 = scalar_lea.sflag [#allocation9], %s414
        %s416 = sand.u32 %s79, 1
        %s417 = smul.addr %s416, 8
        %s418 = scalar_lea.vmem [#allocation8], %s417
        // Predicated region
        $region65: #{tpu_custom_call.1} parent=59 // pred_check
          %p419 = pneg %p92
        $region66: #{tpu_custom_call.1} parent=59 // pred_check_branch
          %421 = sbr.rel (%p419) target = $region68
        $region67: #{tpu_custom_call.1} parent=59 // pred_region
          %422 = dma.done %s415, 128
        $region68: #{tpu_custom_call.1} parent=59 // pred_fallthru
          _
        // Predicated region
        $region69: #{tpu_custom_call.1} parent=59 // pred_check
          %p423 = pneg %p113
        $region70: #{tpu_custom_call.1} parent=59 // pred_check_branch
          %425 = sbr.rel (%p423) target = $region72
        $region71: #{tpu_custom_call.1} parent=59 // pred_region
          %426 = dma.done [#allocation9], 512
        $region72: #{tpu_custom_call.1} parent=59 // pred_fallthru
          _
        // Predicated region
        $region73: #{tpu_custom_call.1} parent=59 // pred_check
          %p427 = pneg %p155
        $region74: #{tpu_custom_call.1} parent=59 // pred_check_branch
          %429 = sbr.rel (%p427) target = $region76
        $region75: #{tpu_custom_call.1} parent=59 // pred_region
          %430 = dma.done [#allocation12], 256
        $region76: #{tpu_custom_call.1} parent=59 // pred_fallthru
          _
        // Predicated region
        $region77: #{tpu_custom_call.1} parent=59 // pred_check
          %p431 = pneg %p239
        $region78: #{tpu_custom_call.1} parent=59 // pred_check_branch
          %433 = sbr.rel (%p431) target = $region80
        $region79: #{tpu_custom_call.1} parent=59 // pred_region
          %434 = dma.done [#allocation12], 512
        $region80: #{tpu_custom_call.1} parent=59 // pred_fallthru
          _
        %s435 = sand.u32 %s53, 1
        %s436 = scalar_lea.sflag [#allocation6], %s435
        %s437 = sand.u32 %s53, 1
        %s438 = smul.addr %s437, 8
        %s439 = scalar_lea.vmem [#allocation5], %s438
        %p440 = pneg %p66
        %p441 = pneg %p63
        %s442 = sand.u32 %s31, 1
        %s443 = scalar_lea.sflag [#allocation9], %s442
        %s444 = sand.u32 %s79, 1
        %s445 = smul.addr %s444, 8
        %s446 = scalar_lea.vmem [#allocation8], %s445
        %p447 = pneg %p92
        %p448 = pneg %p89
        %p449 = pneg %p113
        %p450 = pneg %p110
        %p451 = pneg %p134
        %p452 = pneg %p131
        %p453 = pneg %p155
        %p454 = pneg %p152
        %p455 = pneg %p176
        %p456 = pneg %p173
        %p457 = pneg %p197
        %p458 = pneg %p194
        %p459 = pneg %p218
        %p460 = pneg %p215
        %p461 = pneg %p239
        %p462 = pneg %p236
        %p463 = pneg %p260
        %p464 = pneg %p257
        %p465 = pneg %p288
        %p466 = pneg %p285
        %s467 = sand.u32 %s275, 1
        %s468 = scalar_lea.sflag [#allocation7], %s467
        %s469 = sand.u32 %s275, 1
        %s470 = smul.addr %s469, 8
        %s471 = scalar_lea.vmem [#allocation14], %s470
        %p472 = scmp.eq.s32.totalorder %s36, 0
        // Predicated region
        $region81: #{tpu_custom_call.1} parent=59 // pred_check
          %p473 = pneg %p472
        $region82: #{tpu_custom_call.1} parent=59 // pred_check_branch
          %475 = sbr.rel (%p473) target = $region84
        $region83: #{tpu_custom_call.1} parent=59 // pred_region
          %v476 = vld [vmem:[%s418] sm:$0xff]
          %v477 = vld [vmem:[#allocation11] sm:$0xff]
          %v478 = vld [vmem:[#allocation11 + $0x8] sm:$0xff]
          %v479 = vld [vmem:[%s5] sm:$0x1]
          %v481 = vlaneseq
          %v482 = vshrl.u32 %v481, 7
          %v483 = vsub.s32 0, %v482
          %v484 = vrot.slane %v479, %v483
          %vm486 = vcmask 130048
          %v488 = vsel %vm486, %v476, 0
          %490 = vmatprep.subr.mxu0 0.0
          %491 = vmatpush1.msra.mxu0 %v477
          %492 = vmatprep.subr.mxu0 0.0
          %493 = vmatpush1.msra.mxu0 %v478
          %494 = vmatprep.subr.mxu0 0.0
          %495 = vmatpush1.msra.mxu0 0.0
          %496 = vmatprep.subr.mxu0 0.0
          %497 = vmatpush1.msra.mxu0 0.0
          %498 = vmatprep.subr.mxu0 0.0
          %499 = vmatpush1.msra.mxu0 0.0
          %500 = vmatprep.subr.mxu0 0.0
          %501 = vmatpush1.msra.mxu0 0.0
          %502 = vmatprep.subr.mxu0 0.0
          %503 = vmatpush1.msra.mxu0 0.0
          %504 = vmatprep.subr.mxu0 0.0
          %505 = vmatpush1.msra.mxu0 0.0
          %506 = vmatprep.subr.mxu0 0.0
          %507 = vmatpush1.msra.mxu0 0.0
          %508 = vmatprep.subr.mxu0 0.0
          %509 = vmatpush1.msra.mxu0 0.0
          %510 = vmatprep.subr.mxu0 0.0
          %511 = vmatpush1.msra.mxu0 0.0
          %512 = vmatprep.subr.mxu0 0.0
          %513 = vmatpush1.msra.mxu0 0.0
          %514 = vmatprep.subr.mxu0 0.0
          %515 = vmatpush1.msra.mxu0 0.0
          %516 = vmatprep.subr.mxu0 0.0
          %517 = vmatpush1.msra.mxu0 0.0
          %518 = vmatprep.subr.mxu0 0.0
          %519 = vmatpush1.msra.mxu0 0.0
          %520 = vmatprep.subr.mxu0 0.0
          %521 = vmatpush1.msra.mxu0 0.0
          %522 = vmatprep.subr.mxu0 0.0
          %523 = vmatpush1.msra.mxu0 0.0
          %524 = vmatprep.subr.mxu0 0.0
          %525 = vmatpush1.msra.mxu0 0.0
          %526 = vmatprep.subr.mxu0 0.0
          %527 = vmatpush1.msra.mxu0 0.0
          %528 = vmatprep.subr.mxu0 0.0
          %529 = vmatpush1.msra.mxu0 0.0
          %530 = vmatprep.subr.mxu0 0.0
          %531 = vmatpush1.msra.mxu0 0.0
          %532 = vmatprep.subr.mxu0 0.0
          %533 = vmatpush1.msra.mxu0 0.0
          %534 = vmatprep.subr.mxu0 0.0
          %535 = vmatpush1.msra.mxu0 0.0
          %536 = vmatprep.subr.mxu0 0.0
          %537 = vmatpush1.msra.mxu0 0.0
          %538 = vmatprep.subr.mxu0 0.0
          %539 = vmatpush1.msra.mxu0 0.0
          %540 = vmatprep.subr.mxu0 0.0
          %541 = vmatpush1.msra.mxu0 0.0
          %542 = vmatprep.subr.mxu0 0.0
          %543 = vmatpush1.msra.mxu0 0.0
          %544 = vmatprep.subr.mxu0 0.0
          %545 = vmatpush1.msra.mxu0 0.0
          %546 = vmatprep.subr.mxu0 0.0
          %547 = vmatpush1.msra.mxu0 0.0
          %548 = vmatprep.subr.mxu0 0.0
          %549 = vmatpush1.msra.mxu0 0.0
          %550 = vmatprep.subr.mxu0 0.0
          %551 = vmatpush1.msra.mxu0 0.0
          %552 = vmatprep.subr.mxu0 0.0
          %553 = vmatpush1.msra.mxu0 0.0
          %554 = vmatprep.mubr.f32.mxu0 0.0
          %555 = vmatmul.mubr.f32.gmra.mrb[0].mxu0 %v488
          %v556 = vpop.f32.mrb[0].mxu0
          %v557 = vadd.f32 %v484, %v556
          %v558 = vpop.f32.mrb[0].mxu0
          %559 = vdwg.mxu0
          %v560 = vld [vmem:[%s6] sm:$0xff]
          %v561 = vld [vmem:[%s6 + $0x8] sm:$0xff]
          %v562 = vld [vmem:[%s7] sm:$0x1]
          %v564 = vlaneseq
          %v565 = vshrl.u32 %v564, 7
          %v566 = vsub.s32 0, %v565
          %v567 = vrot.slane %v562, %v566
          %569 = vmatprep.subr.mxu0 0.0
          %570 = vmatpush1.msra.mxu0 %v560
          %571 = vmatprep.subr.mxu0 0.0
          %572 = vmatpush1.msra.mxu0 %v561
          %573 = vmatprep.subr.mxu0 0.0
          %574 = vmatpush1.msra.mxu0 0.0
          %575 = vmatprep.subr.mxu0 0.0
          %576 = vmatpush1.msra.mxu0 0.0
          %577 = vmatprep.subr.mxu0 0.0
          %578 = vmatpush1.msra.mxu0 0.0
          %579 = vmatprep.subr.mxu0 0.0
          %580 = vmatpush1.msra.mxu0 0.0
          %581 = vmatprep.subr.mxu0 0.0
          %582 = vmatpush1.msra.mxu0 0.0
          %583 = vmatprep.subr.mxu0 0.0
          %584 = vmatpush1.msra.mxu0 0.0
          %585 = vmatprep.subr.mxu0 0.0
          %586 = vmatpush1.msra.mxu0 0.0
          %587 = vmatprep.subr.mxu0 0.0
          %588 = vmatpush1.msra.mxu0 0.0
          %589 = vmatprep.subr.mxu0 0.0
          %590 = vmatpush1.msra.mxu0 0.0
          %591 = vmatprep.subr.mxu0 0.0
          %592 = vmatpush1.msra.mxu0 0.0
          %593 = vmatprep.subr.mxu0 0.0
          %594 = vmatpush1.msra.mxu0 0.0
          %595 = vmatprep.subr.mxu0 0.0
          %596 = vmatpush1.msra.mxu0 0.0
          %597 = vmatprep.subr.mxu0 0.0
          %598 = vmatpush1.msra.mxu0 0.0
          %599 = vmatprep.subr.mxu0 0.0
          %600 = vmatpush1.msra.mxu0 0.0
          %601 = vmatprep.subr.mxu0 0.0
          %602 = vmatpush1.msra.mxu0 0.0
          %603 = vmatprep.subr.mxu0 0.0
          %604 = vmatpush1.msra.mxu0 0.0
          %605 = vmatprep.subr.mxu0 0.0
          %606 = vmatpush1.msra.mxu0 0.0
          %607 = vmatprep.subr.mxu0 0.0
          %608 = vmatpush1.msra.mxu0 0.0
          %609 = vmatprep.subr.mxu0 0.0
          %610 = vmatpush1.msra.mxu0 0.0
          %611 = vmatprep.subr.mxu0 0.0
          %612 = vmatpush1.msra.mxu0 0.0
          %613 = vmatprep.subr.mxu0 0.0
          %614 = vmatpush1.msra.mxu0 0.0
          %615 = vmatprep.subr.mxu0 0.0
          %616 = vmatpush1.msra.mxu0 0.0
          %617 = vmatprep.subr.mxu0 0.0
          %618 = vmatpush1.msra.mxu0 0.0
          %619 = vmatprep.subr.mxu0 0.0
          %620 = vmatpush1.msra.mxu0 0.0
          %621 = vmatprep.subr.mxu0 0.0
          %622 = vmatpush1.msra.mxu0 0.0
          %623 = vmatprep.subr.mxu0 0.0
          %624 = vmatpush1.msra.mxu0 0.0
          %625 = vmatprep.subr.mxu0 0.0
          %626 = vmatpush1.msra.mxu0 0.0
          %627 = vmatprep.subr.mxu0 0.0
          %628 = vmatpush1.msra.mxu0 0.0
          %629 = vmatprep.subr.mxu0 0.0
          %630 = vmatpush1.msra.mxu0 0.0
          %631 = vmatprep.subr.mxu0 0.0
          %632 = vmatpush1.msra.mxu0 0.0
          %633 = vmatprep.mubr.f32.mxu0 0.0
          %634 = vmatmul.mubr.f32.gmra.mrb[0].mxu0 %v488
          %v635 = vpop.f32.mrb[0].mxu0
          %v636 = vadd.f32 %v567, %v635
          %v637 = vpop.f32.mrb[0].mxu0
          %638 = vdwg.mxu0
          %vm639 = vcmask 261120
          %640 = vst.msk [vmem:[#allocation2] sm:$0xff] %vm639, %v557
          %641 = vst.msk [vmem:[#allocation3] sm:$0xff] %vm639, %v636
        $region84: #{tpu_custom_call.1} parent=59 // pred_fallthru
          _
        %v642 = vld [vmem:[%s409] sm:$0xff]
        %v643 = vld [vmem:[#allocation10] sm:$0xff]
        %v644 = vld [vmem:[#allocation10 + $0x8] sm:$0xff]
        %v645 = vld [vmem:[#allocation10 + $0x10] sm:$0xff]
        %v646 = vld [vmem:[#allocation10 + $0x18] sm:$0xff]
        %v647 = vld [vmem:[%s3] sm:$0x1]
        %v649 = vlaneseq
        %v650 = vshrl.u32 %v649, 7
        %v651 = vsub.s32 0, %v650
        %v652 = vrot.slane %v647, %v651
        %vm654 = vcmask 261120
        %v656 = vsel %vm654, %v642, 0
        %658 = vmatprep.subr.mxu0 0.0
        %659 = vmatpush1.msra.mxu0 %v643
        %660 = vmatprep.subr.mxu0 0.0
        %661 = vmatpush1.msra.mxu0 %v644
        %662 = vmatprep.subr.mxu0 0.0
        %663 = vmatpush1.msra.mxu0 %v645
        %664 = vmatprep.subr.mxu0 0.0
        %665 = vmatpush1.msra.mxu0 %v646
        %666 = vmatprep.subr.mxu0 0.0
        %667 = vmatpush1.msra.mxu0 0.0
        %668 = vmatprep.subr.mxu0 0.0
        %669 = vmatpush1.msra.mxu0 0.0
        %670 = vmatprep.subr.mxu0 0.0
        %671 = vmatpush1.msra.mxu0 0.0
        %672 = vmatprep.subr.mxu0 0.0
        %673 = vmatpush1.msra.mxu0 0.0
        %674 = vmatprep.subr.mxu0 0.0
        %675 = vmatpush1.msra.mxu0 0.0
        %676 = vmatprep.subr.mxu0 0.0
        %677 = vmatpush1.msra.mxu0 0.0
        %678 = vmatprep.subr.mxu0 0.0
        %679 = vmatpush1.msra.mxu0 0.0
        %680 = vmatprep.subr.mxu0 0.0
        %681 = vmatpush1.msra.mxu0 0.0
        %682 = vmatprep.subr.mxu0 0.0
        %683 = vmatpush1.msra.mxu0 0.0
        %684 = vmatprep.subr.mxu0 0.0
        %685 = vmatpush1.msra.mxu0 0.0
        %686 = vmatprep.subr.mxu0 0.0
        %687 = vmatpush1.msra.mxu0 0.0
        %688 = vmatprep.subr.mxu0 0.0
        %689 = vmatpush1.msra.mxu0 0.0
        %690 = vmatprep.subr.mxu0 0.0
        %691 = vmatpush1.msra.mxu0 0.0
        %692 = vmatprep.subr.mxu0 0.0
        %693 = vmatpush1.msra.mxu0 0.0
        %694 = vmatprep.subr.mxu0 0.0
        %695 = vmatpush1.msra.mxu0 0.0
        %696 = vmatprep.subr.mxu0 0.0
        %697 = vmatpush1.msra.mxu0 0.0
        %698 = vmatprep.subr.mxu0 0.0
        %699 = vmatpush1.msra.mxu0 0.0
        %700 = vmatprep.subr.mxu0 0.0
        %701 = vmatpush1.msra.mxu0 0.0
        %702 = vmatprep.subr.mxu0 0.0
        %703 = vmatpush1.msra.mxu0 0.0
        %704 = vmatprep.subr.mxu0 0.0
        %705 = vmatpush1.msra.mxu0 0.0
        %706 = vmatprep.subr.mxu0 0.0
        %707 = vmatpush1.msra.mxu0 0.0
        %708 = vmatprep.subr.mxu0 0.0
        %709 = vmatpush1.msra.mxu0 0.0
        %710 = vmatprep.subr.mxu0 0.0
        %711 = vmatpush1.msra.mxu0 0.0
        %712 = vmatprep.subr.mxu0 0.0
        %713 = vmatpush1.msra.mxu0 0.0
        %714 = vmatprep.subr.mxu0 0.0
        %715 = vmatpush1.msra.mxu0 0.0
        %716 = vmatprep.subr.mxu0 0.0
        %717 = vmatpush1.msra.mxu0 0.0
        %718 = vmatprep.subr.mxu0 0.0
        %719 = vmatpush1.msra.mxu0 0.0
        %720 = vmatprep.subr.mxu0 0.0
        %721 = vmatpush1.msra.mxu0 0.0
        %722 = vmatprep.mubr.f32.mxu0 0.0
        %723 = vmatmul.mubr.f32.gmra.mrb[0].mxu0 %v656
        %v724 = vpop.f32.mrb[0].mxu0
        %v725 = vadd.f32 %v652, %v724
        %v726 = vpop.f32.mrb[0].mxu0
        %727 = vdwg.mxu0
        %v728 = vld [vmem:[#allocation2] sm:$0xff]
        %v729 = vld [vmem:[#allocation3] sm:$0xff]
        %vm730 = vcmask 64512
        %v732 = vsel %vm730, %v725, 0
        %v735 = vsel %vm730, %v728, 0
        %737 = vmatprep.subr.mxu0 0.0
        %738 = vmatpush1.xpose.msra.mxu0 %v735
        %739 = vmatprep.subr.mxu0 0.0
        %740 = vmatpush1.xpose.msra.mxu0 0.0
        %741 = vmatprep.subr.mxu0 0.0
        %742 = vmatpush1.xpose.msra.mxu0 0.0
        %743 = vmatprep.subr.mxu0 0.0
        %744 = vmatpush1.xpose.msra.mxu0 0.0
        %745 = vmatprep.subr.mxu0 0.0
        %746 = vmatpush1.xpose.msra.mxu0 0.0
        %747 = vmatprep.subr.mxu0 0.0
        %748 = vmatpush1.xpose.msra.mxu0 0.0
        %749 = vmatprep.subr.mxu0 0.0
        %750 = vmatpush1.xpose.msra.mxu0 0.0
        %751 = vmatprep.subr.mxu0 0.0
        %752 = vmatpush1.xpose.msra.mxu0 0.0
        %753 = vmatprep.subr.mxu0 0.0
        %754 = vmatpush1.xpose.msra.mxu0 0.0
        %755 = vmatprep.subr.mxu0 0.0
        %756 = vmatpush1.xpose.msra.mxu0 0.0
        %757 = vmatprep.subr.mxu0 0.0
        %758 = vmatpush1.xpose.msra.mxu0 0.0
        %759 = vmatprep.subr.mxu0 0.0
        %760 = vmatpush1.xpose.msra.mxu0 0.0
        %761 = vmatprep.subr.mxu0 0.0
        %762 = vmatpush1.xpose.msra.mxu0 0.0
        %763 = vmatprep.subr.mxu0 0.0
        %764 = vmatpush1.xpose.msra.mxu0 0.0
        %765 = vmatprep.subr.mxu0 0.0
        %766 = vmatpush1.xpose.msra.mxu0 0.0
        %767 = vmatprep.subr.mxu0 0.0
        %768 = vmatpush1.xpose.msra.mxu0 0.0
        %769 = vmatprep.subr.mxu0 0.0
        %770 = vmatpush1.xpose.msra.mxu0 0.0
        %771 = vmatprep.subr.mxu0 0.0
        %772 = vmatpush1.xpose.msra.mxu0 0.0
        %773 = vmatprep.subr.mxu0 0.0
        %774 = vmatpush1.xpose.msra.mxu0 0.0
        %775 = vmatprep.subr.mxu0 0.0
        %776 = vmatpush1.xpose.msra.mxu0 0.0
        %777 = vmatprep.subr.mxu0 0.0
        %778 = vmatpush1.xpose.msra.mxu0 0.0
        %779 = vmatprep.subr.mxu0 0.0
        %780 = vmatpush1.xpose.msra.mxu0 0.0
        %781 = vmatprep.subr.mxu0 0.0
        %782 = vmatpush1.xpose.msra.mxu0 0.0
        %783 = vmatprep.subr.mxu0 0.0
        %784 = vmatpush1.xpose.msra.mxu0 0.0
        %785 = vmatprep.subr.mxu0 0.0
        %786 = vmatpush1.xpose.msra.mxu0 0.0
        %787 = vmatprep.subr.mxu0 0.0
        %788 = vmatpush1.xpose.msra.mxu0 0.0
        %789 = vmatprep.subr.mxu0 0.0
        %790 = vmatpush1.xpose.msra.mxu0 0.0
        %791 = vmatprep.subr.mxu0 0.0
        %792 = vmatpush1.xpose.msra.mxu0 0.0
        %793 = vmatprep.subr.mxu0 0.0
        %794 = vmatpush1.xpose.msra.mxu0 0.0
        %795 = vmatprep.subr.mxu0 0.0
        %796 = vmatpush1.xpose.msra.mxu0 0.0
        %797 = vmatprep.subr.mxu0 0.0
        %798 = vmatpush1.xpose.msra.mxu0 0.0
        %799 = vmatprep.subr.mxu0 0.0
        %800 = vmatpush1.xpose.msra.mxu0 0.0
        %801 = vmatprep.mubr.f32.mxu0 0.0
        %802 = vmatmul.mubr.f32.gmra.mrb[0].mxu0 %v732
        %v803 = vpop.f32.mrb[0].mxu0
        %v804 = vadd.f32 0.0, %v803
        %v805 = vpop.f32.mrb[0].mxu0
        %806 = vdwg.mxu0
        %v807 = vsel %vm730, %v804, -inf
        %808 = vmax.xlane.f32.xlu0 %v807
        %v809 = vpop.xlane.xlu0 %808
        %v810 = vsub.f32 %v804, %v809
        %v811 = vmul.f32 %v810, 1.442695
        %v812 = vpow.pop %v811
        %v813 = vsel %vm730, %v812, 0.0
        %814 = vadd.xlane.f32.xlu0 %v813
        %v815 = vpop.xlane.xlu0 %814
        %v816 = vrcp.pop %v815
        %v817 = vmul.f32 %v812, %v816
        %v819 = vsel %vm730, %v817, 0
        %821 = vmatprep.subr.mxu0 0.0
        %822 = vmatpush1.msra.mxu0 %v729
        %823 = vmatprep.subr.mxu0 0.0
        %824 = vmatpush1.msra.mxu0 0.0
        %825 = vmatprep.subr.mxu0 0.0
        %826 = vmatpush1.msra.mxu0 0.0
        %827 = vmatprep.subr.mxu0 0.0
        %828 = vmatpush1.msra.mxu0 0.0
        %829 = vmatprep.subr.mxu0 0.0
        %830 = vmatpush1.msra.mxu0 0.0
        %831 = vmatprep.subr.mxu0 0.0
        %832 = vmatpush1.msra.mxu0 0.0
        %833 = vmatprep.subr.mxu0 0.0
        %834 = vmatpush1.msra.mxu0 0.0
        %835 = vmatprep.subr.mxu0 0.0
        %836 = vmatpush1.msra.mxu0 0.0
        %837 = vmatprep.subr.mxu0 0.0
        %838 = vmatpush1.msra.mxu0 0.0
        %839 = vmatprep.subr.mxu0 0.0
        %840 = vmatpush1.msra.mxu0 0.0
        %841 = vmatprep.subr.mxu0 0.0
        %842 = vmatpush1.msra.mxu0 0.0
        %843 = vmatprep.subr.mxu0 0.0
        %844 = vmatpush1.msra.mxu0 0.0
        %845 = vmatprep.subr.mxu0 0.0
        %846 = vmatpush1.msra.mxu0 0.0
        %847 = vmatprep.subr.mxu0 0.0
        %848 = vmatpush1.msra.mxu0 0.0
        %849 = vmatprep.subr.mxu0 0.0
        %850 = vmatpush1.msra.mxu0 0.0
        %851 = vmatprep.subr.mxu0 0.0
        %852 = vmatpush1.msra.mxu0 0.0
        %853 = vmatprep.subr.mxu0 0.0
        %854 = vmatpush1.msra.mxu0 0.0
        %855 = vmatprep.subr.mxu0 0.0
        %856 = vmatpush1.msra.mxu0 0.0
        %857 = vmatprep.subr.mxu0 0.0
        %858 = vmatpush1.msra.mxu0 0.0
        %859 = vmatprep.subr.mxu0 0.0
        %860 = vmatpush1.msra.mxu0 0.0
        %861 = vmatprep.subr.mxu0 0.0
        %862 = vmatpush1.msra.mxu0 0.0
        %863 = vmatprep.subr.mxu0 0.0
        %864 = vmatpush1.msra.mxu0 0.0
        %865 = vmatprep.subr.mxu0 0.0
        %866 = vmatpush1.msra.mxu0 0.0
        %867 = vmatprep.subr.mxu0 0.0
        %868 = vmatpush1.msra.mxu0 0.0
        %869 = vmatprep.subr.mxu0 0.0
        %870 = vmatpush1.msra.mxu0 0.0
        %871 = vmatprep.subr.mxu0 0.0
        %872 = vmatpush1.msra.mxu0 0.0
        %873 = vmatprep.subr.mxu0 0.0
        %874 = vmatpush1.msra.mxu0 0.0
        %875 = vmatprep.subr.mxu0 0.0
        %876 = vmatpush1.msra.mxu0 0.0
        %877 = vmatprep.subr.mxu0 0.0
        %878 = vmatpush1.msra.mxu0 0.0
        %879 = vmatprep.subr.mxu0 0.0
        %880 = vmatpush1.msra.mxu0 0.0
        %881 = vmatprep.subr.mxu0 0.0
        %882 = vmatpush1.msra.mxu0 0.0
        %883 = vmatprep.subr.mxu0 0.0
        %884 = vmatpush1.msra.mxu0 0.0
        %885 = vmatprep.mubr.f32.mxu0 0.0
        %886 = vmatmul.mubr.f32.gmra.mrb[0].mxu0 %v819
        %v887 = vpop.f32.mrb[0].mxu0
        %v888 = vadd.f32 0.0, %v887
        %v889 = vpop.f32.mrb[0].mxu0
        %890 = vdwg.mxu0
        %891 = vst.msk [vmem:[#allocation4] sm:$0xff] %vm730, %v888
        %892 = vrot.lane.b32.xlu0 %v725, 120
        %v893 = vpop.permute.xlu0 %892
        %894 = vrot.lane.b32.xlu0 %v728, 120
        %v895 = vpop.permute.xlu0 %894
        %v896 = vsel %vm730, %v893, 0
        %v898 = vsel %vm730, %v895, 0
        %900 = vmatprep.subr.mxu0 0.0
        %901 = vmatpush1.xpose.msra.mxu0 %v898
        %902 = vmatprep.subr.mxu0 0.0
        %903 = vmatpush1.xpose.msra.mxu0 0.0
        %904 = vmatprep.subr.mxu0 0.0
        %905 = vmatpush1.xpose.msra.mxu0 0.0
        %906 = vmatprep.subr.mxu0 0.0
        %907 = vmatpush1.xpose.msra.mxu0 0.0
        %908 = vmatprep.subr.mxu0 0.0
        %909 = vmatpush1.xpose.msra.mxu0 0.0
        %910 = vmatprep.subr.mxu0 0.0
        %911 = vmatpush1.xpose.msra.mxu0 0.0
        %912 = vmatprep.subr.mxu0 0.0
        %913 = vmatpush1.xpose.msra.mxu0 0.0
        %914 = vmatprep.subr.mxu0 0.0
        %915 = vmatpush1.xpose.msra.mxu0 0.0
        %916 = vmatprep.subr.mxu0 0.0
        %917 = vmatpush1.xpose.msra.mxu0 0.0
        %918 = vmatprep.subr.mxu0 0.0
        %919 = vmatpush1.xpose.msra.mxu0 0.0
        %920 = vmatprep.subr.mxu0 0.0
        %921 = vmatpush1.xpose.msra.mxu0 0.0
        %922 = vmatprep.subr.mxu0 0.0
        %923 = vmatpush1.xpose.msra.mxu0 0.0
        %924 = vmatprep.subr.mxu0 0.0
        %925 = vmatpush1.xpose.msra.mxu0 0.0
        %926 = vmatprep.subr.mxu0 0.0
        %927 = vmatpush1.xpose.msra.mxu0 0.0
        %928 = vmatprep.subr.mxu0 0.0
        %929 = vmatpush1.xpose.msra.mxu0 0.0
        %930 = vmatprep.subr.mxu0 0.0
        %931 = vmatpush1.xpose.msra.mxu0 0.0
        %932 = vmatprep.subr.mxu0 0.0
        %933 = vmatpush1.xpose.msra.mxu0 0.0
        %934 = vmatprep.subr.mxu0 0.0
        %935 = vmatpush1.xpose.msra.mxu0 0.0
        %936 = vmatprep.subr.mxu0 0.0
        %937 = vmatpush1.xpose.msra.mxu0 0.0
        %938 = vmatprep.subr.mxu0 0.0
        %939 = vmatpush1.xpose.msra.mxu0 0.0
        %940 = vmatprep.subr.mxu0 0.0
        %941 = vmatpush1.xpose.msra.mxu0 0.0
        %942 = vmatprep.subr.mxu0 0.0
        %943 = vmatpush1.xpose.msra.mxu0 0.0
        %944 = vmatprep.subr.mxu0 0.0
        %945 = vmatpush1.xpose.msra.mxu0 0.0
        %946 = vmatprep.subr.mxu0 0.0
        %947 = vmatpush1.xpose.msra.mxu0 0.0
        %948 = vmatprep.subr.mxu0 0.0
        %949 = vmatpush1.xpose.msra.mxu0 0.0
        %950 = vmatprep.subr.mxu0 0.0
        %951 = vmatpush1.xpose.msra.mxu0 0.0
        %952 = vmatprep.subr.mxu0 0.0
        %953 = vmatpush1.xpose.msra.mxu0 0.0
        %954 = vmatprep.subr.mxu0 0.0
        %955 = vmatpush1.xpose.msra.mxu0 0.0
        %956 = vmatprep.subr.mxu0 0.0
        %957 = vmatpush1.xpose.msra.mxu0 0.0
        %958 = vmatprep.subr.mxu0 0.0
        %959 = vmatpush1.xpose.msra.mxu0 0.0
        %960 = vmatprep.subr.mxu0 0.0
        %961 = vmatpush1.xpose.msra.mxu0 0.0
        %962 = vmatprep.subr.mxu0 0.0
        %963 = vmatpush1.xpose.msra.mxu0 0.0
        %964 = vmatprep.mubr.f32.mxu0 0.0
        %965 = vmatmul.mubr.f32.gmra.mrb[0].mxu0 %v896
        %v966 = vpop.f32.mrb[0].mxu0
        %v967 = vadd.f32 0.0, %v966
        %v968 = vpop.f32.mrb[0].mxu0
        %969 = vdwg.mxu0
        %v970 = vsel %vm730, %v967, -inf
        %971 = vmax.xlane.f32.xlu0 %v970
        %v972 = vpop.xlane.xlu0 %971
        %v973 = vsub.f32 %v967, %v972
        %v974 = vmul.f32 %v973, 1.442695
        %v975 = vpow.pop %v974
        %v976 = vsel %vm730, %v975, 0.0
        %977 = vadd.xlane.f32.xlu0 %v976
        %v978 = vpop.xlane.xlu0 %977
        %v979 = vrcp.pop %v978
        %v980 = vmul.f32 %v975, %v979
        %982 = vrot.lane.b32.xlu0 %v729, 120
        %v983 = vpop.permute.xlu0 %982
        %v986 = vsel %vm730, %v980, 0
        %988 = vmatprep.subr.mxu0 0.0
        %989 = vmatpush1.msra.mxu0 %v983
        %990 = vmatprep.subr.mxu0 0.0
        %991 = vmatpush1.msra.mxu0 0.0
        %992 = vmatprep.subr.mxu0 0.0
        %993 = vmatpush1.msra.mxu0 0.0
        %994 = vmatprep.subr.mxu0 0.0
        %995 = vmatpush1.msra.mxu0 0.0
        %996 = vmatprep.subr.mxu0 0.0
        %997 = vmatpush1.msra.mxu0 0.0
        %998 = vmatprep.subr.mxu0 0.0
        %999 = vmatpush1.msra.mxu0 0.0
        %1000 = vmatprep.subr.mxu0 0.0
        %1001 = vmatpush1.msra.mxu0 0.0
        %1002 = vmatprep.subr.mxu0 0.0
        %1003 = vmatpush1.msra.mxu0 0.0
        %1004 = vmatprep.subr.mxu0 0.0
        %1005 = vmatpush1.msra.mxu0 0.0
        %1006 = vmatprep.subr.mxu0 0.0
        %1007 = vmatpush1.msra.mxu0 0.0
        %1008 = vmatprep.subr.mxu0 0.0
        %1009 = vmatpush1.msra.mxu0 0.0
        %1010 = vmatprep.subr.mxu0 0.0
        %1011 = vmatpush1.msra.mxu0 0.0
        %1012 = vmatprep.subr.mxu0 0.0
        %1013 = vmatpush1.msra.mxu0 0.0
        %1014 = vmatprep.subr.mxu0 0.0
        %1015 = vmatpush1.msra.mxu0 0.0
        %1016 = vmatprep.subr.mxu0 0.0
        %1017 = vmatpush1.msra.mxu0 0.0
        %1018 = vmatprep.subr.mxu0 0.0
        %1019 = vmatpush1.msra.mxu0 0.0
        %1020 = vmatprep.subr.mxu0 0.0
        %1021 = vmatpush1.msra.mxu0 0.0
        %1022 = vmatprep.subr.mxu0 0.0
        %1023 = vmatpush1.msra.mxu0 0.0
        %1024 = vmatprep.subr.mxu0 0.0
        %1025 = vmatpush1.msra.mxu0 0.0
        %1026 = vmatprep.subr.mxu0 0.0
        %1027 = vmatpush1.msra.mxu0 0.0
        %1028 = vmatprep.subr.mxu0 0.0
        %1029 = vmatpush1.msra.mxu0 0.0
        %1030 = vmatprep.subr.mxu0 0.0
        %1031 = vmatpush1.msra.mxu0 0.0
        %1032 = vmatprep.subr.mxu0 0.0
        %1033 = vmatpush1.msra.mxu0 0.0
        %1034 = vmatprep.subr.mxu0 0.0
        %1035 = vmatpush1.msra.mxu0 0.0
        %1036 = vmatprep.subr.mxu0 0.0
        %1037 = vmatpush1.msra.mxu0 0.0
        %1038 = vmatprep.subr.mxu0 0.0
        %1039 = vmatpush1.msra.mxu0 0.0
        %1040 = vmatprep.subr.mxu0 0.0
        %1041 = vmatpush1.msra.mxu0 0.0
        %1042 = vmatprep.subr.mxu0 0.0
        %1043 = vmatpush1.msra.mxu0 0.0
        %1044 = vmatprep.subr.mxu0 0.0
        %1045 = vmatpush1.msra.mxu0 0.0
        %1046 = vmatprep.subr.mxu0 0.0
        %1047 = vmatpush1.msra.mxu0 0.0
        %1048 = vmatprep.subr.mxu0 0.0
        %1049 = vmatpush1.msra.mxu0 0.0
        %1050 = vmatprep.subr.mxu0 0.0
        %1051 = vmatpush1.msra.mxu0 0.0
        %1052 = vmatprep.mubr.f32.mxu0 0.0
        %1053 = vmatmul.mubr.f32.gmra.mrb[0].mxu0 %v986
        %v1054 = vpop.f32.mrb[0].mxu0
        %v1055 = vadd.f32 0.0, %v1054
        %v1056 = vpop.f32.mrb[0].mxu0
        %1057 = vdwg.mxu0
        %1059 = vrot.lane.b32.xlu0 %v1055, 8
        %v1060 = vpop.permute.xlu0 %1059
        %vm1062 = vcmask 130112
        %1063 = vst.msk [vmem:[#allocation4] sm:$0xff] %vm1062, %v1060
        %1064 = vrot.lane.b32.xlu0 %v725, 112
        %v1065 = vpop.permute.xlu0 %1064
        %1066 = vrot.lane.b32.xlu0 %v728, 112
        %v1067 = vpop.permute.xlu0 %1066
        %v1068 = vsel %vm730, %v1065, 0
        %v1070 = vsel %vm730, %v1067, 0
        %1072 = vmatprep.subr.mxu0 0.0
        %1073 = vmatpush1.xpose.msra.mxu0 %v1070
        %1074 = vmatprep.subr.mxu0 0.0
        %1075 = vmatpush1.xpose.msra.mxu0 0.0
        %1076 = vmatprep.subr.mxu0 0.0
        %1077 = vmatpush1.xpose.msra.mxu0 0.0
        %1078 = vmatprep.subr.mxu0 0.0
        %1079 = vmatpush1.xpose.msra.mxu0 0.0
        %1080 = vmatprep.subr.mxu0 0.0
        %1081 = vmatpush1.xpose.msra.mxu0 0.0
        %1082 = vmatprep.subr.mxu0 0.0
        %1083 = vmatpush1.xpose.msra.mxu0 0.0
        %1084 = vmatprep.subr.mxu0 0.0
        %1085 = vmatpush1.xpose.msra.mxu0 0.0
        %1086 = vmatprep.subr.mxu0 0.0
        %1087 = vmatpush1.xpose.msra.mxu0 0.0
        %1088 = vmatprep.subr.mxu0 0.0
        %1089 = vmatpush1.xpose.msra.mxu0 0.0
        %1090 = vmatprep.subr.mxu0 0.0
        %1091 = vmatpush1.xpose.msra.mxu0 0.0
        %1092 = vmatprep.subr.mxu0 0.0
        %1093 = vmatpush1.xpose.msra.mxu0 0.0
        %1094 = vmatprep.subr.mxu0 0.0
        %1095 = vmatpush1.xpose.msra.mxu0 0.0
        %1096 = vmatprep.subr.mxu0 0.0
        %1097 = vmatpush1.xpose.msra.mxu0 0.0
        %1098 = vmatprep.subr.mxu0 0.0
        %1099 = vmatpush1.xpose.msra.mxu0 0.0
        %1100 = vmatprep.subr.mxu0 0.0
        %1101 = vmatpush1.xpose.msra.mxu0 0.0
        %1102 = vmatprep.subr.mxu0 0.0
        %1103 = vmatpush1.xpose.msra.mxu0 0.0
        %1104 = vmatprep.subr.mxu0 0.0
        %1105 = vmatpush1.xpose.msra.mxu0 0.0
        %1106 = vmatprep.subr.mxu0 0.0
        %1107 = vmatpush1.xpose.msra.mxu0 0.0
        %1108 = vmatprep.subr.mxu0 0.0
        %1109 = vmatpush1.xpose.msra.mxu0 0.0
        %1110 = vmatprep.subr.mxu0 0.0
        %1111 = vmatpush1.xpose.msra.mxu0 0.0
        %1112 = vmatprep.subr.mxu0 0.0
        %1113 = vmatpush1.xpose.msra.mxu0 0.0
        %1114 = vmatprep.subr.mxu0 0.0
        %1115 = vmatpush1.xpose.msra.mxu0 0.0
        %1116 = vmatprep.subr.mxu0 0.0
        %1117 = vmatpush1.xpose.msra.mxu0 0.0
        %1118 = vmatprep.subr.mxu0 0.0
        %1119 = vmatpush1.xpose.msra.mxu0 0.0
        %1120 = vmatprep.subr.mxu0 0.0
        %1121 = vmatpush1.xpose.msra.mxu0 0.0
        %1122 = vmatprep.subr.mxu0 0.0
        %1123 = vmatpush1.xpose.msra.mxu0 0.0
        %1124 = vmatprep.subr.mxu0 0.0
        %1125 = vmatpush1.xpose.msra.mxu0 0.0
        %1126 = vmatprep.subr.mxu0 0.0
        %1127 = vmatpush1.xpose.msra.mxu0 0.0
        %1128 = vmatprep.subr.mxu0 0.0
        %1129 = vmatpush1.xpose.msra.mxu0 0.0
        %1130 = vmatprep.subr.mxu0 0.0
        %1131 = vmatpush1.xpose.msra.mxu0 0.0
        %1132 = vmatprep.subr.mxu0 0.0
        %1133 = vmatpush1.xpose.msra.mxu0 0.0
        %1134 = vmatprep.subr.mxu0 0.0
        %1135 = vmatpush1.xpose.msra.mxu0 0.0
        %1136 = vmatprep.mubr.f32.mxu0 0.0
        %1137 = vmatmul.mubr.f32.gmra.mrb[0].mxu0 %v1068
        %v1138 = vpop.f32.mrb[0].mxu0
        %v1139 = vadd.f32 0.0, %v1138
        %v1140 = vpop.f32.mrb[0].mxu0
        %1141 = vdwg.mxu0
        %v1142 = vsel %vm730, %v1139, -inf
        %1143 = vmax.xlane.f32.xlu0 %v1142
        %v1144 = vpop.xlane.xlu0 %1143
        %v1145 = vsub.f32 %v1139, %v1144
        %v1146 = vmul.f32 %v1145, 1.442695
        %v1147 = vpow.pop %v1146
        %v1148 = vsel %vm730, %v1147, 0.0
        %1149 = vadd.xlane.f32.xlu0 %v1148
        %v1150 = vpop.xlane.xlu0 %1149
        %v1151 = vrcp.pop %v1150
        %v1152 = vmul.f32 %v1147, %v1151
        %1153 = vrot.lane.b32.xlu0 %v729, 112
        %v1154 = vpop.permute.xlu0 %1153
        %v1157 = vsel %vm730, %v1152, 0
        %1159 = vmatprep.subr.mxu0 0.0
        %1160 = vmatpush1.msra.mxu0 %v1154
        %1161 = vmatprep.subr.mxu0 0.0
        %1162 = vmatpush1.msra.mxu0 0.0
        %1163 = vmatprep.subr.mxu0 0.0
        %1164 = vmatpush1.msra.mxu0 0.0
        %1165 = vmatprep.subr.mxu0 0.0
        %1166 = vmatpush1.msra.mxu0 0.0
        %1167 = vmatprep.subr.mxu0 0.0
        %1168 = vmatpush1.msra.mxu0 0.0
        %1169 = vmatprep.subr.mxu0 0.0
        %1170 = vmatpush1.msra.mxu0 0.0
        %1171 = vmatprep.subr.mxu0 0.0
        %1172 = vmatpush1.msra.mxu0 0.0
        %1173 = vmatprep.subr.mxu0 0.0
        %1174 = vmatpush1.msra.mxu0 0.0
        %1175 = vmatprep.subr.mxu0 0.0
        %1176 = vmatpush1.msra.mxu0 0.0
        %1177 = vmatprep.subr.mxu0 0.0
        %1178 = vmatpush1.msra.mxu0 0.0
        %1179 = vmatprep.subr.mxu0 0.0
        %1180 = vmatpush1.msra.mxu0 0.0
        %1181 = vmatprep.subr.mxu0 0.0
        %1182 = vmatpush1.msra.mxu0 0.0
        %1183 = vmatprep.subr.mxu0 0.0
        %1184 = vmatpush1.msra.mxu0 0.0
        %1185 = vmatprep.subr.mxu0 0.0
        %1186 = vmatpush1.msra.mxu0 0.0
        %1187 = vmatprep.subr.mxu0 0.0
        %1188 = vmatpush1.msra.mxu0 0.0
        %1189 = vmatprep.subr.mxu0 0.0
        %1190 = vmatpush1.msra.mxu0 0.0
        %1191 = vmatprep.subr.mxu0 0.0
        %1192 = vmatpush1.msra.mxu0 0.0
        %1193 = vmatprep.subr.mxu0 0.0
        %1194 = vmatpush1.msra.mxu0 0.0
        %1195 = vmatprep.subr.mxu0 0.0
        %1196 = vmatpush1.msra.mxu0 0.0
        %1197 = vmatprep.subr.mxu0 0.0
        %1198 = vmatpush1.msra.mxu0 0.0
        %1199 = vmatprep.subr.mxu0 0.0
        %1200 = vmatpush1.msra.mxu0 0.0
        %1201 = vmatprep.subr.mxu0 0.0
        %1202 = vmatpush1.msra.mxu0 0.0
        %1203 = vmatprep.subr.mxu0 0.0
        %1204 = vmatpush1.msra.mxu0 0.0
        %1205 = vmatprep.subr.mxu0 0.0
        %1206 = vmatpush1.msra.mxu0 0.0
        %1207 = vmatprep.subr.mxu0 0.0
        %1208 = vmatpush1.msra.mxu0 0.0
        %1209 = vmatprep.subr.mxu0 0.0
        %1210 = vmatpush1.msra.mxu0 0.0
        %1211 = vmatprep.subr.mxu0 0.0
        %1212 = vmatpush1.msra.mxu0 0.0
        %1213 = vmatprep.subr.mxu0 0.0
        %1214 = vmatpush1.msra.mxu0 0.0
        %1215 = vmatprep.subr.mxu0 0.0
        %1216 = vmatpush1.msra.mxu0 0.0
        %1217 = vmatprep.subr.mxu0 0.0
        %1218 = vmatpush1.msra.mxu0 0.0
        %1219 = vmatprep.subr.mxu0 0.0
        %1220 = vmatpush1.msra.mxu0 0.0
        %1221 = vmatprep.subr.mxu0 0.0
        %1222 = vmatpush1.msra.mxu0 0.0
        %1223 = vmatprep.mubr.f32.mxu0 0.0
        %1224 = vmatmul.mubr.f32.gmra.mrb[0].mxu0 %v1157
        %v1225 = vpop.f32.mrb[0].mxu0
        %v1226 = vadd.f32 0.0, %v1225
        %v1227 = vpop.f32.mrb[0].mxu0
        %1228 = vdwg.mxu0
        %1230 = vrot.lane.b32.xlu0 %v1226, 16
        %v1231 = vpop.permute.xlu0 %1230
        %vm1233 = vcmask 195712
        %1234 = vst.msk [vmem:[#allocation4] sm:$0xff] %vm1233, %v1231
        %1235 = vrot.lane.b32.xlu0 %v725, 104
        %v1236 = vpop.permute.xlu0 %1235
        %1237 = vrot.lane.b32.xlu0 %v728, 104
        %v1238 = vpop.permute.xlu0 %1237
        %v1239 = vsel %vm730, %v1236, 0
        %v1241 = vsel %vm730, %v1238, 0
        %1243 = vmatprep.subr.mxu0 0.0
        %1244 = vmatpush1.xpose.msra.mxu0 %v1241
        %1245 = vmatprep.subr.mxu0 0.0
        %1246 = vmatpush1.xpose.msra.mxu0 0.0
        %1247 = vmatprep.subr.mxu0 0.0
        %1248 = vmatpush1.xpose.msra.mxu0 0.0
        %1249 = vmatprep.subr.mxu0 0.0
        %1250 = vmatpush1.xpose.msra.mxu0 0.0
        %1251 = vmatprep.subr.mxu0 0.0
        %1252 = vmatpush1.xpose.msra.mxu0 0.0
        %1253 = vmatprep.subr.mxu0 0.0
        %1254 = vmatpush1.xpose.msra.mxu0 0.0
        %1255 = vmatprep.subr.mxu0 0.0
        %1256 = vmatpush1.xpose.msra.mxu0 0.0
        %1257 = vmatprep.subr.mxu0 0.0
        %1258 = vmatpush1.xpose.msra.mxu0 0.0
        %1259 = vmatprep.subr.mxu0 0.0
        %1260 = vmatpush1.xpose.msra.mxu0 0.0
        %1261 = vmatprep.subr.mxu0 0.0
        %1262 = vmatpush1.xpose.msra.mxu0 0.0
        %1263 = vmatprep.subr.mxu0 0.0
        %1264 = vmatpush1.xpose.msra.mxu0 0.0
        %1265 = vmatprep.subr.mxu0 0.0
        %1266 = vmatpush1.xpose.msra.mxu0 0.0
        %1267 = vmatprep.subr.mxu0 0.0
        %1268 = vmatpush1.xpose.msra.mxu0 0.0
        %1269 = vmatprep.subr.mxu0 0.0
        %1270 = vmatpush1.xpose.msra.mxu0 0.0
        %1271 = vmatprep.subr.mxu0 0.0
        %1272 = vmatpush1.xpose.msra.mxu0 0.0
        %1273 = vmatprep.subr.mxu0 0.0
        %1274 = vmatpush1.xpose.msra.mxu0 0.0
        %1275 = vmatprep.subr.mxu0 0.0
        %1276 = vmatpush1.xpose.msra.mxu0 0.0
        %1277 = vmatprep.subr.mxu0 0.0
        %1278 = vmatpush1.xpose.msra.mxu0 0.0
        %1279 = vmatprep.subr.mxu0 0.0
        %1280 = vmatpush1.xpose.msra.mxu0 0.0
        %1281 = vmatprep.subr.mxu0 0.0
        %1282 = vmatpush1.xpose.msra.mxu0 0.0
        %1283 = vmatprep.subr.mxu0 0.0
        %1284 = vmatpush1.xpose.msra.mxu0 0.0
        %1285 = vmatprep.subr.mxu0 0.0
        %1286 = vmatpush1.xpose.msra.mxu0 0.0
        %1287 = vmatprep.subr.mxu0 0.0
        %1288 = vmatpush1.xpose.msra.mxu0 0.0
        %1289 = vmatprep.subr.mxu0 0.0
        %1290 = vmatpush1.xpose.msra.mxu0 0.0
        %1291 = vmatprep.subr.mxu0 0.0
        %1292 = vmatpush1.xpose.msra.mxu0 0.0
        %1293 = vmatprep.subr.mxu0 0.0
        %1294 = vmatpush1.xpose.msra.mxu0 0.0
        %1295 = vmatprep.subr.mxu0 0.0
        %1296 = vmatpush1.xpose.msra.mxu0 0.0
        %1297 = vmatprep.subr.mxu0 0.0
        %1298 = vmatpush1.xpose.msra.mxu0 0.0
        %1299 = vmatprep.subr.mxu0 0.0
        %1300 = vmatpush1.xpose.msra.mxu0 0.0
        %1301 = vmatprep.subr.mxu0 0.0
        %1302 = vmatpush1.xpose.msra.mxu0 0.0
        %1303 = vmatprep.subr.mxu0 0.0
        %1304 = vmatpush1.xpose.msra.mxu0 0.0
        %1305 = vmatprep.subr.mxu0 0.0
        %1306 = vmatpush1.xpose.msra.mxu0 0.0
        %1307 = vmatprep.mubr.f32.mxu0 0.0
        %1308 = vmatmul.mubr.f32.gmra.mrb[0].mxu0 %v1239
        %v1309 = vpop.f32.mrb[0].mxu0
        %v1310 = vadd.f32 0.0, %v1309
        %v1311 = vpop.f32.mrb[0].mxu0
        %1312 = vdwg.mxu0
        %v1313 = vsel %vm730, %v1310, -inf
        %1314 = vmax.xlane.f32.xlu0 %v1313
        %v1315 = vpop.xlane.xlu0 %1314
        %v1316 = vsub.f32 %v1310, %v1315
        %v1317 = vmul.f32 %v1316, 1.442695
        %v1318 = vpow.pop %v1317
        %v1319 = vsel %vm730, %v1318, 0.0
        %1320 = vadd.xlane.f32.xlu0 %v1319
        %v1321 = vpop.xlane.xlu0 %1320
        %v1322 = vrcp.pop %v1321
        %v1323 = vmul.f32 %v1318, %v1322
        %1324 = vrot.lane.b32.xlu0 %v729, 104
        %v1325 = vpop.permute.xlu0 %1324
        %v1328 = vsel %vm730, %v1323, 0
        %1330 = vmatprep.subr.mxu0 0.0
        %1331 = vmatpush1.msra.mxu0 %v1325
        %1332 = vmatprep.subr.mxu0 0.0
        %1333 = vmatpush1.msra.mxu0 0.0
        %1334 = vmatprep.subr.mxu0 0.0
        %1335 = vmatpush1.msra.mxu0 0.0
        %1336 = vmatprep.subr.mxu0 0.0
        %1337 = vmatpush1.msra.mxu0 0.0
        %1338 = vmatprep.subr.mxu0 0.0
        %1339 = vmatpush1.msra.mxu0 0.0
        %1340 = vmatprep.subr.mxu0 0.0
        %1341 = vmatpush1.msra.mxu0 0.0
        %1342 = vmatprep.subr.mxu0 0.0
        %1343 = vmatpush1.msra.mxu0 0.0
        %1344 = vmatprep.subr.mxu0 0.0
        %1345 = vmatpush1.msra.mxu0 0.0
        %1346 = vmatprep.subr.mxu0 0.0
        %1347 = vmatpush1.msra.mxu0 0.0
        %1348 = vmatprep.subr.mxu0 0.0
        %1349 = vmatpush1.msra.mxu0 0.0
        %1350 = vmatprep.subr.mxu0 0.0
        %1351 = vmatpush1.msra.mxu0 0.0
        %1352 = vmatprep.subr.mxu0 0.0
        %1353 = vmatpush1.msra.mxu0 0.0
        %1354 = vmatprep.subr.mxu0 0.0
        %1355 = vmatpush1.msra.mxu0 0.0
        %1356 = vmatprep.subr.mxu0 0.0
        %1357 = vmatpush1.msra.mxu0 0.0
        %1358 = vmatprep.subr.mxu0 0.0
        %1359 = vmatpush1.msra.mxu0 0.0
        %1360 = vmatprep.subr.mxu0 0.0
        %1361 = vmatpush1.msra.mxu0 0.0
        %1362 = vmatprep.subr.mxu0 0.0
        %1363 = vmatpush1.msra.mxu0 0.0
        %1364 = vmatprep.subr.mxu0 0.0
        %1365 = vmatpush1.msra.mxu0 0.0
        %1366 = vmatprep.subr.mxu0 0.0
        %1367 = vmatpush1.msra.mxu0 0.0
        %1368 = vmatprep.subr.mxu0 0.0
        %1369 = vmatpush1.msra.mxu0 0.0
        %1370 = vmatprep.subr.mxu0 0.0
        %1371 = vmatpush1.msra.mxu0 0.0
        %1372 = vmatprep.subr.mxu0 0.0
        %1373 = vmatpush1.msra.mxu0 0.0
        %1374 = vmatprep.subr.mxu0 0.0
        %1375 = vmatpush1.msra.mxu0 0.0
        %1376 = vmatprep.subr.mxu0 0.0
        %1377 = vmatpush1.msra.mxu0 0.0
        %1378 = vmatprep.subr.mxu0 0.0
        %1379 = vmatpush1.msra.mxu0 0.0
        %1380 = vmatprep.subr.mxu0 0.0
        %1381 = vmatpush1.msra.mxu0 0.0
        %1382 = vmatprep.subr.mxu0 0.0
        %1383 = vmatpush1.msra.mxu0 0.0
        %1384 = vmatprep.subr.mxu0 0.0
        %1385 = vmatpush1.msra.mxu0 0.0
        %1386 = vmatprep.subr.mxu0 0.0
        %1387 = vmatpush1.msra.mxu0 0.0
        %1388 = vmatprep.subr.mxu0 0.0
        %1389 = vmatpush1.msra.mxu0 0.0
        %1390 = vmatprep.subr.mxu0 0.0
        %1391 = vmatpush1.msra.mxu0 0.0
        %1392 = vmatprep.subr.mxu0 0.0
        %1393 = vmatpush1.msra.mxu0 0.0
        %1394 = vmatprep.mubr.f32.mxu0 0.0
        %1395 = vmatmul.mubr.f32.gmra.mrb[0].mxu0 %v1328
        %v1396 = vpop.f32.mrb[0].mxu0
        %v1397 = vadd.f32 0.0, %v1396
        %v1398 = vpop.f32.mrb[0].mxu0
        %1399 = vdwg.mxu0
        %1401 = vrot.lane.b32.xlu0 %v1397, 24
        %v1402 = vpop.permute.xlu0 %1401
        %vm1404 = vcmask 261312
        %1405 = vst.msk [vmem:[#allocation4] sm:$0xff] %vm1404, %v1402
        %v1406 = vld [vmem:[#allocation4] sm:$0xff]
        %v1407 = vld [vmem:[#allocation13] sm:$0xff]
        %v1408 = vld [vmem:[#allocation13 + $0x8] sm:$0xff]
        %v1409 = vld [vmem:[#allocation13 + $0x10] sm:$0xff]
        %v1410 = vld [vmem:[#allocation13 + $0x18] sm:$0xff]
        %v1411 = vld [vmem:[%s9] sm:$0x1]
        %v1413 = vlaneseq
        %v1414 = vshrl.u32 %v1413, 7
        %v1415 = vsub.s32 0, %v1414
        %v1416 = vrot.slane %v1411, %v1415
        %v1419 = vsel %vm654, %v1406, 0
        %1421 = vmatprep.subr.mxu0 0.0
        %1422 = vmatpush1.msra.mxu0 %v1407
        %1423 = vmatprep.subr.mxu0 0.0
        %1424 = vmatpush1.msra.mxu0 %v1408
        %1425 = vmatprep.subr.mxu0 0.0
        %1426 = vmatpush1.msra.mxu0 %v1409
        %1427 = vmatprep.subr.mxu0 0.0
        %1428 = vmatpush1.msra.mxu0 %v1410
        %1429 = vmatprep.subr.mxu0 0.0
        %1430 = vmatpush1.msra.mxu0 0.0
        %1431 = vmatprep.subr.mxu0 0.0
        %1432 = vmatpush1.msra.mxu0 0.0
        %1433 = vmatprep.subr.mxu0 0.0
        %1434 = vmatpush1.msra.mxu0 0.0
        %1435 = vmatprep.subr.mxu0 0.0
        %1436 = vmatpush1.msra.mxu0 0.0
        %1437 = vmatprep.subr.mxu0 0.0
        %1438 = vmatpush1.msra.mxu0 0.0
        %1439 = vmatprep.subr.mxu0 0.0
        %1440 = vmatpush1.msra.mxu0 0.0
        %1441 = vmatprep.subr.mxu0 0.0
        %1442 = vmatpush1.msra.mxu0 0.0
        %1443 = vmatprep.subr.mxu0 0.0
        %1444 = vmatpush1.msra.mxu0 0.0
        %1445 = vmatprep.subr.mxu0 0.0
        %1446 = vmatpush1.msra.mxu0 0.0
        %1447 = vmatprep.subr.mxu0 0.0
        %1448 = vmatpush1.msra.mxu0 0.0
        %1449 = vmatprep.subr.mxu0 0.0
        %1450 = vmatpush1.msra.mxu0 0.0
        %1451 = vmatprep.subr.mxu0 0.0
        %1452 = vmatpush1.msra.mxu0 0.0
        %1453 = vmatprep.subr.mxu0 0.0
        %1454 = vmatpush1.msra.mxu0 0.0
        %1455 = vmatprep.subr.mxu0 0.0
        %1456 = vmatpush1.msra.mxu0 0.0
        %1457 = vmatprep.subr.mxu0 0.0
        %1458 = vmatpush1.msra.mxu0 0.0
        %1459 = vmatprep.subr.mxu0 0.0
        %1460 = vmatpush1.msra.mxu0 0.0
        %1461 = vmatprep.subr.mxu0 0.0
        %1462 = vmatpush1.msra.mxu0 0.0
        %1463 = vmatprep.subr.mxu0 0.0
        %1464 = vmatpush1.msra.mxu0 0.0
        %1465 = vmatprep.subr.mxu0 0.0
        %1466 = vmatpush1.msra.mxu0 0.0
        %1467 = vmatprep.subr.mxu0 0.0
        %1468 = vmatpush1.msra.mxu0 0.0
        %1469 = vmatprep.subr.mxu0 0.0
        %1470 = vmatpush1.msra.mxu0 0.0
        %1471 = vmatprep.subr.mxu0 0.0
        %1472 = vmatpush1.msra.mxu0 0.0
        %1473 = vmatprep.subr.mxu0 0.0
        %1474 = vmatpush1.msra.mxu0 0.0
        %1475 = vmatprep.subr.mxu0 0.0
        %1476 = vmatpush1.msra.mxu0 0.0
        %1477 = vmatprep.subr.mxu0 0.0
        %1478 = vmatpush1.msra.mxu0 0.0
        %1479 = vmatprep.subr.mxu0 0.0
        %1480 = vmatpush1.msra.mxu0 0.0
        %1481 = vmatprep.subr.mxu0 0.0
        %1482 = vmatpush1.msra.mxu0 0.0
        %1483 = vmatprep.subr.mxu0 0.0
        %1484 = vmatpush1.msra.mxu0 0.0
        %1485 = vmatprep.mubr.f32.mxu0 0.0
        %1486 = vmatmul.mubr.f32.gmra.mrb[0].mxu0 %v1419
        %v1487 = vpop.f32.mrb[0].mxu0
        %v1488 = vadd.f32 %v1416, %v1487
        %v1489 = vpop.f32.mrb[0].mxu0
        %1490 = vdwg.mxu0
        %1491 = vst.msk [vmem:[%s471] sm:$0xff] %vm654, %v1488
        %s1492 = sand.u32 %s275, 1
        %s1493 = scalar_lea.sflag [#allocation7], %s1492
        %s1494 = sand.u32 %s275, 1
        %s1495 = smul.addr %s1494, 8
        %s1496 = scalar_lea.vmem [#allocation14], %s1495
        // Predicated region
        $region85: #{tpu_custom_call.1} parent=59 // pred_check
          %p1497 = pneg %p285
        $region86: #{tpu_custom_call.1} parent=59 // pred_check_branch
          %1499 = sbr.rel (%p1497) target = $region88
        $region87: #{tpu_custom_call.1} parent=59 // pred_region
          %s1501 = ssub.s32 128, 128
          %1502 = vsyncadd %s1493, %s1501
          %s1503 = sadd.s32 %s36, %s35
          %s1504 = smul.addr %s1503, 128
          %s1505 = scalar_lea.hbm %s10, %s1504
          %s1507 = sshll.u32 %s1496, 4
          %s1508 = int_to_ptr.vmem [resolvable:$true] %s1507
          %1510 = dma.vmem_to_hbm [thread:$0]  %s1508, 128, %s1505, %s1493
        $region88: #{tpu_custom_call.1} parent=59 // pred_fallthru
          _
      $region60: #{tpu_custom_call.1} parent=5 // pred_fallthru
        _
      %p1511 = scmp.le.s32.totalorder 2, %s26
      // Predicated region
      $region89: #{tpu_custom_call.1} parent=5 // pred_check
        %p1512 = pneg %p1511
      $region90: #{tpu_custom_call.1} parent=5 // pred_check_branch
        %1514 = sbr.rel (%p1512) target = $region92
      $region91: #{tpu_custom_call.1} parent=5 // pred_region
        %s1515 = ssub.s32 %s26, 2
        // Predicated region
        $region93: #{tpu_custom_call.1} parent=91 // pred_check
          %p1516 = pneg %p291
        $region94: #{tpu_custom_call.1} parent=91 // pred_check_branch
          %1518 = sbr.rel (%p1516) target = $region96
        $region95: #{tpu_custom_call.1} parent=91 // pred_region
          %s1519 = sand.u32 %s276, 1
          %s1520 = scalar_lea.sflag [#allocation7], %s1519
          %s1521 = sand.u32 %s276, 1
          %s1522 = smul.addr %s1521, 8
          %s1523 = scalar_lea.vmem [#allocation14], %s1522
          %1524 = dma.done %s1520, 128
        $region96: #{tpu_custom_call.1} parent=91 // pred_fallthru
          _
      $region92: #{tpu_custom_call.1} parent=5 // pred_fallthru
        _
    $region6: #{tpu_custom_call.1} parent=1 // loop_footer
      %s30 = sadd.s32 1, %s26
    $region7: #{tpu_custom_call.1} parent=1 // loop_footer_branch
      %25 = sbr.rel target = $region3
    $region8: #{tpu_custom_call.1} parent=1 // loop_exit
      _
    %1525 = vsyncpa [#allocation6], 1
    %s1526 = scalar_lea.sflag [#allocation6], 1
    %1527 = vsyncpa %s1526, 1
    %1528 = vsyncpa [#allocation9], 1
    %s1529 = scalar_lea.sflag [#allocation9], 1
    %1530 = vsyncpa %s1529, 1
    %1531 = vsyncpa [#allocation12], 1
    %1532 = vsyncpa [#allocation7], 1
    %s1533 = scalar_lea.sflag [#allocation7], 1
    %1534 = vsyncpa %s1533, 1

</llo_original>
